<compile_context>
chip_gen: v6e
topology: v6e:2x2x1
jax: 0.10.0
libtpu: 0.0.40
codegen_flags: <defaults>
</compile_context>

<pallas_src>
import functools

import jax
import jax.numpy as jnp
import numpy as np
from jax import lax
from jax.experimental import pallas as pl
from jax.experimental.pallas import tpu as pltpu

TIME_CHUNK = 128       # timesteps per grid step (amortises ~0.35us/step overhead)
MAX_BATCH_TILE = 128   # batch lanes per block / per TensorCore
BP_DTYPE = jnp.int8    # back-pointer storage dtype (tag indices < 256)
NEG_INF = -1.0e30      # "unreachable" partition value for the t == 0 init


def _round_up(x, m):
    return ((x + m - 1) // m) * m


# ----------------------------------------------------------------------------
# Kernel 1: chunked Viterbi forward recursion + fused final STOP pointer.
# ----------------------------------------------------------------------------
def _viterbi_fwd_kernel(feats_ref, len_ref, trans_ref, stop_ref,
                        bp_ref, ptr_ref, part_scr, last_scr):
    """One grid step = one (batch_tile, time_chunk) block of the recursion.

    feats_ref : (C, T, Bt) f32   emissions, tag on sublanes, batch on lanes
    len_ref   : (1, Bt)    i32   sequence lengths (prefix mask assumed)
    trans_ref : (T, T, 1)  f32   transitions transposed: [to, from, 1]
    stop_ref  : (T, 1)     f32   transitions[:, STOP] as a column
    bp_ref    : (C, T, Bt) i8    back-pointers (0 where t == 0 or t >= length)
    ptr_ref   : (1, Bt)    i32   best last tag at position length-1
    part_scr  : (T, Bt)    f32   running partition (carried across chunks)
    last_scr  : (T, Bt)    f32   partition at position length-1
    """
    c = pl.program_id(1)
    chunk = feats_ref.shape[0]
    tag_size = trans_ref.shape[0]
    bt = feats_ref.shape[2]

    # ---- loop-invariant values, hoisted out of the time loop ---------------
    lengths = len_ref[...]                                        # (1, Bt)
    len_m1 = lengths - 1
    # transitions lane-broadcast materialised ONCE per grid step
    trans_b = jnp.broadcast_to(trans_ref[...], (tag_size, tag_size, bt))
    # argmax iota over the "from" axis, loop invariant
    iota_from = lax.broadcasted_iota(jnp.int32, (tag_size, tag_size, bt), 1)

    @pl.when(c == 0)
    def _init():
        # Only START is reachable "before" t == 0, so the uniform recursion
        # reproduces partition_0 = feats_0 + trans[START, :] exactly and no
        # per-step t == 0 select is needed.
        tag_iota = lax.broadcasted_iota(jnp.int32, part_scr.shape, 0)
        part_scr[...] = jnp.where(tag_iota == tag_size - 2, 0.0,
                                  NEG_INF).astype(jnp.float32)
        last_scr[...] = jnp.zeros_like(last_scr)

    def step(i, carry):
        t = c * chunk + i                                         # global step
        feats_t = feats_ref[i]                                    # (T, Bt)
        part = part_scr[...]                                      # (from, Bt)

        # cur[to, f, b] = transitions[f, to] + partition[f, b]
        cur = trans_b + part[None, :, :]                          # (to, from, Bt)
        best_kd = jnp.max(cur, axis=1, keepdims=True)             # (to, 1, Bt)
        # first-occurrence argmax over "from" (same tie rule as np.argmax)
        bp = jnp.min(jnp.where(cur == best_kd, iota_from, tag_size),
                     axis=1)                                      # (to, Bt) i32
        best = jnp.squeeze(best_kd, axis=1)                       # (to, Bt)

        new_part = feats_t + best
        keep_bp = jnp.logical_and(t > 0, t < lengths)             # (1, Bt)
        bp_ref[i] = jnp.where(keep_bp, bp, 0).astype(bp_ref.dtype)

        part_scr[...] = new_part
        # partition at position (length - 1), exactly like the torch gather.
        # TODO(synk): on v5e this per-step select+store could be gated with a
        # per-chunk "any sequence ends here" pl.when to ease the single vst slot.
        last_scr[...] = jnp.where(t == len_m1, new_part, last_scr[...])
        return carry

    lax.fori_loop(0, chunk, step, 0, unroll=min(8, chunk))

    @pl.when(c == pl.num_programs(1) - 1)
    def _finalize():
        # pointer[b] = argmax_f (last_partition[f, b] + transitions[f, STOP])
        score = last_scr[...] + stop_ref[...]                     # (from, Bt)
        best = jnp.max(score, axis=0, keepdims=True)              # (1, Bt)
        iota0 = lax.broadcasted_iota(jnp.int32, score.shape, 0)
        ptr_ref[...] = jnp.min(jnp.where(score == best, iota0, tag_size),
                               axis=0, keepdims=True).astype(jnp.int32)


# ----------------------------------------------------------------------------
# Kernel 2: reverse-time pointer chasing over the back-pointers.
# ----------------------------------------------------------------------------
def _backtrack_kernel(bp_ref, len_ref, ptr0_ref, dec_ref, ptr_scr, row_scr,
                      *, seq_len):
    """bp_ref  : (C, T, Bt) i8   back-pointer chunk (grid runs time-reversed)
       len_ref : (1, Bt)    i32
       ptr0_ref: (1, Bt)    i32  end pointer from the forward kernel
       dec_ref : (C, 1, Bt) i32  decoded tags for this chunk
       ptr_scr : (1, Bt)    i32  pointer carried across chunks (= decode[lo])
       row_scr : (T, Bt)    i32  bp row at the bottom of the previous chunk
    """
    c = pl.program_id(1)
    nct = pl.num_programs(1)
    chunk, tag_size, bt = bp_ref.shape
    lo = (nct - 1 - c) * chunk        # lowest global timestep of this chunk

    lengths = len_ref[...]
    len_m1 = lengths - 1
    ptr0 = ptr0_ref[...]
    iota_tag = lax.broadcasted_iota(jnp.int32, (tag_size, bt), 0)

    @pl.when(c == 0)
    def _init():
        ptr_scr[...] = ptr0
        row_scr[...] = jnp.zeros_like(row_scr)

    def pointer_at(t, bp_next, ptr_next):
        # reference rule:  decode[t] = pointer0           if t >= S-1
        #                            = pointer0           if t == length-1
        #                            = bp[t+1][ptr_next]  otherwise
        gathered = jnp.sum(jnp.where(iota_tag == ptr_next, bp_next, 0),
                           axis=0, keepdims=True)                 # (1, Bt)
        override = jnp.logical_or(t >= seq_len - 1, t == len_m1)
        return jnp.where(override, ptr0, gathered)

    # top row of this chunk needs bp[lo + chunk], carried from the previous
    # (later-in-time) grid step in row_scr.
    ptr = pointer_at(lo + chunk - 1, row_scr[...], ptr_scr[...])
    dec_ref[chunk - 1] = ptr

    def step(j, ptr_next):
        i = chunk - 2 - j
        new_ptr = pointer_at(lo + i, bp_ref[i + 1].astype(jnp.int32), ptr_next)
        dec_ref[i] = new_ptr
        return new_ptr

    ptr = lax.fori_loop(0, chunk - 1, step, ptr, unroll=min(8, chunk - 1))

    # carry for the next (earlier-in-time) chunk
    ptr_scr[...] = ptr
    row_scr[...] = bp_ref[0].astype(jnp.int32)


# ----------------------------------------------------------------------------
# Full decode: layout plumbing + 2 pallas_calls.
# ----------------------------------------------------------------------------
@functools.partial(jax.jit, static_argnames=("time_chunk",))
def crf_viterbi_decode(feats, mask, transitions, *, time_chunk=TIME_CHUNK):
    """feats: (B, S, T) f32; mask: (B, S) {0,1} prefix mask; transitions: (T, T)."""
    B, S, T = feats.shape
    STOP = T - 1
    lengths_1b = jnp.sum(mask.astype(jnp.int32), axis=1)[None, :]      # (1, B)

    chunk = max(8, min(time_chunk, _round_up(S, 8)))
    chunk = _round_up(chunk, 8)
    s_pad = _round_up(S, chunk)

    # TODO(synk): accept feats already time-major (or bf16) upstream to avoid
    # this extra HBM round trip of the largest tensor.
    feats_stm = jnp.transpose(feats.astype(jnp.float32), (1, 2, 0))     # (S, T, B)
    if s_pad != S:
        feats_stm = jnp.pad(feats_stm, ((0, s_pad - S), (0, 0), (0, 0)))

    trans = transitions.astype(jnp.float32)
    trans_t3 = jnp.transpose(trans, (1, 0))[:, :, None]                 # (to, from, 1)
    stop_col = trans[:, STOP][:, None]                                  # (T, 1)

    b_tile = B if B <= MAX_BATCH_TILE else MAX_BATCH_TILE
    nb = pl.cdiv(B, b_tile)
    nct = s_pad // chunk
    grid = (nb, nct)   # batch "parallel" (megacore), time "arbitrary" (carry)

    # ---- forward recursion -> int8 back-pointers + end pointer -------------
    bp, ptr = pl.pallas_call(
        _viterbi_fwd_kernel,
        out_shape=(jax.ShapeDtypeStruct((s_pad, T, B), BP_DTYPE),
                   jax.ShapeDtypeStruct((1, B), jnp.int32)),
        grid_spec=pltpu.PrefetchScalarGridSpec(
            num_scalar_prefetch=0,
            grid=grid,
            in_specs=[
                pl.BlockSpec((chunk, T, b_tile), lambda b, c: (c, 0, b)),
                pl.BlockSpec((1, b_tile), lambda b, c: (0, b)),
                pl.BlockSpec((T, T, 1), lambda b, c: (0, 0, 0)),
                pl.BlockSpec((T, 1), lambda b, c: (0, 0)),
            ],
            out_specs=[
                pl.BlockSpec((chunk, T, b_tile), lambda b, c: (c, 0, b)),
                pl.BlockSpec((1, b_tile), lambda b, c: (0, b)),
            ],
            scratch_shapes=[pltpu.VMEM((T, b_tile), jnp.float32),
                            pltpu.VMEM((T, b_tile), jnp.float32)],
        ),
        compiler_params=pltpu.CompilerParams(
            dimension_semantics=("parallel", "arbitrary")),
    )(feats_stm, lengths_1b, trans_t3, stop_col)

    # ---- reverse-time back-tracking over the back-pointers -----------------
    dec = pl.pallas_call(
        functools.partial(_backtrack_kernel, seq_len=S),
        out_shape=jax.ShapeDtypeStruct((s_pad, 1, B), jnp.int32),
        grid_spec=pltpu.PrefetchScalarGridSpec(
            num_scalar_prefetch=0,
            grid=grid,
            in_specs=[
                pl.BlockSpec((chunk, T, b_tile),
                             lambda b, c, nct=nct: (nct - 1 - c, 0, b)),
                pl.BlockSpec((1, b_tile), lambda b, c: (0, b)),
                pl.BlockSpec((1, b_tile), lambda b, c: (0, b)),
            ],
            out_specs=pl.BlockSpec((chunk, 1, b_tile),
                                   lambda b, c, nct=nct: (nct - 1 - c, 0, b)),
            scratch_shapes=[pltpu.VMEM((1, b_tile), jnp.int32),
                            pltpu.VMEM((T, b_tile), jnp.int32)],
        ),
        compiler_params=pltpu.CompilerParams(
            dimension_semantics=("parallel", "arbitrary")),
    )(bp, lengths_1b, ptr)

    decode_idx = jnp.transpose(dec[:S, 0, :], (1, 0)).astype(jnp.int32)  # (B, S)
    path_score = None   # matches the PyTorch _viterbi_decode
    return path_score, decode_idx


class CRFPallas:
    def __init__(self, target_size, key):
        self.target_size = target_size
        T = target_size + 2
        self.tag_size = T
        self.START_TAG = T - 2
        self.STOP_TAG = T - 1
        # Deterministic synthetic init (zero init makes Viterbi degenerate with
        # ties); same START/STOP constraints as the PyTorch __init__.
        trans = 0.1 * jax.random.normal(key, (T, T), jnp.float32)
        trans = trans.at[:, self.START_TAG].set(-10000.0)
        trans = trans.at[self.STOP_TAG, :].set(-10000.0)
        self.transitions = trans

    def forward(self, feats, mask):
        return crf_viterbi_decode(feats, mask, self.transitions)


# ----------------------------------------------------------------------------
# NumPy reference of CRF._viterbi_decode (same fp association as the kernel)
# ----------------------------------------------------------------------------
def viterbi_decode_ref(feats, mask, trans):
    feats = np.asarray(feats, np.float32)
    mask = np.asarray(mask, np.int64)
    trans = np.asarray(trans, np.float32)
    B, S, T = feats.shape
    START, STOP = T - 2, T - 1
    lengths = mask.sum(axis=1)

    part = feats[:, 0, :] + trans[START][None, :]                       # (B, T)
    hist = [part]
    bps = []
    for t in range(1, S):
        cur = trans.T[None, :, :] + part[:, None, :]                    # (B, to, from)
        best = cur.max(axis=2)
        bp = cur.argmax(axis=2)
        part = feats[:, t, :] + best
        hist.append(part)
        bps.append(np.where(mask[:, t:t + 1] > 0, bp, 0))
    hist = np.stack(hist, axis=0)                                       # (S, B, T)

    last_part = hist[lengths - 1, np.arange(B)]                         # (B, T)
    pointer = (last_part + trans[:, STOP][None, :]).argmax(axis=1)      # (B,)

    back = np.concatenate([np.stack(bps, 0), np.zeros((1, B, T), np.int64)], 0)
    for b in range(B):
        back[lengths[b] - 1, b, :] = pointer[b]
    decode = np.zeros((S, B), np.int64)
    decode[S - 1] = pointer
    ptr = pointer.copy()
    for idx in range(S - 2, -1, -1):
        ptr = back[idx, np.arange(B), ptr]
        decode[idx] = ptr
    return decode.T.astype(np.int32)                                    # (B, S)


if __name__ == "__main__":
    key = jax.random.PRNGKey(0)
    k_param, k_feat = jax.random.split(key)

    batch, seq_len, target_size = 2, 8, 6
    tag_size = target_size + 2

    crf = CRFPallas(target_size=target_size, key=k_param)
    feats = jax.random.normal(k_feat, (batch, seq_len, tag_size), jnp.float32)
    lengths = jnp.array([seq_len, 5], jnp.int32)
    mask = (jnp.arange(seq_len)[None, :] < lengths[:, None]).astype(jnp.int32)

    path_score, decode_idx = crf.forward(feats, mask)
    decode_idx = jax.block_until_ready(decode_idx)

    ref = viterbi_decode_ref(np.asarray(feats), np.asarray(mask),
                             np.asarray(crf.transitions))
    assert decode_idx.shape == (batch, seq_len)
    assert path_score is None
    assert np.array_equal(np.asarray(decode_idx), ref), (decode_idx, ref)

    # Chunked / padded configuration (S not a multiple of the chunk) to
    # exercise the cross-chunk carries of both kernels.
    k2 = jax.random.PRNGKey(1)
    B2, S2 = 4, 11
    feats2 = jax.random.normal(k2, (B2, S2, tag_size), jnp.float32)
    len2 = jnp.array([S2, 7, 1, 9], jnp.int32)
    mask2 = (jnp.arange(S2)[None, :] < len2[:, None]).astype(jnp.int32)
    _, dec2 = crf_viterbi_decode(feats2, mask2, crf.transitions, time_chunk=8)
    dec2 = jax.block_until_ready(dec2)
    ref2 = viterbi_decode_ref(np.asarray(feats2), np.asarray(mask2),
                              np.asarray(crf.transitions))
    assert np.array_equal(np.asarray(dec2), ref2), (dec2, ref2)

    print("KERNEL_OK")
</pallas_src>

<mosaic_0001>
module attributes {stable_mosaic.version = 11 : i64} {
  func.func @_backtrack_kernel(%arg0: i32, %arg1: i32, %arg2: memref<8x8x2xi8, #tpu.memory_space<vmem>>, %arg3: memref<1x2xi32, #tpu.memory_space<vmem>>, %arg4: memref<1x2xi32, #tpu.memory_space<vmem>>, %arg5: memref<8x1x2xi32, #tpu.memory_space<vmem>>, %arg6: memref<1x2xi32, #tpu.memory_space<vmem>>, %arg7: memref<8x2xi32, #tpu.memory_space<vmem>>) attributes {dimension_semantics = [#tpu.dimension_semantics<parallel>, #tpu.dimension_semantics<arbitrary>], iteration_bounds = array<i64: 1, 1>, scalar_prefetch = 0 : i64, scratch_operands = 2 : i64, tpu.core_type = #tpu.core_type<tc>, window_params = [{transform_indices = @transform_0, window_bounds = array<i64: 8, 8, 2>}, {transform_indices = @transform_1, window_bounds = array<i64: 1, 2>}, {transform_indices = @transform_2, window_bounds = array<i64: 1, 2>}, {transform_indices = @transform_3, window_bounds = array<i64: 8, 1, 2>}]} {
    %c0_i32 = arith.constant 0 : i32
    %0 = arith.subi %c0_i32, %arg1 : i32
    %c8_i32 = arith.constant 8 : i32
    %1 = arith.muli %0, %c8_i32 : i32
    %c0 = arith.constant 0 : index
    %c0_0 = arith.constant 0 : index
    %2 = vector.load %arg3[%c0, %c0_0] : memref<1x2xi32, #tpu.memory_space<vmem>>, vector<1x2xi32>
    %c1_i32 = arith.constant 1 : i32
    %3 = vector.broadcast %c1_i32 : i32 to vector<1x2xi32>
    %4 = arith.subi %2, %3 : vector<1x2xi32>
    %c0_1 = arith.constant 0 : index
    %c0_2 = arith.constant 0 : index
    %5 = vector.load %arg4[%c0_1, %c0_2] : memref<1x2xi32, #tpu.memory_space<vmem>>, vector<1x2xi32>
    %6 = tpu.iota {dimensions = array<i32: 0>} : vector<8x2xi32>
    %c0_i32_3 = arith.constant 0 : i32
    %7 = arith.cmpi eq, %arg1, %c0_i32_3 : i32
    %8 = arith.extui %7 : i1 to i32
    %c0_i32_4 = arith.constant 0 : i32
    %9 = arith.cmpi ne, %8, %c0_i32_4 : i32
    scf.if %9 {
      %c0_87 = arith.constant 0 : index
      %c0_88 = arith.constant 0 : index
      %195 = vector.load %arg6[%c0_87, %c0_88] : memref<1x2xi32, #tpu.memory_space<vmem>>, vector<1x2xi32>
      tpu.vector_store %arg6[%c0_87, %c0_88], %5 {strides = array<i32>} : memref<1x2xi32, #tpu.memory_space<vmem>>, vector<1x2xi32>,
      %c0_i32_89 = arith.constant 0 : i32
      %196 = vector.broadcast %c0_i32_89 : i32 to vector<8x2xi32>
      %c0_90 = arith.constant 0 : index
      %c0_91 = arith.constant 0 : index
      %197 = vector.load %arg7[%c0_90, %c0_91] : memref<8x2xi32, #tpu.memory_space<vmem>>, vector<8x2xi32>
      tpu.vector_store %arg7[%c0_90, %c0_91], %196 {strides = array<i32>} : memref<8x2xi32, #tpu.memory_space<vmem>>, vector<8x2xi32>,
    } else {
    }
    %c8_i32_5 = arith.constant 8 : i32
    %10 = arith.addi %1, %c8_i32_5 : i32
    %c1_i32_6 = arith.constant 1 : i32
    %11 = arith.subi %10, %c1_i32_6 : i32
    %c0_7 = arith.constant 0 : index
    %c0_8 = arith.constant 0 : index
    %12 = vector.load %arg7[%c0_7, %c0_8] : memref<8x2xi32, #tpu.memory_space<vmem>>, vector<8x2xi32>
    %c0_9 = arith.constant 0 : index
    %c0_10 = arith.constant 0 : index
    %13 = vector.load %arg6[%c0_9, %c0_10] : memref<1x2xi32, #tpu.memory_space<vmem>>, vector<1x2xi32>
    %14 = vector.broadcast %13 : vector<1x2xi32> to vector<8x2xi32>
    %15 = arith.cmpi eq, %6, %14 : vector<8x2xi32>
    %c0_i32_11 = arith.constant 0 : i32
    %16 = vector.broadcast %c0_i32_11 : i32 to vector<8x2xi32>
    %17 = arith.select %15, %12, %16 : vector<8x2xi1>, vector<8x2xi32>
    %cst = arith.constant dense<0> : vector<2xi32>
    %18 = vector.multi_reduction <add>, %17, %cst [0] : vector<8x2xi32> to vector<2xi32>
    %19 = vector.shape_cast %18 : vector<2xi32> to vector<1x2xi32>
    %c7_i32 = arith.constant 7 : i32
    %20 = arith.cmpi sge, %11, %c7_i32 : i32
    %21 = vector.broadcast %11 : i32 to vector<1x2xi32>
    %22 = arith.cmpi eq, %21, %4 : vector<1x2xi32>
    %23 = vector.broadcast %20 : i1 to vector<1x2xi1>
    %24 = arith.ori %23, %22 : vector<1x2xi1>
    %25 = arith.select %24, %5, %19 : vector<1x2xi1>, vector<1x2xi32>
    %c7 = arith.constant 7 : index
    %c0_12 = arith.constant 0 : index
    %c0_13 = arith.constant 0 : index
    %26 = vector.load %arg5[%c7, %c0_12, %c0_13] : memref<8x1x2xi32, #tpu.memory_space<vmem>>, vector<1x1x2xi32>
    %27 = vector.shape_cast %26 : vector<1x1x2xi32> to vector<1x2xi32>
    %28 = vector.shape_cast %25 : vector<1x2xi32> to vector<1x1x2xi32>
    tpu.vector_store %arg5[%c7, %c0_12, %c0_13], %28 {strides = array<i32>} : memref<8x1x2xi32, #tpu.memory_space<vmem>>, vector<1x1x2xi32>,
    %c0_i32_14 = arith.constant 0 : i32
    %c6_i32 = arith.constant 6 : i32
    %29 = arith.subi %c6_i32, %c0_i32_14 : i32
    %30 = arith.addi %1, %29 : i32
    %c1_i32_15 = arith.constant 1 : i32
    %31 = arith.addi %29, %c1_i32_15 : i32
    %32 = arith.index_cast %31 : i32 to index
    %c0_16 = arith.constant 0 : index
    %c0_17 = arith.constant 0 : index
    %33 = vector.load %arg2[%32, %c0_16, %c0_17] : memref<8x8x2xi8, #tpu.memory_space<vmem>>, vector<1x8x2xi8>
    %34 = vector.shape_cast %33 : vector<1x8x2xi8> to vector<8x2xi8>
    %35 = arith.extsi %34 : vector<8x2xi8> to vector<8x2xi32>
    %36 = vector.broadcast %25 : vector<1x2xi32> to vector<8x2xi32>
    %37 = arith.cmpi eq, %6, %36 : vector<8x2xi32>
    %c0_i32_18 = arith.constant 0 : i32
    %38 = vector.broadcast %c0_i32_18 : i32 to vector<8x2xi32>
    %39 = arith.select %37, %35, %38 : vector<8x2xi1>, vector<8x2xi32>
    %cst_19 = arith.constant dense<0> : vector<2xi32>
    %40 = vector.multi_reduction <add>, %39, %cst_19 [0] : vector<8x2xi32> to vector<2xi32>
    %41 = vector.shape_cast %40 : vector<2xi32> to vector<1x2xi32>
    %c7_i32_20 = arith.constant 7 : i32
    %42 = arith.cmpi sge, %30, %c7_i32_20 : i32
    %43 = vector.broadcast %30 : i32 to vector<1x2xi32>
    %44 = arith.cmpi eq, %43, %4 : vector<1x2xi32>
    %45 = vector.broadcast %42 : i1 to vector<1x2xi1>
    %46 = arith.ori %45, %44 : vector<1x2xi1>
    %47 = arith.select %46, %5, %41 : vector<1x2xi1>, vector<1x2xi32>
    %48 = arith.index_cast %29 : i32 to index
    %c0_21 = arith.constant 0 : index
    %c0_22 = arith.constant 0 : index
    %49 = vector.load %arg5[%48, %c0_21, %c0_22] : memref<8x1x2xi32, #tpu.memory_space<vmem>>, vector<1x1x2xi32>
    %50 = vector.shape_cast %49 : vector<1x1x2xi32> to vector<1x2xi32>
    %51 = vector.shape_cast %47 : vector<1x2xi32> to vector<1x1x2xi32>
    tpu.vector_store %arg5[%48, %c0_21, %c0_22], %51 {strides = array<i32>} : memref<8x1x2xi32, #tpu.memory_space<vmem>>, vector<1x1x2xi32>,
    %c1_i32_23 = arith.constant 1 : i32
    %c6_i32_24 = arith.constant 6 : i32
    %52 = arith.subi %c6_i32_24, %c1_i32_23 : i32
    %53 = arith.addi %1, %52 : i32
    %c1_i32_25 = arith.constant 1 : i32
    %54 = arith.addi %52, %c1_i32_25 : i32
    %55 = arith.index_cast %54 : i32 to index
    %c0_26 = arith.constant 0 : index
    %c0_27 = arith.constant 0 : index
    %56 = vector.load %arg2[%55, %c0_26, %c0_27] : memref<8x8x2xi8, #tpu.memory_space<vmem>>, vector<1x8x2xi8>
    %57 = vector.shape_cast %56 : vector<1x8x2xi8> to vector<8x2xi8>
    %58 = arith.extsi %57 : vector<8x2xi8> to vector<8x2xi32>
    %59 = vector.broadcast %47 : vector<1x2xi32> to vector<8x2xi32>
    %60 = arith.cmpi eq, %6, %59 : vector<8x2xi32>
    %c0_i32_28 = arith.constant 0 : i32
    %61 = vector.broadcast %c0_i32_28 : i32 to vector<8x2xi32>
    %62 = arith.select %60, %58, %61 : vector<8x2xi1>, vector<8x2xi32>
    %cst_29 = arith.constant dense<0> : vector<2xi32>
    %63 = vector.multi_reduction <add>, %62, %cst_29 [0] : vector<8x2xi32> to vector<2xi32>
    %64 = vector.shape_cast %63 : vector<2xi32> to vector<1x2xi32>
    %c7_i32_30 = arith.constant 7 : i32
    %65 = arith.cmpi sge, %53, %c7_i32_30 : i32
    %66 = vector.broadcast %53 : i32 to vector<1x2xi32>
    %67 = arith.cmpi eq, %66, %4 : vector<1x2xi32>
    %68 = vector.broadcast %65 : i1 to vector<1x2xi1>
    %69 = arith.ori %68, %67 : vector<1x2xi1>
    %70 = arith.select %69, %5, %64 : vector<1x2xi1>, vector<1x2xi32>
    %71 = arith.index_cast %52 : i32 to index
    %c0_31 = arith.constant 0 : index
    %c0_32 = arith.constant 0 : index
    %72 = vector.load %arg5[%71, %c0_31, %c0_32] : memref<8x1x2xi32, #tpu.memory_space<vmem>>, vector<1x1x2xi32>
    %73 = vector.shape_cast %72 : vector<1x1x2xi32> to vector<1x2xi32>
    %74 = vector.shape_cast %70 : vector<1x2xi32> to vector<1x1x2xi32>
    tpu.vector_store %arg5[%71, %c0_31, %c0_32], %74 {strides = array<i32>} : memref<8x1x2xi32, #tpu.memory_space<vmem>>, vector<1x1x2xi32>,
    %c2_i32 = arith.constant 2 : i32
    %c6_i32_33 = arith.constant 6 : i32
    %75 = arith.subi %c6_i32_33, %c2_i32 : i32
    %76 = arith.addi %1, %75 : i32
    %c1_i32_34 = arith.constant 1 : i32
    %77 = arith.addi %75, %c1_i32_34 : i32
    %78 = arith.index_cast %77 : i32 to index
    %c0_35 = arith.constant 0 : index
    %c0_36 = arith.constant 0 : index
    %79 = vector.load %arg2[%78, %c0_35, %c0_36] : memref<8x8x2xi8, #tpu.memory_space<vmem>>, vector<1x8x2xi8>
    %80 = vector.shape_cast %79 : vector<1x8x2xi8> to vector<8x2xi8>
    %81 = arith.extsi %80 : vector<8x2xi8> to vector<8x2xi32>
    %82 = vector.broadcast %70 : vector<1x2xi32> to vector<8x2xi32>
    %83 = arith.cmpi eq, %6, %82 : vector<8x2xi32>
    %c0_i32_37 = arith.constant 0 : i32
    %84 = vector.broadcast %c0_i32_37 : i32 to vector<8x2xi32>
    %85 = arith.select %83, %81, %84 : vector<8x2xi1>, vector<8x2xi32>
    %cst_38 = arith.constant dense<0> : vector<2xi32>
    %86 = vector.multi_reduction <add>, %85, %cst_38 [0] : vector<8x2xi32> to vector<2xi32>
    %87 = vector.shape_cast %86 : vector<2xi32> to vector<1x2xi32>
    %c7_i32_39 = arith.constant 7 : i32
    %88 = arith.cmpi sge, %76, %c7_i32_39 : i32
    %89 = vector.broadcast %76 : i32 to vector<1x2xi32>
    %90 = arith.cmpi eq, %89, %4 : vector<1x2xi32>
    %91 = vector.broadcast %88 : i1 to vector<1x2xi1>
    %92 = arith.ori %91, %90 : vector<1x2xi1>
    %93 = arith.select %92, %5, %87 : vector<1x2xi1>, vector<1x2xi32>
    %94 = arith.index_cast %75 : i32 to index
    %c0_40 = arith.constant 0 : index
    %c0_41 = arith.constant 0 : index
    %95 = vector.load %arg5[%94, %c0_40, %c0_41] : memref<8x1x2xi32, #tpu.memory_space<vmem>>, vector<1x1x2xi32>
    %96 = vector.shape_cast %95 : vector<1x1x2xi32> to vector<1x2xi32>
    %97 = vector.shape_cast %93 : vector<1x2xi32> to vector<1x1x2xi32>
    tpu.vector_store %arg5[%94, %c0_40, %c0_41], %97 {strides = array<i32>} : memref<8x1x2xi32, #tpu.memory_space<vmem>>, vector<1x1x2xi32>,
    %c3_i32 = arith.constant 3 : i32
    %c6_i32_42 = arith.constant 6 : i32
    %98 = arith.subi %c6_i32_42, %c3_i32 : i32
    %99 = arith.addi %1, %98 : i32
    %c1_i32_43 = arith.constant 1 : i32
    %100 = arith.addi %98, %c1_i32_43 : i32
    %101 = arith.index_cast %100 : i32 to index
    %c0_44 = arith.constant 0 : index
    %c0_45 = arith.constant 0 : index
    %102 = vector.load %arg2[%101, %c0_44, %c0_45] : memref<8x8x2xi8, #tpu.memory_space<vmem>>, vector<1x8x2xi8>
    %103 = vector.shape_cast %102 : vector<1x8x2xi8> to vector<8x2xi8>
    %104 = arith.extsi %103 : vector<8x2xi8> to vector<8x2xi32>
    %105 = vector.broadcast %93 : vector<1x2xi32> to vector<8x2xi32>
    %106 = arith.cmpi eq, %6, %105 : vector<8x2xi32>
    %c0_i32_46 = arith.constant 0 : i32
    %107 = vector.broadcast %c0_i32_46 : i32 to vector<8x2xi32>
    %108 = arith.select %106, %104, %107 : vector<8x2xi1>, vector<8x2xi32>
    %cst_47 = arith.constant dense<0> : vector<2xi32>
    %109 = vector.multi_reduction <add>, %108, %cst_47 [0] : vector<8x2xi32> to vector<2xi32>
    %110 = vector.shape_cast %109 : vector<2xi32> to vector<1x2xi32>
    %c7_i32_48 = arith.constant 7 : i32
    %111 = arith.cmpi sge, %99, %c7_i32_48 : i32
    %112 = vector.broadcast %99 : i32 to vector<1x2xi32>
    %113 = arith.cmpi eq, %112, %4 : vector<1x2xi32>
    %114 = vector.broadcast %111 : i1 to vector<1x2xi1>
    %115 = arith.ori %114, %113 : vector<1x2xi1>
    %116 = arith.select %115, %5, %110 : vector<1x2xi1>, vector<1x2xi32>
    %117 = arith.index_cast %98 : i32 to index
    %c0_49 = arith.constant 0 : index
    %c0_50 = arith.constant 0 : index
    %118 = vector.load %arg5[%117, %c0_49, %c0_50] : memref<8x1x2xi32, #tpu.memory_space<vmem>>, vector<1x1x2xi32>
    %119 = vector.shape_cast %118 : vector<1x1x2xi32> to vector<1x2xi32>
    %120 = vector.shape_cast %116 : vector<1x2xi32> to vector<1x1x2xi32>
    tpu.vector_store %arg5[%117, %c0_49, %c0_50], %120 {strides = array<i32>} : memref<8x1x2xi32, #tpu.memory_space<vmem>>, vector<1x1x2xi32>,
    %c4_i32 = arith.constant 4 : i32
    %c6_i32_51 = arith.constant 6 : i32
    %121 = arith.subi %c6_i32_51, %c4_i32 : i32
    %122 = arith.addi %1, %121 : i32
    %c1_i32_52 = arith.constant 1 : i32
    %123 = arith.addi %121, %c1_i32_52 : i32
    %124 = arith.index_cast %123 : i32 to index
    %c0_53 = arith.constant 0 : index
    %c0_54 = arith.constant 0 : index
    %125 = vector.load %arg2[%124, %c0_53, %c0_54] : memref<8x8x2xi8, #tpu.memory_space<vmem>>, vector<1x8x2xi8>
    %126 = vector.shape_cast %125 : vector<1x8x2xi8> to vector<8x2xi8>
    %127 = arith.extsi %126 : vector<8x2xi8> to vector<8x2xi32>
    %128 = vector.broadcast %116 : vector<1x2xi32> to vector<8x2xi32>
    %129 = arith.cmpi eq, %6, %128 : vector<8x2xi32>
    %c0_i32_55 = arith.constant 0 : i32
    %130 = vector.broadcast %c0_i32_55 : i32 to vector<8x2xi32>
    %131 = arith.select %129, %127, %130 : vector<8x2xi1>, vector<8x2xi32>
    %cst_56 = arith.constant dense<0> : vector<2xi32>
    %132 = vector.multi_reduction <add>, %131, %cst_56 [0] : vector<8x2xi32> to vector<2xi32>
    %133 = vector.shape_cast %132 : vector<2xi32> to vector<1x2xi32>
    %c7_i32_57 = arith.constant 7 : i32
    %134 = arith.cmpi sge, %122, %c7_i32_57 : i32
    %135 = vector.broadcast %122 : i32 to vector<1x2xi32>
    %136 = arith.cmpi eq, %135, %4 : vector<1x2xi32>
    %137 = vector.broadcast %134 : i1 to vector<1x2xi1>
    %138 = arith.ori %137, %136 : vector<1x2xi1>
    %139 = arith.select %138, %5, %133 : vector<1x2xi1>, vector<1x2xi32>
    %140 = arith.index_cast %121 : i32 to index
    %c0_58 = arith.constant 0 : index
    %c0_59 = arith.constant 0 : index
    %141 = vector.load %arg5[%140, %c0_58, %c0_59] : memref<8x1x2xi32, #tpu.memory_space<vmem>>, vector<1x1x2xi32>
    %142 = vector.shape_cast %141 : vector<1x1x2xi32> to vector<1x2xi32>
    %143 = vector.shape_cast %139 : vector<1x2xi32> to vector<1x1x2xi32>
    tpu.vector_store %arg5[%140, %c0_58, %c0_59], %143 {strides = array<i32>} : memref<8x1x2xi32, #tpu.memory_space<vmem>>, vector<1x1x2xi32>,
    %c5_i32 = arith.constant 5 : i32
    %c6_i32_60 = arith.constant 6 : i32
    %144 = arith.subi %c6_i32_60, %c5_i32 : i32
    %145 = arith.addi %1, %144 : i32
    %c1_i32_61 = arith.constant 1 : i32
    %146 = arith.addi %144, %c1_i32_61 : i32
    %147 = arith.index_cast %146 : i32 to index
    %c0_62 = arith.constant 0 : index
    %c0_63 = arith.constant 0 : index
    %148 = vector.load %arg2[%147, %c0_62, %c0_63] : memref<8x8x2xi8, #tpu.memory_space<vmem>>, vector<1x8x2xi8>
    %149 = vector.shape_cast %148 : vector<1x8x2xi8> to vector<8x2xi8>
    %150 = arith.extsi %149 : vector<8x2xi8> to vector<8x2xi32>
    %151 = vector.broadcast %139 : vector<1x2xi32> to vector<8x2xi32>
    %152 = arith.cmpi eq, %6, %151 : vector<8x2xi32>
    %c0_i32_64 = arith.constant 0 : i32
    %153 = vector.broadcast %c0_i32_64 : i32 to vector<8x2xi32>
    %154 = arith.select %152, %150, %153 : vector<8x2xi1>, vector<8x2xi32>
    %cst_65 = arith.constant dense<0> : vector<2xi32>
    %155 = vector.multi_reduction <add>, %154, %cst_65 [0] : vector<8x2xi32> to vector<2xi32>
    %156 = vector.shape_cast %155 : vector<2xi32> to vector<1x2xi32>
    %c7_i32_66 = arith.constant 7 : i32
    %157 = arith.cmpi sge, %145, %c7_i32_66 : i32
    %158 = vector.broadcast %145 : i32 to vector<1x2xi32>
    %159 = arith.cmpi eq, %158, %4 : vector<1x2xi32>
    %160 = vector.broadcast %157 : i1 to vector<1x2xi1>
    %161 = arith.ori %160, %159 : vector<1x2xi1>
    %162 = arith.select %161, %5, %156 : vector<1x2xi1>, vector<1x2xi32>
    %163 = arith.index_cast %144 : i32 to index
    %c0_67 = arith.constant 0 : index
    %c0_68 = arith.constant 0 : index
    %164 = vector.load %arg5[%163, %c0_67, %c0_68] : memref<8x1x2xi32, #tpu.memory_space<vmem>>, vector<1x1x2xi32>
    %165 = vector.shape_cast %164 : vector<1x1x2xi32> to vector<1x2xi32>
    %166 = vector.shape_cast %162 : vector<1x2xi32> to vector<1x1x2xi32>
    tpu.vector_store %arg5[%163, %c0_67, %c0_68], %166 {strides = array<i32>} : memref<8x1x2xi32, #tpu.memory_space<vmem>>, vector<1x1x2xi32>,
    %c6_i32_69 = arith.constant 6 : i32
    %c6_i32_70 = arith.constant 6 : i32
    %167 = arith.subi %c6_i32_70, %c6_i32_69 : i32
    %168 = arith.addi %1, %167 : i32
    %c1_i32_71 = arith.constant 1 : i32
    %169 = arith.addi %167, %c1_i32_71 : i32
    %170 = arith.index_cast %169 : i32 to index
    %c0_72 = arith.constant 0 : index
    %c0_73 = arith.constant 0 : index
    %171 = vector.load %arg2[%170, %c0_72, %c0_73] : memref<8x8x2xi8, #tpu.memory_space<vmem>>, vector<1x8x2xi8>
    %172 = vector.shape_cast %171 : vector<1x8x2xi8> to vector<8x2xi8>
    %173 = arith.extsi %172 : vector<8x2xi8> to vector<8x2xi32>
    %174 = vector.broadcast %162 : vector<1x2xi32> to vector<8x2xi32>
    %175 = arith.cmpi eq, %6, %174 : vector<8x2xi32>
    %c0_i32_74 = arith.constant 0 : i32
    %176 = vector.broadcast %c0_i32_74 : i32 to vector<8x2xi32>
    %177 = arith.select %175, %173, %176 : vector<8x2xi1>, vector<8x2xi32>
    %cst_75 = arith.constant dense<0> : vector<2xi32>
    %178 = vector.multi_reduction <add>, %177, %cst_75 [0] : vector<8x2xi32> to vector<2xi32>
    %179 = vector.shape_cast %178 : vector<2xi32> to vector<1x2xi32>
    %c7_i32_76 = arith.constant 7 : i32
    %180 = arith.cmpi sge, %168, %c7_i32_76 : i32
    %181 = vector.broadcast %168 : i32 to vector<1x2xi32>
    %182 = arith.cmpi eq, %181, %4 : vector<1x2xi32>
    %183 = vector.broadcast %180 : i1 to vector<1x2xi1>
    %184 = arith.ori %183, %182 : vector<1x2xi1>
    %185 = arith.select %184, %5, %179 : vector<1x2xi1>, vector<1x2xi32>
    %186 = arith.index_cast %167 : i32 to index
    %c0_77 = arith.constant 0 : index
    %c0_78 = arith.constant 0 : index
    %187 = vector.load %arg5[%186, %c0_77, %c0_78] : memref<8x1x2xi32, #tpu.memory_space<vmem>>, vector<1x1x2xi32>
    %188 = vector.shape_cast %187 : vector<1x1x2xi32> to vector<1x2xi32>
    %189 = vector.shape_cast %185 : vector<1x2xi32> to vector<1x1x2xi32>
    tpu.vector_store %arg5[%186, %c0_77, %c0_78], %189 {strides = array<i32>} : memref<8x1x2xi32, #tpu.memory_space<vmem>>, vector<1x1x2xi32>,
    %c7_i32_79 = arith.constant 7 : i32
    %c0_80 = arith.constant 0 : index
    %c0_81 = arith.constant 0 : index
    %190 = vector.load %arg6[%c0_80, %c0_81] : memref<1x2xi32, #tpu.memory_space<vmem>>, vector<1x2xi32>
    tpu.vector_store %arg6[%c0_80, %c0_81], %185 {strides = array<i32>} : memref<1x2xi32, #tpu.memory_space<vmem>>, vector<1x2xi32>,
    %c0_82 = arith.constant 0 : index
    %c0_83 = arith.constant 0 : index
    %c0_84 = arith.constant 0 : index
    %191 = vector.load %arg2[%c0_82, %c0_83, %c0_84] : memref<8x8x2xi8, #tpu.memory_space<vmem>>, vector<1x8x2xi8>
    %192 = vector.shape_cast %191 : vector<1x8x2xi8> to vector<8x2xi8>
    %193 = arith.extsi %192 : vector<8x2xi8> to vector<8x2xi32>
    %c0_85 = arith.constant 0 : index
    %c0_86 = arith.constant 0 : index
    %194 = vector.load %arg7[%c0_85, %c0_86] : memref<8x2xi32, #tpu.memory_space<vmem>>, vector<8x2xi32>
    tpu.vector_store %arg7[%c0_85, %c0_86], %193 {strides = array<i32>} : memref<8x2xi32, #tpu.memory_space<vmem>>, vector<8x2xi32>,
    return
  }
  func.func @transform_0(%arg0: i32, %arg1: i32) -> (i32, i32, i32) {
    %c0_i32 = arith.constant 0 : i32
    %0 = arith.subi %c0_i32, %arg1 : i32
    %c0_i32_0 = arith.constant 0 : i32
    %c0_i32_1 = arith.constant 0 : i32
    return %0, %c0_i32_0, %arg0 : i32, i32, i32
  }
  func.func @transform_1(%arg0: i32, %arg1: i32) -> (i32, i32) {
    %c0_i32 = arith.constant 0 : i32
    %c0_i32_0 = arith.constant 0 : i32
    return %c0_i32, %arg0 : i32, i32
  }
  func.func @transform_2(%arg0: i32, %arg1: i32) -> (i32, i32) {
    %c0_i32 = arith.constant 0 : i32
    %c0_i32_0 = arith.constant 0 : i32
    return %c0_i32, %arg0 : i32, i32
  }
  func.func @transform_3(%arg0: i32, %arg1: i32) -> (i32, i32, i32) {
    %c0_i32 = arith.constant 0 : i32
    %0 = arith.subi %c0_i32, %arg1 : i32
    %c0_i32_0 = arith.constant 0 : i32
    %c0_i32_1 = arith.constant 0 : i32
    return %0, %c0_i32_0, %arg0 : i32, i32, i32
  }
}

module attributes {stable_mosaic.version = 11 : i64} {
  func.func @_viterbi_fwd_kernel(%arg0: i32, %arg1: i32, %arg2: memref<8x8x2xf32, #tpu.memory_space<vmem>>, %arg3: memref<1x2xi32, #tpu.memory_space<vmem>>, %arg4: memref<8x8x1xf32, #tpu.memory_space<vmem>>, %arg5: memref<8x1xf32, #tpu.memory_space<vmem>>, %arg6: memref<8x8x2xi8, #tpu.memory_space<vmem>>, %arg7: memref<1x2xi32, #tpu.memory_space<vmem>>, %arg8: memref<8x2xf32, #tpu.memory_space<vmem>>, %arg9: memref<8x2xf32, #tpu.memory_space<vmem>>) attributes {dimension_semantics = [#tpu.dimension_semantics<parallel>, #tpu.dimension_semantics<arbitrary>], iteration_bounds = array<i64: 1, 1>, scalar_prefetch = 0 : i64, scratch_operands = 2 : i64, tpu.core_type = #tpu.core_type<tc>, window_params = [{transform_indices = @transform_0, window_bounds = array<i64: 8, 8, 2>}, {transform_indices = @transform_1, window_bounds = array<i64: 1, 2>}, {pipeline_mode = #tpu.pipeline_mode<synchronous>, transform_indices = @transform_2, window_bounds = array<i64: 8, 8, 1>}, {pipeline_mode = #tpu.pipeline_mode<synchronous>, transform_indices = @transform_3, window_bounds = array<i64: 8, 1>}, {transform_indices = @transform_4, window_bounds = array<i64: 8, 8, 2>}, {transform_indices = @transform_5, window_bounds = array<i64: 1, 2>}]} {
    %c0 = arith.constant 0 : index
    %c0_0 = arith.constant 0 : index
    %0 = vector.load %arg3[%c0, %c0_0] : memref<1x2xi32, #tpu.memory_space<vmem>>, vector<1x2xi32>
    %c1_i32 = arith.constant 1 : i32
    %1 = vector.broadcast %c1_i32 : i32 to vector<1x2xi32>
    %2 = arith.subi %0, %1 : vector<1x2xi32>
    %c0_1 = arith.constant 0 : index
    %c0_2 = arith.constant 0 : index
    %c0_3 = arith.constant 0 : index
    %3 = vector.load %arg4[%c0_1, %c0_2, %c0_3] : memref<8x8x1xf32, #tpu.memory_space<vmem>>, vector<8x8x1xf32>
    %4 = vector.shape_cast %3 : vector<8x8x1xf32> to vector<8x8x1xf32>
    %5 = vector.broadcast %4 : vector<8x8x1xf32> to vector<8x8x2xf32>
    %6 = tpu.iota {dimensions = array<i32: 1>} : vector<8x8x2xi32>
    %c0_i32 = arith.constant 0 : i32
    %7 = arith.cmpi eq, %arg1, %c0_i32 : i32
    %8 = arith.extui %7 : i1 to i32
    %c0_i32_4 = arith.constant 0 : i32
    %9 = arith.cmpi ne, %8, %c0_i32_4 : i32
    scf.if %9 {
      %333 = tpu.iota {dimensions = array<i32: 0>} : vector<8x2xi32>
      %c6_i32_152 = arith.constant 6 : i32
      %334 = vector.broadcast %c6_i32_152 : i32 to vector<8x2xi32>
      %335 = arith.cmpi eq, %333, %334 : vector<8x2xi32>
      %cst_153 = arith.constant 0.000000e+00 : f32
      %cst_154 = arith.constant -1.000000e+30 : f32
      %336 = vector.broadcast %cst_153 : f32 to vector<8x2xf32>
      %337 = vector.broadcast %cst_154 : f32 to vector<8x2xf32>
      %338 = arith.select %335, %336, %337 : vector<8x2xi1>, vector<8x2xf32>
      %c0_155 = arith.constant 0 : index
      %c0_156 = arith.constant 0 : index
      %339 = vector.load %arg8[%c0_155, %c0_156] : memref<8x2xf32, #tpu.memory_space<vmem>>, vector<8x2xf32>
      tpu.vector_store %arg8[%c0_155, %c0_156], %338 {strides = array<i32>} : memref<8x2xf32, #tpu.memory_space<vmem>>, vector<8x2xf32>,
      %cst_157 = arith.constant 0.000000e+00 : f32
      %340 = vector.broadcast %cst_157 : f32 to vector<8x2xf32>
      %c0_158 = arith.constant 0 : index
      %c0_159 = arith.constant 0 : index
      %341 = vector.load %arg9[%c0_158, %c0_159] : memref<8x2xf32, #tpu.memory_space<vmem>>, vector<8x2xf32>
      tpu.vector_store %arg9[%c0_158, %c0_159], %340 {strides = array<i32>} : memref<8x2xf32, #tpu.memory_space<vmem>>, vector<8x2xf32>,
    } else {
    }
    %c0_i32_5 = arith.constant 0 : i32
    %c8_i32 = arith.constant 8 : i32
    %10 = arith.muli %arg1, %c8_i32 : i32
    %11 = arith.addi %10, %c0_i32_5 : i32
    %12 = arith.index_cast %c0_i32_5 : i32 to index
    %c0_6 = arith.constant 0 : index
    %c0_7 = arith.constant 0 : index
    %13 = vector.load %arg2[%12, %c0_6, %c0_7] : memref<8x8x2xf32, #tpu.memory_space<vmem>>, vector<1x8x2xf32>
    %14 = vector.shape_cast %13 : vector<1x8x2xf32> to vector<8x2xf32>
    %c0_8 = arith.constant 0 : index
    %c0_9 = arith.constant 0 : index
    %15 = vector.load %arg8[%c0_8, %c0_9] : memref<8x2xf32, #tpu.memory_space<vmem>>, vector<8x2xf32>
    %16 = vector.shape_cast %15 : vector<8x2xf32> to vector<1x8x2xf32>
    %17 = vector.broadcast %16 : vector<1x8x2xf32> to vector<8x8x2xf32>
    %18 = arith.addf %5, %17 : vector<8x8x2xf32>
    %cst = arith.constant dense<0xFF800000> : vector<8x2xf32>
    %19 = vector.multi_reduction <maximumf>, %18, %cst [1] : vector<8x8x2xf32> to vector<8x2xf32>
    %20 = vector.shape_cast %19 : vector<8x2xf32> to vector<8x1x2xf32>
    %21 = vector.broadcast %20 : vector<8x1x2xf32> to vector<8x8x2xf32>
    %22 = arith.cmpf oeq, %18, %21 : vector<8x8x2xf32>
    %c8_i32_10 = arith.constant 8 : i32
    %23 = vector.broadcast %c8_i32_10 : i32 to vector<8x8x2xi32>
    %24 = arith.select %22, %6, %23 : vector<8x8x2xi1>, vector<8x8x2xi32>
    %cst_11 = arith.constant dense<2147483647> : vector<8x2xi32>
    %25 = vector.multi_reduction <minsi>, %24, %cst_11 [1] : vector<8x8x2xi32> to vector<8x2xi32>
    %26 = vector.shape_cast %20 : vector<8x1x2xf32> to vector<8x2xf32>
    %27 = arith.addf %14, %26 : vector<8x2xf32>
    %c0_i32_12 = arith.constant 0 : i32
    %28 = arith.cmpi sgt, %11, %c0_i32_12 : i32
    %29 = vector.broadcast %11 : i32 to vector<1x2xi32>
    %30 = arith.cmpi slt, %29, %0 : vector<1x2xi32>
    %31 = vector.broadcast %28 : i1 to vector<1x2xi1>
    %32 = arith.andi %31, %30 : vector<1x2xi1>
    %c0_i32_13 = arith.constant 0 : i32
    %33 = vector.shape_cast %32 : vector<1x2xi1> to vector<1x2xi1>
    %34 = vector.broadcast %33 : vector<1x2xi1> to vector<8x2xi1>
    %35 = vector.broadcast %c0_i32_13 : i32 to vector<8x2xi32>
    %36 = arith.select %34, %25, %35 : vector<8x2xi1>, vector<8x2xi32>
    %37 = arith.trunci %36 : vector<8x2xi32> to vector<8x2xi8>
    %38 = arith.index_cast %c0_i32_5 : i32 to index
    %c0_14 = arith.constant 0 : index
    %c0_15 = arith.constant 0 : index
    %39 = vector.load %arg6[%38, %c0_14, %c0_15] : memref<8x8x2xi8, #tpu.memory_space<vmem>>, vector<1x8x2xi8>
    %40 = vector.shape_cast %39 : vector<1x8x2xi8> to vector<8x2xi8>
    %41 = vector.shape_cast %37 : vector<8x2xi8> to vector<1x8x2xi8>
    tpu.vector_store %arg6[%38, %c0_14, %c0_15], %41 {strides = array<i32>} : memref<8x8x2xi8, #tpu.memory_space<vmem>>, vector<1x8x2xi8>,
    %c0_16 = arith.constant 0 : index
    %c0_17 = arith.constant 0 : index
    %42 = vector.load %arg8[%c0_16, %c0_17] : memref<8x2xf32, #tpu.memory_space<vmem>>, vector<8x2xf32>
    tpu.vector_store %arg8[%c0_16, %c0_17], %27 {strides = array<i32>} : memref<8x2xf32, #tpu.memory_space<vmem>>, vector<8x2xf32>,
    %43 = vector.broadcast %11 : i32 to vector<1x2xi32>
    %44 = arith.cmpi eq, %43, %2 : vector<1x2xi32>
    %c0_18 = arith.constant 0 : index
    %c0_19 = arith.constant 0 : index
    %45 = vector.load %arg9[%c0_18, %c0_19] : memref<8x2xf32, #tpu.memory_space<vmem>>, vector<8x2xf32>
    %46 = vector.shape_cast %44 : vector<1x2xi1> to vector<1x2xi1>
    %47 = vector.broadcast %46 : vector<1x2xi1> to vector<8x2xi1>
    %48 = arith.select %47, %27, %45 : vector<8x2xi1>, vector<8x2xf32>
    %c0_20 = arith.constant 0 : index
    %c0_21 = arith.constant 0 : index
    %49 = vector.load %arg9[%c0_20, %c0_21] : memref<8x2xf32, #tpu.memory_space<vmem>>, vector<8x2xf32>
    tpu.vector_store %arg9[%c0_20, %c0_21], %48 {strides = array<i32>} : memref<8x2xf32, #tpu.memory_space<vmem>>, vector<8x2xf32>,
    %c1_i32_22 = arith.constant 1 : i32
    %c8_i32_23 = arith.constant 8 : i32
    %50 = arith.muli %arg1, %c8_i32_23 : i32
    %51 = arith.addi %50, %c1_i32_22 : i32
    %52 = arith.index_cast %c1_i32_22 : i32 to index
    %c0_24 = arith.constant 0 : index
    %c0_25 = arith.constant 0 : index
    %53 = vector.load %arg2[%52, %c0_24, %c0_25] : memref<8x8x2xf32, #tpu.memory_space<vmem>>, vector<1x8x2xf32>
    %54 = vector.shape_cast %53 : vector<1x8x2xf32> to vector<8x2xf32>
    %c0_26 = arith.constant 0 : index
    %c0_27 = arith.constant 0 : index
    %55 = vector.load %arg8[%c0_26, %c0_27] : memref<8x2xf32, #tpu.memory_space<vmem>>, vector<8x2xf32>
    %56 = vector.shape_cast %55 : vector<8x2xf32> to vector<1x8x2xf32>
    %57 = vector.broadcast %56 : vector<1x8x2xf32> to vector<8x8x2xf32>
    %58 = arith.addf %5, %57 : vector<8x8x2xf32>
    %cst_28 = arith.constant dense<0xFF800000> : vector<8x2xf32>
    %59 = vector.multi_reduction <maximumf>, %58, %cst_28 [1] : vector<8x8x2xf32> to vector<8x2xf32>
    %60 = vector.shape_cast %59 : vector<8x2xf32> to vector<8x1x2xf32>
    %61 = vector.broadcast %60 : vector<8x1x2xf32> to vector<8x8x2xf32>
    %62 = arith.cmpf oeq, %58, %61 : vector<8x8x2xf32>
    %c8_i32_29 = arith.constant 8 : i32
    %63 = vector.broadcast %c8_i32_29 : i32 to vector<8x8x2xi32>
    %64 = arith.select %62, %6, %63 : vector<8x8x2xi1>, vector<8x8x2xi32>
    %cst_30 = arith.constant dense<2147483647> : vector<8x2xi32>
    %65 = vector.multi_reduction <minsi>, %64, %cst_30 [1] : vector<8x8x2xi32> to vector<8x2xi32>
    %66 = vector.shape_cast %60 : vector<8x1x2xf32> to vector<8x2xf32>
    %67 = arith.addf %54, %66 : vector<8x2xf32>
    %c0_i32_31 = arith.constant 0 : i32
    %68 = arith.cmpi sgt, %51, %c0_i32_31 : i32
    %69 = vector.broadcast %51 : i32 to vector<1x2xi32>
    %70 = arith.cmpi slt, %69, %0 : vector<1x2xi32>
    %71 = vector.broadcast %68 : i1 to vector<1x2xi1>
    %72 = arith.andi %71, %70 : vector<1x2xi1>
    %c0_i32_32 = arith.constant 0 : i32
    %73 = vector.shape_cast %72 : vector<1x2xi1> to vector<1x2xi1>
    %74 = vector.broadcast %73 : vector<1x2xi1> to vector<8x2xi1>
    %75 = vector.broadcast %c0_i32_32 : i32 to vector<8x2xi32>
    %76 = arith.select %74, %65, %75 : vector<8x2xi1>, vector<8x2xi32>
    %77 = arith.trunci %76 : vector<8x2xi32> to vector<8x2xi8>
    %78 = arith.index_cast %c1_i32_22 : i32 to index
    %c0_33 = arith.constant 0 : index
    %c0_34 = arith.constant 0 : index
    %79 = vector.load %arg6[%78, %c0_33, %c0_34] : memref<8x8x2xi8, #tpu.memory_space<vmem>>, vector<1x8x2xi8>
    %80 = vector.shape_cast %79 : vector<1x8x2xi8> to vector<8x2xi8>
    %81 = vector.shape_cast %77 : vector<8x2xi8> to vector<1x8x2xi8>
    tpu.vector_store %arg6[%78, %c0_33, %c0_34], %81 {strides = array<i32>} : memref<8x8x2xi8, #tpu.memory_space<vmem>>, vector<1x8x2xi8>,
    %c0_35 = arith.constant 0 : index
    %c0_36 = arith.constant 0 : index
    %82 = vector.load %arg8[%c0_35, %c0_36] : memref<8x2xf32, #tpu.memory_space<vmem>>, vector<8x2xf32>
    tpu.vector_store %arg8[%c0_35, %c0_36], %67 {strides = array<i32>} : memref<8x2xf32, #tpu.memory_space<vmem>>, vector<8x2xf32>,
    %83 = vector.broadcast %51 : i32 to vector<1x2xi32>
    %84 = arith.cmpi eq, %83, %2 : vector<1x2xi32>
    %c0_37 = arith.constant 0 : index
    %c0_38 = arith.constant 0 : index
    %85 = vector.load %arg9[%c0_37, %c0_38] : memref<8x2xf32, #tpu.memory_space<vmem>>, vector<8x2xf32>
    %86 = vector.shape_cast %84 : vector<1x2xi1> to vector<1x2xi1>
    %87 = vector.broadcast %86 : vector<1x2xi1> to vector<8x2xi1>
    %88 = arith.select %87, %67, %85 : vector<8x2xi1>, vector<8x2xf32>
    %c0_39 = arith.constant 0 : index
    %c0_40 = arith.constant 0 : index
    %89 = vector.load %arg9[%c0_39, %c0_40] : memref<8x2xf32, #tpu.memory_space<vmem>>, vector<8x2xf32>
    tpu.vector_store %arg9[%c0_39, %c0_40], %88 {strides = array<i32>} : memref<8x2xf32, #tpu.memory_space<vmem>>, vector<8x2xf32>,
    %c2_i32 = arith.constant 2 : i32
    %c8_i32_41 = arith.constant 8 : i32
    %90 = arith.muli %arg1, %c8_i32_41 : i32
    %91 = arith.addi %90, %c2_i32 : i32
    %92 = arith.index_cast %c2_i32 : i32 to index
    %c0_42 = arith.constant 0 : index
    %c0_43 = arith.constant 0 : index
    %93 = vector.load %arg2[%92, %c0_42, %c0_43] : memref<8x8x2xf32, #tpu.memory_space<vmem>>, vector<1x8x2xf32>
    %94 = vector.shape_cast %93 : vector<1x8x2xf32> to vector<8x2xf32>
    %c0_44 = arith.constant 0 : index
    %c0_45 = arith.constant 0 : index
    %95 = vector.load %arg8[%c0_44, %c0_45] : memref<8x2xf32, #tpu.memory_space<vmem>>, vector<8x2xf32>
    %96 = vector.shape_cast %95 : vector<8x2xf32> to vector<1x8x2xf32>
    %97 = vector.broadcast %96 : vector<1x8x2xf32> to vector<8x8x2xf32>
    %98 = arith.addf %5, %97 : vector<8x8x2xf32>
    %cst_46 = arith.constant dense<0xFF800000> : vector<8x2xf32>
    %99 = vector.multi_reduction <maximumf>, %98, %cst_46 [1] : vector<8x8x2xf32> to vector<8x2xf32>
    %100 = vector.shape_cast %99 : vector<8x2xf32> to vector<8x1x2xf32>
    %101 = vector.broadcast %100 : vector<8x1x2xf32> to vector<8x8x2xf32>
    %102 = arith.cmpf oeq, %98, %101 : vector<8x8x2xf32>
    %c8_i32_47 = arith.constant 8 : i32
    %103 = vector.broadcast %c8_i32_47 : i32 to vector<8x8x2xi32>
    %104 = arith.select %102, %6, %103 : vector<8x8x2xi1>, vector<8x8x2xi32>
    %cst_48 = arith.constant dense<2147483647> : vector<8x2xi32>
    %105 = vector.multi_reduction <minsi>, %104, %cst_48 [1] : vector<8x8x2xi32> to vector<8x2xi32>
    %106 = vector.shape_cast %100 : vector<8x1x2xf32> to vector<8x2xf32>
    %107 = arith.addf %94, %106 : vector<8x2xf32>
    %c0_i32_49 = arith.constant 0 : i32
    %108 = arith.cmpi sgt, %91, %c0_i32_49 : i32
    %109 = vector.broadcast %91 : i32 to vector<1x2xi32>
    %110 = arith.cmpi slt, %109, %0 : vector<1x2xi32>
    %111 = vector.broadcast %108 : i1 to vector<1x2xi1>
    %112 = arith.andi %111, %110 : vector<1x2xi1>
    %c0_i32_50 = arith.constant 0 : i32
    %113 = vector.shape_cast %112 : vector<1x2xi1> to vector<1x2xi1>
    %114 = vector.broadcast %113 : vector<1x2xi1> to vector<8x2xi1>
    %115 = vector.broadcast %c0_i32_50 : i32 to vector<8x2xi32>
    %116 = arith.select %114, %105, %115 : vector<8x2xi1>, vector<8x2xi32>
    %117 = arith.trunci %116 : vector<8x2xi32> to vector<8x2xi8>
    %118 = arith.index_cast %c2_i32 : i32 to index
    %c0_51 = arith.constant 0 : index
    %c0_52 = arith.constant 0 : index
    %119 = vector.load %arg6[%118, %c0_51, %c0_52] : memref<8x8x2xi8, #tpu.memory_space<vmem>>, vector<1x8x2xi8>
    %120 = vector.shape_cast %119 : vector<1x8x2xi8> to vector<8x2xi8>
    %121 = vector.shape_cast %117 : vector<8x2xi8> to vector<1x8x2xi8>
    tpu.vector_store %arg6[%118, %c0_51, %c0_52], %121 {strides = array<i32>} : memref<8x8x2xi8, #tpu.memory_space<vmem>>, vector<1x8x2xi8>,
    %c0_53 = arith.constant 0 : index
    %c0_54 = arith.constant 0 : index
    %122 = vector.load %arg8[%c0_53, %c0_54] : memref<8x2xf32, #tpu.memory_space<vmem>>, vector<8x2xf32>
    tpu.vector_store %arg8[%c0_53, %c0_54], %107 {strides = array<i32>} : memref<8x2xf32, #tpu.memory_space<vmem>>, vector<8x2xf32>,
    %123 = vector.broadcast %91 : i32 to vector<1x2xi32>
    %124 = arith.cmpi eq, %123, %2 : vector<1x2xi32>
    %c0_55 = arith.constant 0 : index
    %c0_56 = arith.constant 0 : index
    %125 = vector.load %arg9[%c0_55, %c0_56] : memref<8x2xf32, #tpu.memory_space<vmem>>, vector<8x2xf32>
    %126 = vector.shape_cast %124 : vector<1x2xi1> to vector<1x2xi1>
    %127 = vector.broadcast %126 : vector<1x2xi1> to vector<8x2xi1>
    %128 = arith.select %127, %107, %125 : vector<8x2xi1>, vector<8x2xf32>
    %c0_57 = arith.constant 0 : index
    %c0_58 = arith.constant 0 : index
    %129 = vector.load %arg9[%c0_57, %c0_58] : memref<8x2xf32, #tpu.memory_space<vmem>>, vector<8x2xf32>
    tpu.vector_store %arg9[%c0_57, %c0_58], %128 {strides = array<i32>} : memref<8x2xf32, #tpu.memory_space<vmem>>, vector<8x2xf32>,
    %c3_i32 = arith.constant 3 : i32
    %c8_i32_59 = arith.constant 8 : i32
    %130 = arith.muli %arg1, %c8_i32_59 : i32
    %131 = arith.addi %130, %c3_i32 : i32
    %132 = arith.index_cast %c3_i32 : i32 to index
    %c0_60 = arith.constant 0 : index
    %c0_61 = arith.constant 0 : index
    %133 = vector.load %arg2[%132, %c0_60, %c0_61] : memref<8x8x2xf32, #tpu.memory_space<vmem>>, vector<1x8x2xf32>
    %134 = vector.shape_cast %133 : vector<1x8x2xf32> to vector<8x2xf32>
    %c0_62 = arith.constant 0 : index
    %c0_63 = arith.constant 0 : index
    %135 = vector.load %arg8[%c0_62, %c0_63] : memref<8x2xf32, #tpu.memory_space<vmem>>, vector<8x2xf32>
    %136 = vector.shape_cast %135 : vector<8x2xf32> to vector<1x8x2xf32>
    %137 = vector.broadcast %136 : vector<1x8x2xf32> to vector<8x8x2xf32>
    %138 = arith.addf %5, %137 : vector<8x8x2xf32>
    %cst_64 = arith.constant dense<0xFF800000> : vector<8x2xf32>
    %139 = vector.multi_reduction <maximumf>, %138, %cst_64 [1] : vector<8x8x2xf32> to vector<8x2xf32>
    %140 = vector.shape_cast %139 : vector<8x2xf32> to vector<8x1x2xf32>
    %141 = vector.broadcast %140 : vector<8x1x2xf32> to vector<8x8x2xf32>
    %142 = arith.cmpf oeq, %138, %141 : vector<8x8x2xf32>
    %c8_i32_65 = arith.constant 8 : i32
    %143 = vector.broadcast %c8_i32_65 : i32 to vector<8x8x2xi32>
    %144 = arith.select %142, %6, %143 : vector<8x8x2xi1>, vector<8x8x2xi32>
    %cst_66 = arith.constant dense<2147483647> : vector<8x2xi32>
    %145 = vector.multi_reduction <minsi>, %144, %cst_66 [1] : vector<8x8x2xi32> to vector<8x2xi32>
    %146 = vector.shape_cast %140 : vector<8x1x2xf32> to vector<8x2xf32>
    %147 = arith.addf %134, %146 : vector<8x2xf32>
    %c0_i32_67 = arith.constant 0 : i32
    %148 = arith.cmpi sgt, %131, %c0_i32_67 : i32
    %149 = vector.broadcast %131 : i32 to vector<1x2xi32>
    %150 = arith.cmpi slt, %149, %0 : vector<1x2xi32>
    %151 = vector.broadcast %148 : i1 to vector<1x2xi1>
    %152 = arith.andi %151, %150 : vector<1x2xi1>
    %c0_i32_68 = arith.constant 0 : i32
    %153 = vector.shape_cast %152 : vector<1x2xi1> to vector<1x2xi1>
    %154 = vector.broadcast %153 : vector<1x2xi1> to vector<8x2xi1>
    %155 = vector.broadcast %c0_i32_68 : i32 to vector<8x2xi32>
    %156 = arith.select %154, %145, %155 : vector<8x2xi1>, vector<8x2xi32>
    %157 = arith.trunci %156 : vector<8x2xi32> to vector<8x2xi8>
    %158 = arith.index_cast %c3_i32 : i32 to index
    %c0_69 = arith.constant 0 : index
    %c0_70 = arith.constant 0 : index
    %159 = vector.load %arg6[%158, %c0_69, %c0_70] : memref<8x8x2xi8, #tpu.memory_space<vmem>>, vector<1x8x2xi8>
    %160 = vector.shape_cast %159 : vector<1x8x2xi8> to vector<8x2xi8>
    %161 = vector.shape_cast %157 : vector<8x2xi8> to vector<1x8x2xi8>
    tpu.vector_store %arg6[%158, %c0_69, %c0_70], %161 {strides = array<i32>} : memref<8x8x2xi8, #tpu.memory_space<vmem>>, vector<1x8x2xi8>,
    %c0_71 = arith.constant 0 : index
    %c0_72 = arith.constant 0 : index
    %162 = vector.load %arg8[%c0_71, %c0_72] : memref<8x2xf32, #tpu.memory_space<vmem>>, vector<8x2xf32>
    tpu.vector_store %arg8[%c0_71, %c0_72], %147 {strides = array<i32>} : memref<8x2xf32, #tpu.memory_space<vmem>>, vector<8x2xf32>,
    %163 = vector.broadcast %131 : i32 to vector<1x2xi32>
    %164 = arith.cmpi eq, %163, %2 : vector<1x2xi32>
    %c0_73 = arith.constant 0 : index
    %c0_74 = arith.constant 0 : index
    %165 = vector.load %arg9[%c0_73, %c0_74] : memref<8x2xf32, #tpu.memory_space<vmem>>, vector<8x2xf32>
    %166 = vector.shape_cast %164 : vector<1x2xi1> to vector<1x2xi1>
    %167 = vector.broadcast %166 : vector<1x2xi1> to vector<8x2xi1>
    %168 = arith.select %167, %147, %165 : vector<8x2xi1>, vector<8x2xf32>
    %c0_75 = arith.constant 0 : index
    %c0_76 = arith.constant 0 : index
    %169 = vector.load %arg9[%c0_75, %c0_76] : memref<8x2xf32, #tpu.memory_space<vmem>>, vector<8x2xf32>
    tpu.vector_store %arg9[%c0_75, %c0_76], %168 {strides = array<i32>} : memref<8x2xf32, #tpu.memory_space<vmem>>, vector<8x2xf32>,
    %c4_i32 = arith.constant 4 : i32
    %c8_i32_77 = arith.constant 8 : i32
    %170 = arith.muli %arg1, %c8_i32_77 : i32
    %171 = arith.addi %170, %c4_i32 : i32
    %172 = arith.index_cast %c4_i32 : i32 to index
    %c0_78 = arith.constant 0 : index
    %c0_79 = arith.constant 0 : index
    %173 = vector.load %arg2[%172, %c0_78, %c0_79] : memref<8x8x2xf32, #tpu.memory_space<vmem>>, vector<1x8x2xf32>
    %174 = vector.shape_cast %173 : vector<1x8x2xf32> to vector<8x2xf32>
    %c0_80 = arith.constant 0 : index
    %c0_81 = arith.constant 0 : index
    %175 = vector.load %arg8[%c0_80, %c0_81] : memref<8x2xf32, #tpu.memory_space<vmem>>, vector<8x2xf32>
    %176 = vector.shape_cast %175 : vector<8x2xf32> to vector<1x8x2xf32>
    %177 = vector.broadcast %176 : vector<1x8x2xf32> to vector<8x8x2xf32>
    %178 = arith.addf %5, %177 : vector<8x8x2xf32>
    %cst_82 = arith.constant dense<0xFF800000> : vector<8x2xf32>
    %179 = vector.multi_reduction <maximumf>, %178, %cst_82 [1] : vector<8x8x2xf32> to vector<8x2xf32>
    %180 = vector.shape_cast %179 : vector<8x2xf32> to vector<8x1x2xf32>
    %181 = vector.broadcast %180 : vector<8x1x2xf32> to vector<8x8x2xf32>
    %182 = arith.cmpf oeq, %178, %181 : vector<8x8x2xf32>
    %c8_i32_83 = arith.constant 8 : i32
    %183 = vector.broadcast %c8_i32_83 : i32 to vector<8x8x2xi32>
    %184 = arith.select %182, %6, %183 : vector<8x8x2xi1>, vector<8x8x2xi32>
    %cst_84 = arith.constant dense<2147483647> : vector<8x2xi32>
    %185 = vector.multi_reduction <minsi>, %184, %cst_84 [1] : vector<8x8x2xi32> to vector<8x2xi32>
    %186 = vector.shape_cast %180 : vector<8x1x2xf32> to vector<8x2xf32>
    %187 = arith.addf %174, %186 : vector<8x2xf32>
    %c0_i32_85 = arith.constant 0 : i32
    %188 = arith.cmpi sgt, %171, %c0_i32_85 : i32
    %189 = vector.broadcast %171 : i32 to vector<1x2xi32>
    %190 = arith.cmpi slt, %189, %0 : vector<1x2xi32>
    %191 = vector.broadcast %188 : i1 to vector<1x2xi1>
    %192 = arith.andi %191, %190 : vector<1x2xi1>
    %c0_i32_86 = arith.constant 0 : i32
    %193 = vector.shape_cast %192 : vector<1x2xi1> to vector<1x2xi1>
    %194 = vector.broadcast %193 : vector<1x2xi1> to vector<8x2xi1>
    %195 = vector.broadcast %c0_i32_86 : i32 to vector<8x2xi32>
    %196 = arith.select %194, %185, %195 : vector<8x2xi1>, vector<8x2xi32>
    %197 = arith.trunci %196 : vector<8x2xi32> to vector<8x2xi8>
    %198 = arith.index_cast %c4_i32 : i32 to index
    %c0_87 = arith.constant 0 : index
    %c0_88 = arith.constant 0 : index
    %199 = vector.load %arg6[%198, %c0_87, %c0_88] : memref<8x8x2xi8, #tpu.memory_space<vmem>>, vector<1x8x2xi8>
    %200 = vector.shape_cast %199 : vector<1x8x2xi8> to vector<8x2xi8>
    %201 = vector.shape_cast %197 : vector<8x2xi8> to vector<1x8x2xi8>
    tpu.vector_store %arg6[%198, %c0_87, %c0_88], %201 {strides = array<i32>} : memref<8x8x2xi8, #tpu.memory_space<vmem>>, vector<1x8x2xi8>,
    %c0_89 = arith.constant 0 : index
    %c0_90 = arith.constant 0 : index
    %202 = vector.load %arg8[%c0_89, %c0_90] : memref<8x2xf32, #tpu.memory_space<vmem>>, vector<8x2xf32>
    tpu.vector_store %arg8[%c0_89, %c0_90], %187 {strides = array<i32>} : memref<8x2xf32, #tpu.memory_space<vmem>>, vector<8x2xf32>,
    %203 = vector.broadcast %171 : i32 to vector<1x2xi32>
    %204 = arith.cmpi eq, %203, %2 : vector<1x2xi32>
    %c0_91 = arith.constant 0 : index
    %c0_92 = arith.constant 0 : index
    %205 = vector.load %arg9[%c0_91, %c0_92] : memref<8x2xf32, #tpu.memory_space<vmem>>, vector<8x2xf32>
    %206 = vector.shape_cast %204 : vector<1x2xi1> to vector<1x2xi1>
    %207 = vector.broadcast %206 : vector<1x2xi1> to vector<8x2xi1>
    %208 = arith.select %207, %187, %205 : vector<8x2xi1>, vector<8x2xf32>
    %c0_93 = arith.constant 0 : index
    %c0_94 = arith.constant 0 : index
    %209 = vector.load %arg9[%c0_93, %c0_94] : memref<8x2xf32, #tpu.memory_space<vmem>>, vector<8x2xf32>
    tpu.vector_store %arg9[%c0_93, %c0_94], %208 {strides = array<i32>} : memref<8x2xf32, #tpu.memory_space<vmem>>, vector<8x2xf32>,
    %c5_i32 = arith.constant 5 : i32
    %c8_i32_95 = arith.constant 8 : i32
    %210 = arith.muli %arg1, %c8_i32_95 : i32
    %211 = arith.addi %210, %c5_i32 : i32
    %212 = arith.index_cast %c5_i32 : i32 to index
    %c0_96 = arith.constant 0 : index
    %c0_97 = arith.constant 0 : index
    %213 = vector.load %arg2[%212, %c0_96, %c0_97] : memref<8x8x2xf32, #tpu.memory_space<vmem>>, vector<1x8x2xf32>
    %214 = vector.shape_cast %213 : vector<1x8x2xf32> to vector<8x2xf32>
    %c0_98 = arith.constant 0 : index
    %c0_99 = arith.constant 0 : index
    %215 = vector.load %arg8[%c0_98, %c0_99] : memref<8x2xf32, #tpu.memory_space<vmem>>, vector<8x2xf32>
    %216 = vector.shape_cast %215 : vector<8x2xf32> to vector<1x8x2xf32>
    %217 = vector.broadcast %216 : vector<1x8x2xf32> to vector<8x8x2xf32>
    %218 = arith.addf %5, %217 : vector<8x8x2xf32>
    %cst_100 = arith.constant dense<0xFF800000> : vector<8x2xf32>
    %219 = vector.multi_reduction <maximumf>, %218, %cst_100 [1] : vector<8x8x2xf32> to vector<8x2xf32>
    %220 = vector.shape_cast %219 : vector<8x2xf32> to vector<8x1x2xf32>
    %221 = vector.broadcast %220 : vector<8x1x2xf32> to vector<8x8x2xf32>
    %222 = arith.cmpf oeq, %218, %221 : vector<8x8x2xf32>
    %c8_i32_101 = arith.constant 8 : i32
    %223 = vector.broadcast %c8_i32_101 : i32 to vector<8x8x2xi32>
    %224 = arith.select %222, %6, %223 : vector<8x8x2xi1>, vector<8x8x2xi32>
    %cst_102 = arith.constant dense<2147483647> : vector<8x2xi32>
    %225 = vector.multi_reduction <minsi>, %224, %cst_102 [1] : vector<8x8x2xi32> to vector<8x2xi32>
    %226 = vector.shape_cast %220 : vector<8x1x2xf32> to vector<8x2xf32>
    %227 = arith.addf %214, %226 : vector<8x2xf32>
    %c0_i32_103 = arith.constant 0 : i32
    %228 = arith.cmpi sgt, %211, %c0_i32_103 : i32
    %229 = vector.broadcast %211 : i32 to vector<1x2xi32>
    %230 = arith.cmpi slt, %229, %0 : vector<1x2xi32>
    %231 = vector.broadcast %228 : i1 to vector<1x2xi1>
    %232 = arith.andi %231, %230 : vector<1x2xi1>
    %c0_i32_104 = arith.constant 0 : i32
    %233 = vector.shape_cast %232 : vector<1x2xi1> to vector<1x2xi1>
    %234 = vector.broadcast %233 : vector<1x2xi1> to vector<8x2xi1>
    %235 = vector.broadcast %c0_i32_104 : i32 to vector<8x2xi32>
    %236 = arith.select %234, %225, %235 : vector<8x2xi1>, vector<8x2xi32>
    %237 = arith.trunci %236 : vector<8x2xi32> to vector<8x2xi8>
    %238 = arith.index_cast %c5_i32 : i32 to index
    %c0_105 = arith.constant 0 : index
    %c0_106 = arith.constant 0 : index
    %239 = vector.load %arg6[%238, %c0_105, %c0_106] : memref<8x8x2xi8, #tpu.memory_space<vmem>>, vector<1x8x2xi8>
    %240 = vector.shape_cast %239 : vector<1x8x2xi8> to vector<8x2xi8>
    %241 = vector.shape_cast %237 : vector<8x2xi8> to vector<1x8x2xi8>
    tpu.vector_store %arg6[%238, %c0_105, %c0_106], %241 {strides = array<i32>} : memref<8x8x2xi8, #tpu.memory_space<vmem>>, vector<1x8x2xi8>,
    %c0_107 = arith.constant 0 : index
    %c0_108 = arith.constant 0 : index
    %242 = vector.load %arg8[%c0_107, %c0_108] : memref<8x2xf32, #tpu.memory_space<vmem>>, vector<8x2xf32>
    tpu.vector_store %arg8[%c0_107, %c0_108], %227 {strides = array<i32>} : memref<8x2xf32, #tpu.memory_space<vmem>>, vector<8x2xf32>,
    %243 = vector.broadcast %211 : i32 to vector<1x2xi32>
    %244 = arith.cmpi eq, %243, %2 : vector<1x2xi32>
    %c0_109 = arith.constant 0 : index
    %c0_110 = arith.constant 0 : index
    %245 = vector.load %arg9[%c0_109, %c0_110] : memref<8x2xf32, #tpu.memory_space<vmem>>, vector<8x2xf32>
    %246 = vector.shape_cast %244 : vector<1x2xi1> to vector<1x2xi1>
    %247 = vector.broadcast %246 : vector<1x2xi1> to vector<8x2xi1>
    %248 = arith.select %247, %227, %245 : vector<8x2xi1>, vector<8x2xf32>
    %c0_111 = arith.constant 0 : index
    %c0_112 = arith.constant 0 : index
    %249 = vector.load %arg9[%c0_111, %c0_112] : memref<8x2xf32, #tpu.memory_space<vmem>>, vector<8x2xf32>
    tpu.vector_store %arg9[%c0_111, %c0_112], %248 {strides = array<i32>} : memref<8x2xf32, #tpu.memory_space<vmem>>, vector<8x2xf32>,
    %c6_i32 = arith.constant 6 : i32
    %c8_i32_113 = arith.constant 8 : i32
    %250 = arith.muli %arg1, %c8_i32_113 : i32
    %251 = arith.addi %250, %c6_i32 : i32
    %252 = arith.index_cast %c6_i32 : i32 to index
    %c0_114 = arith.constant 0 : index
    %c0_115 = arith.constant 0 : index
    %253 = vector.load %arg2[%252, %c0_114, %c0_115] : memref<8x8x2xf32, #tpu.memory_space<vmem>>, vector<1x8x2xf32>
    %254 = vector.shape_cast %253 : vector<1x8x2xf32> to vector<8x2xf32>
    %c0_116 = arith.constant 0 : index
    %c0_117 = arith.constant 0 : index
    %255 = vector.load %arg8[%c0_116, %c0_117] : memref<8x2xf32, #tpu.memory_space<vmem>>, vector<8x2xf32>
    %256 = vector.shape_cast %255 : vector<8x2xf32> to vector<1x8x2xf32>
    %257 = vector.broadcast %256 : vector<1x8x2xf32> to vector<8x8x2xf32>
    %258 = arith.addf %5, %257 : vector<8x8x2xf32>
    %cst_118 = arith.constant dense<0xFF800000> : vector<8x2xf32>
    %259 = vector.multi_reduction <maximumf>, %258, %cst_118 [1] : vector<8x8x2xf32> to vector<8x2xf32>
    %260 = vector.shape_cast %259 : vector<8x2xf32> to vector<8x1x2xf32>
    %261 = vector.broadcast %260 : vector<8x1x2xf32> to vector<8x8x2xf32>
    %262 = arith.cmpf oeq, %258, %261 : vector<8x8x2xf32>
    %c8_i32_119 = arith.constant 8 : i32
    %263 = vector.broadcast %c8_i32_119 : i32 to vector<8x8x2xi32>
    %264 = arith.select %262, %6, %263 : vector<8x8x2xi1>, vector<8x8x2xi32>
    %cst_120 = arith.constant dense<2147483647> : vector<8x2xi32>
    %265 = vector.multi_reduction <minsi>, %264, %cst_120 [1] : vector<8x8x2xi32> to vector<8x2xi32>
    %266 = vector.shape_cast %260 : vector<8x1x2xf32> to vector<8x2xf32>
    %267 = arith.addf %254, %266 : vector<8x2xf32>
    %c0_i32_121 = arith.constant 0 : i32
    %268 = arith.cmpi sgt, %251, %c0_i32_121 : i32
    %269 = vector.broadcast %251 : i32 to vector<1x2xi32>
    %270 = arith.cmpi slt, %269, %0 : vector<1x2xi32>
    %271 = vector.broadcast %268 : i1 to vector<1x2xi1>
    %272 = arith.andi %271, %270 : vector<1x2xi1>
    %c0_i32_122 = arith.constant 0 : i32
    %273 = vector.shape_cast %272 : vector<1x2xi1> to vector<1x2xi1>
    %274 = vector.broadcast %273 : vector<1x2xi1> to vector<8x2xi1>
    %275 = vector.broadcast %c0_i32_122 : i32 to vector<8x2xi32>
    %276 = arith.select %274, %265, %275 : vector<8x2xi1>, vector<8x2xi32>
    %277 = arith.trunci %276 : vector<8x2xi32> to vector<8x2xi8>
    %278 = arith.index_cast %c6_i32 : i32 to index
    %c0_123 = arith.constant 0 : index
    %c0_124 = arith.constant 0 : index
    %279 = vector.load %arg6[%278, %c0_123, %c0_124] : memref<8x8x2xi8, #tpu.memory_space<vmem>>, vector<1x8x2xi8>
    %280 = vector.shape_cast %279 : vector<1x8x2xi8> to vector<8x2xi8>
    %281 = vector.shape_cast %277 : vector<8x2xi8> to vector<1x8x2xi8>
    tpu.vector_store %arg6[%278, %c0_123, %c0_124], %281 {strides = array<i32>} : memref<8x8x2xi8, #tpu.memory_space<vmem>>, vector<1x8x2xi8>,
    %c0_125 = arith.constant 0 : index
    %c0_126 = arith.constant 0 : index
    %282 = vector.load %arg8[%c0_125, %c0_126] : memref<8x2xf32, #tpu.memory_space<vmem>>, vector<8x2xf32>
    tpu.vector_store %arg8[%c0_125, %c0_126], %267 {strides = array<i32>} : memref<8x2xf32, #tpu.memory_space<vmem>>, vector<8x2xf32>,
    %283 = vector.broadcast %251 : i32 to vector<1x2xi32>
    %284 = arith.cmpi eq, %283, %2 : vector<1x2xi32>
    %c0_127 = arith.constant 0 : index
    %c0_128 = arith.constant 0 : index
    %285 = vector.load %arg9[%c0_127, %c0_128] : memref<8x2xf32, #tpu.memory_space<vmem>>, vector<8x2xf32>
    %286 = vector.shape_cast %284 : vector<1x2xi1> to vector<1x2xi1>
    %287 = vector.broadcast %286 : vector<1x2xi1> to vector<8x2xi1>
    %288 = arith.select %287, %267, %285 : vector<8x2xi1>, vector<8x2xf32>
    %c0_129 = arith.constant 0 : index
    %c0_130 = arith.constant 0 : index
    %289 = vector.load %arg9[%c0_129, %c0_130] : memref<8x2xf32, #tpu.memory_space<vmem>>, vector<8x2xf32>
    tpu.vector_store %arg9[%c0_129, %c0_130], %288 {strides = array<i32>} : memref<8x2xf32, #tpu.memory_space<vmem>>, vector<8x2xf32>,
    %c7_i32 = arith.constant 7 : i32
    %c8_i32_131 = arith.constant 8 : i32
    %290 = arith.muli %arg1, %c8_i32_131 : i32
    %291 = arith.addi %290, %c7_i32 : i32
    %292 = arith.index_cast %c7_i32 : i32 to index
    %c0_132 = arith.constant 0 : index
    %c0_133 = arith.constant 0 : index
    %293 = vector.load %arg2[%292, %c0_132, %c0_133] : memref<8x8x2xf32, #tpu.memory_space<vmem>>, vector<1x8x2xf32>
    %294 = vector.shape_cast %293 : vector<1x8x2xf32> to vector<8x2xf32>
    %c0_134 = arith.constant 0 : index
    %c0_135 = arith.constant 0 : index
    %295 = vector.load %arg8[%c0_134, %c0_135] : memref<8x2xf32, #tpu.memory_space<vmem>>, vector<8x2xf32>
    %296 = vector.shape_cast %295 : vector<8x2xf32> to vector<1x8x2xf32>
    %297 = vector.broadcast %296 : vector<1x8x2xf32> to vector<8x8x2xf32>
    %298 = arith.addf %5, %297 : vector<8x8x2xf32>
    %cst_136 = arith.constant dense<0xFF800000> : vector<8x2xf32>
    %299 = vector.multi_reduction <maximumf>, %298, %cst_136 [1] : vector<8x8x2xf32> to vector<8x2xf32>
    %300 = vector.shape_cast %299 : vector<8x2xf32> to vector<8x1x2xf32>
    %301 = vector.broadcast %300 : vector<8x1x2xf32> to vector<8x8x2xf32>
    %302 = arith.cmpf oeq, %298, %301 : vector<8x8x2xf32>
    %c8_i32_137 = arith.constant 8 : i32
    %303 = vector.broadcast %c8_i32_137 : i32 to vector<8x8x2xi32>
    %304 = arith.select %302, %6, %303 : vector<8x8x2xi1>, vector<8x8x2xi32>
    %cst_138 = arith.constant dense<2147483647> : vector<8x2xi32>
    %305 = vector.multi_reduction <minsi>, %304, %cst_138 [1] : vector<8x8x2xi32> to vector<8x2xi32>
    %306 = vector.shape_cast %300 : vector<8x1x2xf32> to vector<8x2xf32>
    %307 = arith.addf %294, %306 : vector<8x2xf32>
    %c0_i32_139 = arith.constant 0 : i32
    %308 = arith.cmpi sgt, %291, %c0_i32_139 : i32
    %309 = vector.broadcast %291 : i32 to vector<1x2xi32>
    %310 = arith.cmpi slt, %309, %0 : vector<1x2xi32>
    %311 = vector.broadcast %308 : i1 to vector<1x2xi1>
    %312 = arith.andi %311, %310 : vector<1x2xi1>
    %c0_i32_140 = arith.constant 0 : i32
    %313 = vector.shape_cast %312 : vector<1x2xi1> to vector<1x2xi1>
    %314 = vector.broadcast %313 : vector<1x2xi1> to vector<8x2xi1>
    %315 = vector.broadcast %c0_i32_140 : i32 to vector<8x2xi32>
    %316 = arith.select %314, %305, %315 : vector<8x2xi1>, vector<8x2xi32>
    %317 = arith.trunci %316 : vector<8x2xi32> to vector<8x2xi8>
    %318 = arith.index_cast %c7_i32 : i32 to index
    %c0_141 = arith.constant 0 : index
    %c0_142 = arith.constant 0 : index
    %319 = vector.load %arg6[%318, %c0_141, %c0_142] : memref<8x8x2xi8, #tpu.memory_space<vmem>>, vector<1x8x2xi8>
    %320 = vector.shape_cast %319 : vector<1x8x2xi8> to vector<8x2xi8>
    %321 = vector.shape_cast %317 : vector<8x2xi8> to vector<1x8x2xi8>
    tpu.vector_store %arg6[%318, %c0_141, %c0_142], %321 {strides = array<i32>} : memref<8x8x2xi8, #tpu.memory_space<vmem>>, vector<1x8x2xi8>,
    %c0_143 = arith.constant 0 : index
    %c0_144 = arith.constant 0 : index
    %322 = vector.load %arg8[%c0_143, %c0_144] : memref<8x2xf32, #tpu.memory_space<vmem>>, vector<8x2xf32>
    tpu.vector_store %arg8[%c0_143, %c0_144], %307 {strides = array<i32>} : memref<8x2xf32, #tpu.memory_space<vmem>>, vector<8x2xf32>,
    %323 = vector.broadcast %291 : i32 to vector<1x2xi32>
    %324 = arith.cmpi eq, %323, %2 : vector<1x2xi32>
    %c0_145 = arith.constant 0 : index
    %c0_146 = arith.constant 0 : index
    %325 = vector.load %arg9[%c0_145, %c0_146] : memref<8x2xf32, #tpu.memory_space<vmem>>, vector<8x2xf32>
    %326 = vector.shape_cast %324 : vector<1x2xi1> to vector<1x2xi1>
    %327 = vector.broadcast %326 : vector<1x2xi1> to vector<8x2xi1>
    %328 = arith.select %327, %307, %325 : vector<8x2xi1>, vector<8x2xf32>
    %c0_147 = arith.constant 0 : index
    %c0_148 = arith.constant 0 : index
    %329 = vector.load %arg9[%c0_147, %c0_148] : memref<8x2xf32, #tpu.memory_space<vmem>>, vector<8x2xf32>
    tpu.vector_store %arg9[%c0_147, %c0_148], %328 {strides = array<i32>} : memref<8x2xf32, #tpu.memory_space<vmem>>, vector<8x2xf32>,
    %c8_i32_149 = arith.constant 8 : i32
    %c0_i32_150 = arith.constant 0 : i32
    %330 = arith.cmpi eq, %arg1, %c0_i32_150 : i32
    %331 = arith.extui %330 : i1 to i32
    %c0_i32_151 = arith.constant 0 : i32
    %332 = arith.cmpi ne, %331, %c0_i32_151 : i32
    scf.if %332 {
      %c0_152 = arith.constant 0 : index
      %c0_153 = arith.constant 0 : index
      %333 = vector.load %arg9[%c0_152, %c0_153] : memref<8x2xf32, #tpu.memory_space<vmem>>, vector<8x2xf32>
      %c0_154 = arith.constant 0 : index
      %c0_155 = arith.constant 0 : index
      %334 = vector.load %arg5[%c0_154, %c0_155] : memref<8x1xf32, #tpu.memory_space<vmem>>, vector<8x1xf32>
      %335 = vector.broadcast %334 : vector<8x1xf32> to vector<8x2xf32>
      %336 = arith.addf %333, %335 : vector<8x2xf32>
      %cst_156 = arith.constant dense<0xFF800000> : vector<2xf32>
      %337 = vector.multi_reduction <maximumf>, %336, %cst_156 [0] : vector<8x2xf32> to vector<2xf32>
      %338 = vector.shape_cast %337 : vector<2xf32> to vector<1x2xf32>
      %339 = tpu.iota {dimensions = array<i32: 0>} : vector<8x2xi32>
      %340 = vector.broadcast %338 : vector<1x2xf32> to vector<8x2xf32>
      %341 = arith.cmpf oeq, %336, %340 : vector<8x2xf32>
      %c8_i32_157 = arith.constant 8 : i32
      %342 = vector.broadcast %c8_i32_157 : i32 to vector<8x2xi32>
      %343 = arith.select %341, %339, %342 : vector<8x2xi1>, vector<8x2xi32>
      %cst_158 = arith.constant dense<2147483647> : vector<2xi32>
      %344 = vector.multi_reduction <minsi>, %343, %cst_158 [0] : vector<8x2xi32> to vector<2xi32>
      %345 = vector.shape_cast %344 : vector<2xi32> to vector<1x2xi32>
      %c0_159 = arith.constant 0 : index
      %c0_160 = arith.constant 0 : index
      %346 = vector.load %arg7[%c0_159, %c0_160] : memref<1x2xi32, #tpu.memory_space<vmem>>, vector<1x2xi32>
      tpu.vector_store %arg7[%c0_159, %c0_160], %345 {strides = array<i32>} : memref<1x2xi32, #tpu.memory_space<vmem>>, vector<1x2xi32>,
    } else {
    }
    return
  }
  func.func @transform_0(%arg0: i32, %arg1: i32) -> (i32, i32, i32) {
    %c0_i32 = arith.constant 0 : i32
    %c0_i32_0 = arith.constant 0 : i32
    return %arg1, %c0_i32, %arg0 : i32, i32, i32
  }
  func.func @transform_1(%arg0: i32, %arg1: i32) -> (i32, i32) {
    %c0_i32 = arith.constant 0 : i32
    %c0_i32_0 = arith.constant 0 : i32
    return %c0_i32, %arg0 : i32, i32
  }
  func.func @transform_2(%arg0: i32, %arg1: i32) -> (i32, i32, i32) {
    %c0_i32 = arith.constant 0 : i32
    %c0_i32_0 = arith.constant 0 : i32
    %c0_i32_1 = arith.constant 0 : i32
    %c0_i32_2 = arith.constant 0 : i32
    return %c0_i32, %c0_i32_0, %c0_i32_1 : i32, i32, i32
  }
  func.func @transform_3(%arg0: i32, %arg1: i32) -> (i32, i32) {
    %c0_i32 = arith.constant 0 : i32
    %c0_i32_0 = arith.constant 0 : i32
    %c0_i32_1 = arith.constant 0 : i32
    return %c0_i32, %c0_i32_0 : i32, i32
  }
  func.func @transform_4(%arg0: i32, %arg1: i32) -> (i32, i32, i32) {
    %c0_i32 = arith.constant 0 : i32
    %c0_i32_0 = arith.constant 0 : i32
    return %arg1, %c0_i32, %arg0 : i32, i32, i32
  }
  func.func @transform_5(%arg0: i32, %arg1: i32) -> (i32, i32) {
    %c0_i32 = arith.constant 0 : i32
    %c0_i32_0 = arith.constant 0 : i32
    return %c0_i32, %arg0 : i32, i32
  }
}

</mosaic_0001>

<llo_original>
// kernel: crf_viterbi_decode.3
$region0: #{crf_viterbi_decode.3}
  #allocation0 [shape = 'u32[]', space=smem, size = 0x4, offset = 0x4, fixed_abs, tag = 'smem constant byte address 0x4 - core index']
  #allocation1 [shape = 'u32[144,128]{1,0:T(1,128)}', space=vmem, size = 0x12000, scoped, tag = 'internal scratch']
  #allocation2 [shape = 's32[1,2]{1,0:T(1,128)}', space=vmem, size = 0x200, scoped, tag = 'scratch operand']
  #allocation3 [shape = 's32[8,2]{1,0:T(8,128)}', space=vmem, size = 0x1000, scoped, tag = 'scratch operand']
  %s0 = inlined_call_operand.vmem [shape: s8[8,8,2], index: 0, kind: input, shape index: {}]
  %s1 = inlined_call_operand.vmem [shape: s32[1,2], index: 1, kind: input, shape index: {}]
  %s2 = inlined_call_operand.vmem [shape: s32[1,2], index: 2, kind: input, shape index: {}]
  %s3 = inlined_call_operand.vmem [shape: s32[8,1,2], index: 3, kind: output, shape index: {}]
  %s4 = sld [smem:[#allocation0]]
  $region26: #{crf_viterbi_decode.3} parent=0
    _
  %s6 = ssub.s32 1, %s4
  %s7 = scalar_select 0, %s6, %s4
  // Predicated region
  $region2: #{crf_viterbi_decode.3} parent=0 // pred_check
    _
  $region3: #{crf_viterbi_decode.3} parent=0 // pred_check_branch
    %9 = sbr.rel (0) target = $region5
  $region4: #{crf_viterbi_decode.3} parent=0 // pred_region
    %s10 = ssub.s32 0, 0
    %s11 = smul.u32 8, %s10
    %p12 = scmp.lt.s32.totalorder %s11, 7
    %s13 = scalar_select %p12, %s11, 7
    %s14 = smul.addr %s13, 2
    %s15 = scalar_lea.vmem %s0, %s14
    %s16 = ssub.s32 0, 0
    %s17 = smul.u32 8, %s16
  $region5: #{crf_viterbi_decode.3} parent=0 // pred_fallthru
    _
  // Predicated region
  $region6: #{crf_viterbi_decode.3} parent=0 // pred_check
    _
  $region7: #{crf_viterbi_decode.3} parent=0 // pred_check_branch
    %19 = sbr.rel (0) target = $region9
  $region8: #{crf_viterbi_decode.3} parent=0 // pred_region
    _
  $region9: #{crf_viterbi_decode.3} parent=0 // pred_fallthru
    _
  // Predicated region
  $region10: #{crf_viterbi_decode.3} parent=0 // pred_check
    _
  $region11: #{crf_viterbi_decode.3} parent=0 // pred_check_branch
    %21 = sbr.rel (0) target = $region13
  $region12: #{crf_viterbi_decode.3} parent=0 // pred_region
    _
  $region13: #{crf_viterbi_decode.3} parent=0 // pred_fallthru
    _
  %s22 = ssub.s32 0, 0
  %s23 = smul.u32 8, %s22
  %p24 = scmp.lt.s32.totalorder %s23, 7
  %s25 = scalar_select %p24, %s23, 7
  %s26 = smul.addr %s25, 2
  %s27 = scalar_lea.vmem %s0, %s26
  %s28 = ssub.s32 0, 0
  %s29 = smul.u32 8, %s28
  %p30 = scmp.lt.s32.totalorder %s29, 7
  %s31 = scalar_select %p30, %s29, 7
  %s32 = scalar_lea.vmem %s3, %s31
  %s33 = ssub.s32 0, 0
  %s34 = smul.u32 8, %s33
  %p35 = scmp.lt.s32.totalorder %s34, 7
  %s36 = scalar_select %p35, %s34, 7
  %s37 = smul.addr %s36, 2
  %s38 = scalar_lea.vmem %s0, %s37
  %s39 = ssub.s32 0, 0
  %s40 = smul.u32 8, %s39
  %s41 = ssub.s32 0, 0
  %s42 = smul.u32 8, %s41
  %p43 = scmp.lt.s32.totalorder %s42, 7
  %s44 = scalar_select %p43, %s42, 7
  %s45 = scalar_lea.vmem %s3, %s44
  %s46 = ssub.s32 0, 0
  %s47 = smul.u32 8, %s46
  %s48 = ssub.s32 0, 0
  %s49 = smul.u32 %s48, 8
  %v50 = vld [vmem:[%s1] sm:$0x1]
  %v51 = vsub.s32 %v50, 1
  %v52 = vld [vmem:[%s2] sm:$0x1]
  %v53 = vlaneseq
  %v54 = vshrl.u32 %v53, 7
  %p55 = scmp.eq.s32.totalorder 0, 0
  // Predicated region
  $region14: #{crf_viterbi_decode.3} parent=0 // pred_check
    %p56 = pneg %p55
  $region15: #{crf_viterbi_decode.3} parent=0 // pred_check_branch
    %58 = sbr.rel (%p56) target = $region17
  $region16: #{crf_viterbi_decode.3} parent=0 // pred_region
    %vm59 = vcmask 8192
    %60 = vst.msk [vmem:[#allocation2] sm:$0x1] %vm59, %v52
    %vm61 = vcmask 15360
    %62 = vst.msk [vmem:[#allocation3] sm:$0xff] %vm61, 0
  $region17: #{crf_viterbi_decode.3} parent=0 // pred_fallthru
    _
  %s63 = sadd.s32 %s49, 7
  %v64 = vld [vmem:[#allocation3] sm:$0xff]
  %v65 = vld [vmem:[#allocation2] sm:$0x1]
  %v66 = vlaneseq
  %v67 = vshrl.u32 %v66, 7
  %v68 = vsub.s32 0, %v67
  %v69 = vrot.slane %v65, %v68
  %vm70 = vcmp.eq.s32.totalorder %v54, %v69
  %v71 = vsel %vm70, %v64, 0
  %vm72 = vcmask 15360
  %v73 = vsel %vm72, %v71, 0
  %v74 = vrot.slane %v73, 4
  %v75 = vadd.s32 %v73, %v74
  %v76 = vrot.slane %v75, 2
  %v77 = vadd.s32 %v75, %v76
  %v78 = vrot.slane %v77, 1
  %v79 = vadd.s32 %v77, %v78
  %p80 = scmp.ge.s32.totalorder %s63, 7
  %v81 = vstv %s63
  %vm82 = vcmp.eq.s32.totalorder %v81, %v51
  %s83 = scalar_select %p80, 1, 0
  %v84 = vstv %s83
  %vm85 = vcmp.eq.s32.totalorder %v84, 1
  %vm86 = vmor %vm85, %vm82
  %v87 = vsel %vm86, %v52, %v79
  %s88 = scalar_lea.vmem %s45, 7
  %vm89 = vcmask 8192
  %90 = vst.msk [vmem:[%s88] sm:$0x1] %vm89, %v87
  %s91 = sadd.s32 %s49, 6
  %s92 = scalar_lea.vmem %s38, 14
  %v93 = vld [vmem:[%s92] sm:$0x3]
  %v94 = vunpack.c.0.s8 %v93
  %v95 = vlaneseq
  %v96 = vshrl.u32 %v95, 7
  %v97 = vsub.s32 0, %v96
  %v98 = vrot.slane %v87, %v97
  %vm99 = vcmp.eq.s32.totalorder %v54, %v98
  %v100 = vsel %vm99, %v94, 0
  %v101 = vsel %vm72, %v100, 0
  %v102 = vrot.slane %v101, 4
  %v103 = vadd.s32 %v101, %v102
  %v104 = vrot.slane %v103, 2
  %v105 = vadd.s32 %v103, %v104
  %v106 = vrot.slane %v105, 1
  %v107 = vadd.s32 %v105, %v106
  %p108 = scmp.ge.s32.totalorder %s91, 7
  %v109 = vstv %s91
  %vm110 = vcmp.eq.s32.totalorder %v109, %v51
  %s111 = scalar_select %p108, 1, 0
  %v112 = vstv %s111
  %vm113 = vcmp.eq.s32.totalorder %v112, 1
  %vm114 = vmor %vm113, %vm110
  %v115 = vsel %vm114, %v52, %v107
  %s116 = scalar_lea.vmem %s45, 6
  %117 = vst.msk [vmem:[%s116] sm:$0x1] %vm89, %v115
  %s118 = sadd.s32 %s49, 5
  %s119 = scalar_lea.vmem %s38, 12
  %v120 = vld [vmem:[%s119] sm:$0x3]
  %v121 = vunpack.c.0.s8 %v120
  %v122 = vlaneseq
  %v123 = vshrl.u32 %v122, 7
  %v124 = vsub.s32 0, %v123
  %v125 = vrot.slane %v115, %v124
  %vm126 = vcmp.eq.s32.totalorder %v54, %v125
  %v127 = vsel %vm126, %v121, 0
  %v128 = vsel %vm72, %v127, 0
  %v129 = vrot.slane %v128, 4
  %v130 = vadd.s32 %v128, %v129
  %v131 = vrot.slane %v130, 2
  %v132 = vadd.s32 %v130, %v131
  %v133 = vrot.slane %v132, 1
  %v134 = vadd.s32 %v132, %v133
  %p135 = scmp.ge.s32.totalorder %s118, 7
  %v136 = vstv %s118
  %vm137 = vcmp.eq.s32.totalorder %v136, %v51
  %s138 = scalar_select %p135, 1, 0
  %v139 = vstv %s138
  %vm140 = vcmp.eq.s32.totalorder %v139, 1
  %vm141 = vmor %vm140, %vm137
  %v142 = vsel %vm141, %v52, %v134
  %s143 = scalar_lea.vmem %s45, 5
  %144 = vst.msk [vmem:[%s143] sm:$0x1] %vm89, %v142
  %s145 = sadd.s32 %s49, 4
  %s146 = scalar_lea.vmem %s38, 10
  %v147 = vld [vmem:[%s146] sm:$0x3]
  %v148 = vunpack.c.0.s8 %v147
  %v149 = vlaneseq
  %v150 = vshrl.u32 %v149, 7
  %v151 = vsub.s32 0, %v150
  %v152 = vrot.slane %v142, %v151
  %vm153 = vcmp.eq.s32.totalorder %v54, %v152
  %v154 = vsel %vm153, %v148, 0
  %v155 = vsel %vm72, %v154, 0
  %v156 = vrot.slane %v155, 4
  %v157 = vadd.s32 %v155, %v156
  %v158 = vrot.slane %v157, 2
  %v159 = vadd.s32 %v157, %v158
  %v160 = vrot.slane %v159, 1
  %v161 = vadd.s32 %v159, %v160
  %p162 = scmp.ge.s32.totalorder %s145, 7
  %v163 = vstv %s145
  %vm164 = vcmp.eq.s32.totalorder %v163, %v51
  %s165 = scalar_select %p162, 1, 0
  %v166 = vstv %s165
  %vm167 = vcmp.eq.s32.totalorder %v166, 1
  %vm168 = vmor %vm167, %vm164
  %v169 = vsel %vm168, %v52, %v161
  %s170 = scalar_lea.vmem %s45, 4
  %171 = vst.msk [vmem:[%s170] sm:$0x1] %vm89, %v169
  %s172 = sadd.s32 %s49, 3
  %s173 = scalar_lea.vmem %s38, 8
  %v174 = vld [vmem:[%s173] sm:$0x3]
  %v175 = vunpack.c.0.s8 %v174
  %v176 = vlaneseq
  %v177 = vshrl.u32 %v176, 7
  %v178 = vsub.s32 0, %v177
  %v179 = vrot.slane %v169, %v178
  %vm180 = vcmp.eq.s32.totalorder %v54, %v179
  %v181 = vsel %vm180, %v175, 0
  %v182 = vsel %vm72, %v181, 0
  %v183 = vrot.slane %v182, 4
  %v184 = vadd.s32 %v182, %v183
  %v185 = vrot.slane %v184, 2
  %v186 = vadd.s32 %v184, %v185
  %v187 = vrot.slane %v186, 1
  %v188 = vadd.s32 %v186, %v187
  %p189 = scmp.ge.s32.totalorder %s172, 7
  %v190 = vstv %s172
  %vm191 = vcmp.eq.s32.totalorder %v190, %v51
  %s192 = scalar_select %p189, 1, 0
  %v193 = vstv %s192
  %vm194 = vcmp.eq.s32.totalorder %v193, 1
  %vm195 = vmor %vm194, %vm191
  %v196 = vsel %vm195, %v52, %v188
  %s197 = scalar_lea.vmem %s45, 3
  %198 = vst.msk [vmem:[%s197] sm:$0x1] %vm89, %v196
  %s199 = sadd.s32 %s49, 2
  %s200 = scalar_lea.vmem %s38, 6
  %v201 = vld [vmem:[%s200] sm:$0x3]
  %v202 = vunpack.c.0.s8 %v201
  %v203 = vlaneseq
  %v204 = vshrl.u32 %v203, 7
  %v205 = vsub.s32 0, %v204
  %v206 = vrot.slane %v196, %v205
  %vm207 = vcmp.eq.s32.totalorder %v54, %v206
  %v208 = vsel %vm207, %v202, 0
  %v209 = vsel %vm72, %v208, 0
  %v210 = vrot.slane %v209, 4
  %v211 = vadd.s32 %v209, %v210
  %v212 = vrot.slane %v211, 2
  %v213 = vadd.s32 %v211, %v212
  %v214 = vrot.slane %v213, 1
  %v215 = vadd.s32 %v213, %v214
  %p216 = scmp.ge.s32.totalorder %s199, 7
  %v217 = vstv %s199
  %vm218 = vcmp.eq.s32.totalorder %v217, %v51
  %s219 = scalar_select %p216, 1, 0
  %v220 = vstv %s219
  %vm221 = vcmp.eq.s32.totalorder %v220, 1
  %vm222 = vmor %vm221, %vm218
  %v223 = vsel %vm222, %v52, %v215
  %s224 = scalar_lea.vmem %s45, 2
  %225 = vst.msk [vmem:[%s224] sm:$0x1] %vm89, %v223
  %s226 = sadd.s32 %s49, 1
  %s227 = scalar_lea.vmem %s38, 4
  %v228 = vld [vmem:[%s227] sm:$0x3]
  %v229 = vunpack.c.0.s8 %v228
  %v230 = vlaneseq
  %v231 = vshrl.u32 %v230, 7
  %v232 = vsub.s32 0, %v231
  %v233 = vrot.slane %v223, %v232
  %vm234 = vcmp.eq.s32.totalorder %v54, %v233
  %v235 = vsel %vm234, %v229, 0
  %v236 = vsel %vm72, %v235, 0
  %v237 = vrot.slane %v236, 4
  %v238 = vadd.s32 %v236, %v237
  %v239 = vrot.slane %v238, 2
  %v240 = vadd.s32 %v238, %v239
  %v241 = vrot.slane %v240, 1
  %v242 = vadd.s32 %v240, %v241
  %p243 = scmp.ge.s32.totalorder %s226, 7
  %v244 = vstv %s226
  %vm245 = vcmp.eq.s32.totalorder %v244, %v51
  %s246 = scalar_select %p243, 1, 0
  %v247 = vstv %s246
  %vm248 = vcmp.eq.s32.totalorder %v247, 1
  %vm249 = vmor %vm248, %vm245
  %v250 = vsel %vm249, %v52, %v242
  %s251 = scalar_lea.vmem %s45, 1
  %252 = vst.msk [vmem:[%s251] sm:$0x1] %vm89, %v250
  %s253 = scalar_lea.vmem %s38, 2
  %v254 = vld [vmem:[%s253] sm:$0x3]
  %v255 = vunpack.c.0.s8 %v254
  %v256 = vlaneseq
  %v257 = vshrl.u32 %v256, 7
  %v258 = vsub.s32 0, %v257
  %v259 = vrot.slane %v250, %v258
  %vm260 = vcmp.eq.s32.totalorder %v54, %v259
  %v261 = vsel %vm260, %v255, 0
  %v262 = vsel %vm72, %v261, 0
  %v263 = vrot.slane %v262, 4
  %v264 = vadd.s32 %v262, %v263
  %v265 = vrot.slane %v264, 2
  %v266 = vadd.s32 %v264, %v265
  %v267 = vrot.slane %v266, 1
  %v268 = vadd.s32 %v266, %v267
  %p269 = scmp.ge.s32.totalorder %s49, 7
  %v270 = vstv %s49
  %vm271 = vcmp.eq.s32.totalorder %v270, %v51
  %s272 = scalar_select %p269, 1, 0
  %v273 = vstv %s272
  %vm274 = vcmp.eq.s32.totalorder %v273, 1
  %vm275 = vmor %vm274, %vm271
  %v276 = vsel %vm275, %v52, %v268
  %277 = vst.msk [vmem:[%s45] sm:$0x1] %vm89, %v276
  %278 = vst.msk [vmem:[#allocation2] sm:$0x1] %vm89, %v276
  %v279 = vld [vmem:[%s38] sm:$0x3]
  %v280 = vunpack.c.0.s8 %v279
  %281 = vst.msk [vmem:[#allocation3] sm:$0xff] %vm72, %v280
  %s282 = ssub.s32 0, 0
  %s283 = smul.u32 8, %s282
  %p284 = scmp.lt.s32.totalorder %s283, 7
  %s285 = scalar_select %p284, %s283, 7
  %s286 = scalar_lea.vmem %s3, %s285
  // Predicated region
  $region18: #{crf_viterbi_decode.3} parent=0 // pred_check
    _
  $region19: #{crf_viterbi_decode.3} parent=0 // pred_check_branch
    %288 = sbr.rel (0) target = $region21
  $region20: #{crf_viterbi_decode.3} parent=0 // pred_region
    %s289 = ssub.s32 0, 0
    %s290 = smul.u32 8, %s289
  $region21: #{crf_viterbi_decode.3} parent=0 // pred_fallthru
    _
  // Predicated region
  $region22: #{crf_viterbi_decode.3} parent=0 // pred_check
    _
  $region23: #{crf_viterbi_decode.3} parent=0 // pred_check_branch
    %292 = sbr.rel (0) target = $region25
  $region24: #{crf_viterbi_decode.3} parent=0 // pred_region
    %s293 = ssub.s32 0, 0
    %s294 = smul.u32 8, %s293
    %p295 = scmp.lt.s32.totalorder %s294, 7
    %s296 = scalar_select %p295, %s294, 7
    %s297 = scalar_lea.vmem %s3, %s296
  $region25: #{crf_viterbi_decode.3} parent=0 // pred_fallthru
    _

// kernel: crf_viterbi_decode.2
$region0: #{crf_viterbi_decode.2}
  #allocation0 [shape = 'u32[]', space=smem, size = 0x4, offset = 0x4, fixed_abs, tag = 'smem constant byte address 0x4 - core index']
  #allocation1 [shape = 'u32[144,128]{1,0:T(1,128)}', space=vmem, size = 0x12000, scoped, tag = 'internal scratch']
  #allocation2 [shape = 'f32[8,2]{1,0:T(8,128)}', space=vmem, size = 0x1000, scoped, tag = 'scratch operand']
  #allocation3 [shape = 'f32[8,2]{1,0:T(8,128)}', space=vmem, size = 0x1000, scoped, tag = 'scratch operand']
  %s0 = inlined_call_operand.vmem [shape: f32[8,8,2], index: 0, kind: input, shape index: {}]
  %s1 = inlined_call_operand.vmem [shape: s32[1,2], index: 1, kind: input, shape index: {}]
  %s2 = inlined_call_operand.vmem [shape: f32[8,8,1], index: 2, kind: input, shape index: {}]
  %s3 = inlined_call_operand.vmem [shape: f32[8,1], index: 3, kind: input, shape index: {}]
  %s4 = inlined_call_operand.vmem [shape: s8[8,8,2], index: 4, kind: output, shape index: {0}]
  %s5 = inlined_call_operand.vmem [shape: s32[1,2], index: 5, kind: output, shape index: {1}]
  %6 = xla_tuple %s4, %s5
  %s7 = sld [smem:[#allocation0]]
  $region42: #{crf_viterbi_decode.2} parent=0
    _
  %s9 = ssub.s32 1, %s7
  %s10 = scalar_select 0, %s9, %s7
  // Predicated region
  $region2: #{crf_viterbi_decode.2} parent=0 // pred_check
    _
  $region3: #{crf_viterbi_decode.2} parent=0 // pred_check_branch
    %12 = sbr.rel (0) target = $region5
  $region4: #{crf_viterbi_decode.2} parent=0 // pred_region
    _
  $region5: #{crf_viterbi_decode.2} parent=0 // pred_fallthru
    _
  // Predicated region
  $region6: #{crf_viterbi_decode.2} parent=0 // pred_check
    _
  $region7: #{crf_viterbi_decode.2} parent=0 // pred_check_branch
    %14 = sbr.rel (0) target = $region9
  $region8: #{crf_viterbi_decode.2} parent=0 // pred_region
    _
  $region9: #{crf_viterbi_decode.2} parent=0 // pred_fallthru
    _
  // Predicated region
  $region10: #{crf_viterbi_decode.2} parent=0 // pred_check
    _
  $region11: #{crf_viterbi_decode.2} parent=0 // pred_check_branch
    %16 = sbr.rel (0) target = $region13
  $region12: #{crf_viterbi_decode.2} parent=0 // pred_region
    _
  $region13: #{crf_viterbi_decode.2} parent=0 // pred_fallthru
    _
  // Predicated region
  $region14: #{crf_viterbi_decode.2} parent=0 // pred_check
    _
  $region15: #{crf_viterbi_decode.2} parent=0 // pred_check_branch
    %18 = sbr.rel (0) target = $region17
  $region16: #{crf_viterbi_decode.2} parent=0 // pred_region
    _
  $region17: #{crf_viterbi_decode.2} parent=0 // pred_fallthru
    _
  %v19 = vld [vmem:[%s1] sm:$0x1]
  %v20 = vsub.s32 %v19, 1
  %v21 = vld [vmem:[%s2] sm:$0xff]
  %v22 = vld [vmem:[%s2 + $0x8] sm:$0xff]
  %v23 = vld [vmem:[%s2 + $0x10] sm:$0xff]
  %v24 = vld [vmem:[%s2 + $0x18] sm:$0xff]
  %v25 = vld [vmem:[%s2 + $0x20] sm:$0xff]
  %v26 = vld [vmem:[%s2 + $0x28] sm:$0xff]
  %v27 = vld [vmem:[%s2 + $0x30] sm:$0xff]
  %v28 = vld [vmem:[%s2 + $0x38] sm:$0xff]
  %30 = vset.pattern.permute.xlu0 0
  %31 = vperm.xlu0 %30, %v21
  %v32 = vpop.permute.xlu0 %31
  %35 = vset.pattern.permute.xlu0 0
  %36 = vperm.xlu0 %35, %v22
  %v37 = vpop.permute.xlu0 %36
  %40 = vset.pattern.permute.xlu0 0
  %41 = vperm.xlu0 %40, %v23
  %v42 = vpop.permute.xlu0 %41
  %45 = vset.pattern.permute.xlu0 0
  %46 = vperm.xlu0 %45, %v24
  %v47 = vpop.permute.xlu0 %46
  %50 = vset.pattern.permute.xlu0 0
  %51 = vperm.xlu0 %50, %v25
  %v52 = vpop.permute.xlu0 %51
  %55 = vset.pattern.permute.xlu0 0
  %56 = vperm.xlu0 %55, %v26
  %v57 = vpop.permute.xlu0 %56
  %60 = vset.pattern.permute.xlu0 0
  %61 = vperm.xlu0 %60, %v27
  %v62 = vpop.permute.xlu0 %61
  %65 = vset.pattern.permute.xlu0 0
  %66 = vperm.xlu0 %65, %v28
  %v67 = vpop.permute.xlu0 %66
  %v69 = vlaneseq
  %v70 = vshrl.u32 %v69, 7
  %p71 = scmp.eq.s32.totalorder 0, 0
  // Predicated region
  $region18: #{crf_viterbi_decode.2} parent=0 // pred_check
    %p72 = pneg %p71
  $region19: #{crf_viterbi_decode.2} parent=0 // pred_check_branch
    %74 = sbr.rel (%p72) target = $region21
  $region20: #{crf_viterbi_decode.2} parent=0 // pred_region
    %vm75 = vcmp.eq.s32.totalorder %v70, 6
    %v76 = vsel %vm75, 0.0, -1e+30
    %vm77 = vcmask 15360
    %78 = vst.msk [vmem:[#allocation2] sm:$0xff] %vm77, %v76
    %79 = vst.msk [vmem:[#allocation3] sm:$0xff] %vm77, 0.0
  $region21: #{crf_viterbi_decode.2} parent=0 // pred_fallthru
    _
  %s80 = smul.u32 0, 8
  %v81 = vld [vmem:[%s0] sm:$0xff]
  %v82 = vld [vmem:[#allocation2] sm:$0xff]
  %v83 = vadd.f32 %v32, %v82
  %v84 = vadd.f32 %v37, %v82
  %v85 = vadd.f32 %v42, %v82
  %v86 = vadd.f32 %v47, %v82
  %v87 = vadd.f32 %v52, %v82
  %v88 = vadd.f32 %v57, %v82
  %v89 = vadd.f32 %v62, %v82
  %v90 = vadd.f32 %v67, %v82
  %vm91 = vcmask 15360
  %v92 = vsel %vm91, %v83, -inf
  %v93 = vrot.slane %v92, 4
  %v94 = vmax.f32 %v92, %v93
  %v95 = vrot.slane %v94, 2
  %v96 = vmax.f32 %v94, %v95
  %v97 = vrot.slane %v96, 1
  %v98 = vmax.f32 %v96, %v97
  %v99 = vsel %vm91, %v84, -inf
  %v100 = vrot.slane %v99, 4
  %v101 = vmax.f32 %v99, %v100
  %v102 = vrot.slane %v101, 2
  %v103 = vmax.f32 %v101, %v102
  %v104 = vrot.slane %v103, 1
  %v105 = vmax.f32 %v103, %v104
  %v106 = vsel %vm91, %v85, -inf
  %v107 = vrot.slane %v106, 4
  %v108 = vmax.f32 %v106, %v107
  %v109 = vrot.slane %v108, 2
  %v110 = vmax.f32 %v108, %v109
  %v111 = vrot.slane %v110, 1
  %v112 = vmax.f32 %v110, %v111
  %v113 = vsel %vm91, %v86, -inf
  %v114 = vrot.slane %v113, 4
  %v115 = vmax.f32 %v113, %v114
  %v116 = vrot.slane %v115, 2
  %v117 = vmax.f32 %v115, %v116
  %v118 = vrot.slane %v117, 1
  %v119 = vmax.f32 %v117, %v118
  %v120 = vsel %vm91, %v87, -inf
  %v121 = vrot.slane %v120, 4
  %v122 = vmax.f32 %v120, %v121
  %v123 = vrot.slane %v122, 2
  %v124 = vmax.f32 %v122, %v123
  %v125 = vrot.slane %v124, 1
  %v126 = vmax.f32 %v124, %v125
  %v127 = vsel %vm91, %v88, -inf
  %v128 = vrot.slane %v127, 4
  %v129 = vmax.f32 %v127, %v128
  %v130 = vrot.slane %v129, 2
  %v131 = vmax.f32 %v129, %v130
  %v132 = vrot.slane %v131, 1
  %v133 = vmax.f32 %v131, %v132
  %v134 = vsel %vm91, %v89, -inf
  %v135 = vrot.slane %v134, 4
  %v136 = vmax.f32 %v134, %v135
  %v137 = vrot.slane %v136, 2
  %v138 = vmax.f32 %v136, %v137
  %v139 = vrot.slane %v138, 1
  %v140 = vmax.f32 %v138, %v139
  %v141 = vsel %vm91, %v90, -inf
  %v142 = vrot.slane %v141, 4
  %v143 = vmax.f32 %v141, %v142
  %v144 = vrot.slane %v143, 2
  %v145 = vmax.f32 %v143, %v144
  %v146 = vrot.slane %v145, 1
  %v147 = vmax.f32 %v145, %v146
  %vm148 = vcmp.eq.f32.partialorder %v83, %v98
  %vm149 = vcmp.eq.f32.partialorder %v84, %v105
  %vm150 = vcmp.eq.f32.partialorder %v85, %v112
  %vm151 = vcmp.eq.f32.partialorder %v86, %v119
  %vm152 = vcmp.eq.f32.partialorder %v87, %v126
  %vm153 = vcmp.eq.f32.partialorder %v88, %v133
  %vm154 = vcmp.eq.f32.partialorder %v89, %v140
  %vm155 = vcmp.eq.f32.partialorder %v90, %v147
  %v156 = vsel %vm148, %v70, 8
  %v157 = vsel %vm149, %v70, 8
  %v158 = vsel %vm150, %v70, 8
  %v159 = vsel %vm151, %v70, 8
  %v160 = vsel %vm152, %v70, 8
  %v161 = vsel %vm153, %v70, 8
  %v162 = vsel %vm154, %v70, 8
  %v163 = vsel %vm155, %v70, 8
  %v164 = vsel %vm91, %v156, 2147483647
  %v165 = vrot.slane %v164, 4
  %vm166 = vcmp.lt.s32.totalorder %v164, %v165
  %v167 = vsel %vm166, %v164, %v165
  %v168 = vrot.slane %v167, 2
  %vm169 = vcmp.lt.s32.totalorder %v167, %v168
  %v170 = vsel %vm169, %v167, %v168
  %v171 = vrot.slane %v170, 1
  %vm172 = vcmp.lt.s32.totalorder %v170, %v171
  %v173 = vsel %vm172, %v170, %v171
  %v174 = vsel %vm91, %v157, 2147483647
  %v175 = vrot.slane %v174, 4
  %vm176 = vcmp.lt.s32.totalorder %v174, %v175
  %v177 = vsel %vm176, %v174, %v175
  %v178 = vrot.slane %v177, 2
  %vm179 = vcmp.lt.s32.totalorder %v177, %v178
  %v180 = vsel %vm179, %v177, %v178
  %v181 = vrot.slane %v180, 1
  %vm182 = vcmp.lt.s32.totalorder %v180, %v181
  %v183 = vsel %vm182, %v180, %v181
  %v184 = vsel %vm91, %v158, 2147483647
  %v185 = vrot.slane %v184, 4
  %vm186 = vcmp.lt.s32.totalorder %v184, %v185
  %v187 = vsel %vm186, %v184, %v185
  %v188 = vrot.slane %v187, 2
  %vm189 = vcmp.lt.s32.totalorder %v187, %v188
  %v190 = vsel %vm189, %v187, %v188
  %v191 = vrot.slane %v190, 1
  %vm192 = vcmp.lt.s32.totalorder %v190, %v191
  %v193 = vsel %vm192, %v190, %v191
  %v194 = vsel %vm91, %v159, 2147483647
  %v195 = vrot.slane %v194, 4
  %vm196 = vcmp.lt.s32.totalorder %v194, %v195
  %v197 = vsel %vm196, %v194, %v195
  %v198 = vrot.slane %v197, 2
  %vm199 = vcmp.lt.s32.totalorder %v197, %v198
  %v200 = vsel %vm199, %v197, %v198
  %v201 = vrot.slane %v200, 1
  %vm202 = vcmp.lt.s32.totalorder %v200, %v201
  %v203 = vsel %vm202, %v200, %v201
  %v204 = vsel %vm91, %v160, 2147483647
  %v205 = vrot.slane %v204, 4
  %vm206 = vcmp.lt.s32.totalorder %v204, %v205
  %v207 = vsel %vm206, %v204, %v205
  %v208 = vrot.slane %v207, 2
  %vm209 = vcmp.lt.s32.totalorder %v207, %v208
  %v210 = vsel %vm209, %v207, %v208
  %v211 = vrot.slane %v210, 1
  %vm212 = vcmp.lt.s32.totalorder %v210, %v211
  %v213 = vsel %vm212, %v210, %v211
  %v214 = vsel %vm91, %v161, 2147483647
  %v215 = vrot.slane %v214, 4
  %vm216 = vcmp.lt.s32.totalorder %v214, %v215
  %v217 = vsel %vm216, %v214, %v215
  %v218 = vrot.slane %v217, 2
  %vm219 = vcmp.lt.s32.totalorder %v217, %v218
  %v220 = vsel %vm219, %v217, %v218
  %v221 = vrot.slane %v220, 1
  %vm222 = vcmp.lt.s32.totalorder %v220, %v221
  %v223 = vsel %vm222, %v220, %v221
  %v224 = vsel %vm91, %v162, 2147483647
  %v225 = vrot.slane %v224, 4
  %vm226 = vcmp.lt.s32.totalorder %v224, %v225
  %v227 = vsel %vm226, %v224, %v225
  %v228 = vrot.slane %v227, 2
  %vm229 = vcmp.lt.s32.totalorder %v227, %v228
  %v230 = vsel %vm229, %v227, %v228
  %v231 = vrot.slane %v230, 1
  %vm232 = vcmp.lt.s32.totalorder %v230, %v231
  %v233 = vsel %vm232, %v230, %v231
  %v234 = vsel %vm91, %v163, 2147483647
  %v235 = vrot.slane %v234, 4
  %vm236 = vcmp.lt.s32.totalorder %v234, %v235
  %v237 = vsel %vm236, %v234, %v235
  %v238 = vrot.slane %v237, 2
  %vm239 = vcmp.lt.s32.totalorder %v237, %v238
  %v240 = vsel %vm239, %v237, %v238
  %v241 = vrot.slane %v240, 1
  %vm242 = vcmp.lt.s32.totalorder %v240, %v241
  %v243 = vsel %vm242, %v240, %v241
  %vm252 = vcmask 1041409
  %v253 = vsel %vm252, %v105, %v98
  %vm254 = vcmask 1042434
  %v255 = vsel %vm254, %v112, %v253
  %vm256 = vcmask 1043459
  %v257 = vsel %vm256, %v119, %v255
  %vm258 = vcmask 1044484
  %v259 = vsel %vm258, %v126, %v257
  %vm260 = vcmask 1045509
  %v261 = vsel %vm260, %v133, %v259
  %vm262 = vcmask 1046534
  %v263 = vsel %vm262, %v140, %v261
  %vm264 = vcmask 1047559
  %v265 = vsel %vm264, %v147, %v263
  %v267 = vadd.f32 %v81, %v265
  %p268 = scmp.gt.s32.totalorder %s80, 0
  %v269 = vstv %s80
  %vm270 = vcmp.lt.s32.totalorder %v269, %v19
  %s271 = scalar_select %p268, 1, 0
  %v272 = vstv %s271
  %vm273 = vcmp.eq.s32.totalorder %v272, 1
  %vm274 = vmand %vm273, %vm270
  %v275 = vsel %vm274, 1, 0
  %v276 = vlaneseq
  %v277 = vshrl.u32 %v276, 7
  %v278 = vsub.s32 0, %v277
  %v279 = vrot.slane %v275, %v278
  %vm280 = vcmp.eq.s32.totalorder %v279, 1
  %v281 = vsel %vm252, %v183, %v173
  %v282 = vsel %vm254, %v193, %v281
  %v283 = vsel %vm256, %v203, %v282
  %v284 = vsel %vm258, %v213, %v283
  %v285 = vsel %vm260, %v223, %v284
  %v286 = vsel %vm262, %v233, %v285
  %v287 = vsel %vm264, %v243, %v286
  %v288 = vsel %vm280, %v287, 0
  %v289 = vpack.c.b16 %v288, %v288
  %v290 = vpack.c.b8 %v289, %v289
  %vm291 = vcmask 9216
  %292 = vst.msk [vmem:[%s4] sm:$0x3] %vm291, %v290
  %293 = vst.msk [vmem:[#allocation2] sm:$0xff] %vm91, %v267
  %vm294 = vcmp.eq.s32.totalorder %v269, %v20
  %v295 = vld [vmem:[#allocation3] sm:$0xff]
  %v296 = vsel %vm294, 1, 0
  %v297 = vlaneseq
  %v298 = vshrl.u32 %v297, 7
  %v299 = vsub.s32 0, %v298
  %v300 = vrot.slane %v296, %v299
  %vm301 = vcmp.eq.s32.totalorder %v300, 1
  %v302 = vsel %vm301, %v267, %v295
  %303 = vst.msk [vmem:[#allocation3] sm:$0xff] %vm91, %v302
  %s304 = sadd.s32 %s80, 1
  %s305 = scalar_lea.vmem %s0, 8
  %v306 = vld [vmem:[%s305] sm:$0xff]
  %v307 = vld [vmem:[#allocation2] sm:$0xff]
  %v308 = vadd.f32 %v32, %v307
  %v309 = vadd.f32 %v37, %v307
  %v310 = vadd.f32 %v42, %v307
  %v311 = vadd.f32 %v47, %v307
  %v312 = vadd.f32 %v52, %v307
  %v313 = vadd.f32 %v57, %v307
  %v314 = vadd.f32 %v62, %v307
  %v315 = vadd.f32 %v67, %v307
  %v316 = vsel %vm91, %v308, -inf
  %v317 = vrot.slane %v316, 4
  %v318 = vmax.f32 %v316, %v317
  %v319 = vrot.slane %v318, 2
  %v320 = vmax.f32 %v318, %v319
  %v321 = vrot.slane %v320, 1
  %v322 = vmax.f32 %v320, %v321
  %v323 = vsel %vm91, %v309, -inf
  %v324 = vrot.slane %v323, 4
  %v325 = vmax.f32 %v323, %v324
  %v326 = vrot.slane %v325, 2
  %v327 = vmax.f32 %v325, %v326
  %v328 = vrot.slane %v327, 1
  %v329 = vmax.f32 %v327, %v328
  %v330 = vsel %vm91, %v310, -inf
  %v331 = vrot.slane %v330, 4
  %v332 = vmax.f32 %v330, %v331
  %v333 = vrot.slane %v332, 2
  %v334 = vmax.f32 %v332, %v333
  %v335 = vrot.slane %v334, 1
  %v336 = vmax.f32 %v334, %v335
  %v337 = vsel %vm91, %v311, -inf
  %v338 = vrot.slane %v337, 4
  %v339 = vmax.f32 %v337, %v338
  %v340 = vrot.slane %v339, 2
  %v341 = vmax.f32 %v339, %v340
  %v342 = vrot.slane %v341, 1
  %v343 = vmax.f32 %v341, %v342
  %v344 = vsel %vm91, %v312, -inf
  %v345 = vrot.slane %v344, 4
  %v346 = vmax.f32 %v344, %v345
  %v347 = vrot.slane %v346, 2
  %v348 = vmax.f32 %v346, %v347
  %v349 = vrot.slane %v348, 1
  %v350 = vmax.f32 %v348, %v349
  %v351 = vsel %vm91, %v313, -inf
  %v352 = vrot.slane %v351, 4
  %v353 = vmax.f32 %v351, %v352
  %v354 = vrot.slane %v353, 2
  %v355 = vmax.f32 %v353, %v354
  %v356 = vrot.slane %v355, 1
  %v357 = vmax.f32 %v355, %v356
  %v358 = vsel %vm91, %v314, -inf
  %v359 = vrot.slane %v358, 4
  %v360 = vmax.f32 %v358, %v359
  %v361 = vrot.slane %v360, 2
  %v362 = vmax.f32 %v360, %v361
  %v363 = vrot.slane %v362, 1
  %v364 = vmax.f32 %v362, %v363
  %v365 = vsel %vm91, %v315, -inf
  %v366 = vrot.slane %v365, 4
  %v367 = vmax.f32 %v365, %v366
  %v368 = vrot.slane %v367, 2
  %v369 = vmax.f32 %v367, %v368
  %v370 = vrot.slane %v369, 1
  %v371 = vmax.f32 %v369, %v370
  %vm372 = vcmp.eq.f32.partialorder %v308, %v322
  %vm373 = vcmp.eq.f32.partialorder %v309, %v329
  %vm374 = vcmp.eq.f32.partialorder %v310, %v336
  %vm375 = vcmp.eq.f32.partialorder %v311, %v343
  %vm376 = vcmp.eq.f32.partialorder %v312, %v350
  %vm377 = vcmp.eq.f32.partialorder %v313, %v357
  %vm378 = vcmp.eq.f32.partialorder %v314, %v364
  %vm379 = vcmp.eq.f32.partialorder %v315, %v371
  %v380 = vsel %vm372, %v70, 8
  %v381 = vsel %vm373, %v70, 8
  %v382 = vsel %vm374, %v70, 8
  %v383 = vsel %vm375, %v70, 8
  %v384 = vsel %vm376, %v70, 8
  %v385 = vsel %vm377, %v70, 8
  %v386 = vsel %vm378, %v70, 8
  %v387 = vsel %vm379, %v70, 8
  %v388 = vsel %vm91, %v380, 2147483647
  %v389 = vrot.slane %v388, 4
  %vm390 = vcmp.lt.s32.totalorder %v388, %v389
  %v391 = vsel %vm390, %v388, %v389
  %v392 = vrot.slane %v391, 2
  %vm393 = vcmp.lt.s32.totalorder %v391, %v392
  %v394 = vsel %vm393, %v391, %v392
  %v395 = vrot.slane %v394, 1
  %vm396 = vcmp.lt.s32.totalorder %v394, %v395
  %v397 = vsel %vm396, %v394, %v395
  %v398 = vsel %vm91, %v381, 2147483647
  %v399 = vrot.slane %v398, 4
  %vm400 = vcmp.lt.s32.totalorder %v398, %v399
  %v401 = vsel %vm400, %v398, %v399
  %v402 = vrot.slane %v401, 2
  %vm403 = vcmp.lt.s32.totalorder %v401, %v402
  %v404 = vsel %vm403, %v401, %v402
  %v405 = vrot.slane %v404, 1
  %vm406 = vcmp.lt.s32.totalorder %v404, %v405
  %v407 = vsel %vm406, %v404, %v405
  %v408 = vsel %vm91, %v382, 2147483647
  %v409 = vrot.slane %v408, 4
  %vm410 = vcmp.lt.s32.totalorder %v408, %v409
  %v411 = vsel %vm410, %v408, %v409
  %v412 = vrot.slane %v411, 2
  %vm413 = vcmp.lt.s32.totalorder %v411, %v412
  %v414 = vsel %vm413, %v411, %v412
  %v415 = vrot.slane %v414, 1
  %vm416 = vcmp.lt.s32.totalorder %v414, %v415
  %v417 = vsel %vm416, %v414, %v415
  %v418 = vsel %vm91, %v383, 2147483647
  %v419 = vrot.slane %v418, 4
  %vm420 = vcmp.lt.s32.totalorder %v418, %v419
  %v421 = vsel %vm420, %v418, %v419
  %v422 = vrot.slane %v421, 2
  %vm423 = vcmp.lt.s32.totalorder %v421, %v422
  %v424 = vsel %vm423, %v421, %v422
  %v425 = vrot.slane %v424, 1
  %vm426 = vcmp.lt.s32.totalorder %v424, %v425
  %v427 = vsel %vm426, %v424, %v425
  %v428 = vsel %vm91, %v384, 2147483647
  %v429 = vrot.slane %v428, 4
  %vm430 = vcmp.lt.s32.totalorder %v428, %v429
  %v431 = vsel %vm430, %v428, %v429
  %v432 = vrot.slane %v431, 2
  %vm433 = vcmp.lt.s32.totalorder %v431, %v432
  %v434 = vsel %vm433, %v431, %v432
  %v435 = vrot.slane %v434, 1
  %vm436 = vcmp.lt.s32.totalorder %v434, %v435
  %v437 = vsel %vm436, %v434, %v435
  %v438 = vsel %vm91, %v385, 2147483647
  %v439 = vrot.slane %v438, 4
  %vm440 = vcmp.lt.s32.totalorder %v438, %v439
  %v441 = vsel %vm440, %v438, %v439
  %v442 = vrot.slane %v441, 2
  %vm443 = vcmp.lt.s32.totalorder %v441, %v442
  %v444 = vsel %vm443, %v441, %v442
  %v445 = vrot.slane %v444, 1
  %vm446 = vcmp.lt.s32.totalorder %v444, %v445
  %v447 = vsel %vm446, %v444, %v445
  %v448 = vsel %vm91, %v386, 2147483647
  %v449 = vrot.slane %v448, 4
  %vm450 = vcmp.lt.s32.totalorder %v448, %v449
  %v451 = vsel %vm450, %v448, %v449
  %v452 = vrot.slane %v451, 2
  %vm453 = vcmp.lt.s32.totalorder %v451, %v452
  %v454 = vsel %vm453, %v451, %v452
  %v455 = vrot.slane %v454, 1
  %vm456 = vcmp.lt.s32.totalorder %v454, %v455
  %v457 = vsel %vm456, %v454, %v455
  %v458 = vsel %vm91, %v387, 2147483647
  %v459 = vrot.slane %v458, 4
  %vm460 = vcmp.lt.s32.totalorder %v458, %v459
  %v461 = vsel %vm460, %v458, %v459
  %v462 = vrot.slane %v461, 2
  %vm463 = vcmp.lt.s32.totalorder %v461, %v462
  %v464 = vsel %vm463, %v461, %v462
  %v465 = vrot.slane %v464, 1
  %vm466 = vcmp.lt.s32.totalorder %v464, %v465
  %v467 = vsel %vm466, %v464, %v465
  %v476 = vsel %vm252, %v329, %v322
  %v477 = vsel %vm254, %v336, %v476
  %v478 = vsel %vm256, %v343, %v477
  %v479 = vsel %vm258, %v350, %v478
  %v480 = vsel %vm260, %v357, %v479
  %v481 = vsel %vm262, %v364, %v480
  %v482 = vsel %vm264, %v371, %v481
  %v484 = vadd.f32 %v306, %v482
  %p485 = scmp.gt.s32.totalorder %s304, 0
  %v486 = vstv %s304
  %vm487 = vcmp.lt.s32.totalorder %v486, %v19
  %s488 = scalar_select %p485, 1, 0
  %v489 = vstv %s488
  %vm490 = vcmp.eq.s32.totalorder %v489, 1
  %vm491 = vmand %vm490, %vm487
  %v492 = vsel %vm491, 1, 0
  %v493 = vlaneseq
  %v494 = vshrl.u32 %v493, 7
  %v495 = vsub.s32 0, %v494
  %v496 = vrot.slane %v492, %v495
  %vm497 = vcmp.eq.s32.totalorder %v496, 1
  %v498 = vsel %vm252, %v407, %v397
  %v499 = vsel %vm254, %v417, %v498
  %v500 = vsel %vm256, %v427, %v499
  %v501 = vsel %vm258, %v437, %v500
  %v502 = vsel %vm260, %v447, %v501
  %v503 = vsel %vm262, %v457, %v502
  %v504 = vsel %vm264, %v467, %v503
  %v505 = vsel %vm497, %v504, 0
  %v506 = vpack.c.b16 %v505, %v505
  %v507 = vpack.c.b8 %v506, %v506
  %s508 = scalar_lea.vmem %s4, 2
  %509 = vst.msk [vmem:[%s508] sm:$0x3] %vm291, %v507
  %510 = vst.msk [vmem:[#allocation2] sm:$0xff] %vm91, %v484
  %vm511 = vcmp.eq.s32.totalorder %v486, %v20
  %v512 = vld [vmem:[#allocation3] sm:$0xff]
  %v513 = vsel %vm511, 1, 0
  %v514 = vlaneseq
  %v515 = vshrl.u32 %v514, 7
  %v516 = vsub.s32 0, %v515
  %v517 = vrot.slane %v513, %v516
  %vm518 = vcmp.eq.s32.totalorder %v517, 1
  %v519 = vsel %vm518, %v484, %v512
  %520 = vst.msk [vmem:[#allocation3] sm:$0xff] %vm91, %v519
  %s521 = sadd.s32 %s80, 2
  %s522 = scalar_lea.vmem %s0, 16
  %v523 = vld [vmem:[%s522] sm:$0xff]
  %v524 = vld [vmem:[#allocation2] sm:$0xff]
  %v525 = vadd.f32 %v32, %v524
  %v526 = vadd.f32 %v37, %v524
  %v527 = vadd.f32 %v42, %v524
  %v528 = vadd.f32 %v47, %v524
  %v529 = vadd.f32 %v52, %v524
  %v530 = vadd.f32 %v57, %v524
  %v531 = vadd.f32 %v62, %v524
  %v532 = vadd.f32 %v67, %v524
  %v533 = vsel %vm91, %v525, -inf
  %v534 = vrot.slane %v533, 4
  %v535 = vmax.f32 %v533, %v534
  %v536 = vrot.slane %v535, 2
  %v537 = vmax.f32 %v535, %v536
  %v538 = vrot.slane %v537, 1
  %v539 = vmax.f32 %v537, %v538
  %v540 = vsel %vm91, %v526, -inf
  %v541 = vrot.slane %v540, 4
  %v542 = vmax.f32 %v540, %v541
  %v543 = vrot.slane %v542, 2
  %v544 = vmax.f32 %v542, %v543
  %v545 = vrot.slane %v544, 1
  %v546 = vmax.f32 %v544, %v545
  %v547 = vsel %vm91, %v527, -inf
  %v548 = vrot.slane %v547, 4
  %v549 = vmax.f32 %v547, %v548
  %v550 = vrot.slane %v549, 2
  %v551 = vmax.f32 %v549, %v550
  %v552 = vrot.slane %v551, 1
  %v553 = vmax.f32 %v551, %v552
  %v554 = vsel %vm91, %v528, -inf
  %v555 = vrot.slane %v554, 4
  %v556 = vmax.f32 %v554, %v555
  %v557 = vrot.slane %v556, 2
  %v558 = vmax.f32 %v556, %v557
  %v559 = vrot.slane %v558, 1
  %v560 = vmax.f32 %v558, %v559
  %v561 = vsel %vm91, %v529, -inf
  %v562 = vrot.slane %v561, 4
  %v563 = vmax.f32 %v561, %v562
  %v564 = vrot.slane %v563, 2
  %v565 = vmax.f32 %v563, %v564
  %v566 = vrot.slane %v565, 1
  %v567 = vmax.f32 %v565, %v566
  %v568 = vsel %vm91, %v530, -inf
  %v569 = vrot.slane %v568, 4
  %v570 = vmax.f32 %v568, %v569
  %v571 = vrot.slane %v570, 2
  %v572 = vmax.f32 %v570, %v571
  %v573 = vrot.slane %v572, 1
  %v574 = vmax.f32 %v572, %v573
  %v575 = vsel %vm91, %v531, -inf
  %v576 = vrot.slane %v575, 4
  %v577 = vmax.f32 %v575, %v576
  %v578 = vrot.slane %v577, 2
  %v579 = vmax.f32 %v577, %v578
  %v580 = vrot.slane %v579, 1
  %v581 = vmax.f32 %v579, %v580
  %v582 = vsel %vm91, %v532, -inf
  %v583 = vrot.slane %v582, 4
  %v584 = vmax.f32 %v582, %v583
  %v585 = vrot.slane %v584, 2
  %v586 = vmax.f32 %v584, %v585
  %v587 = vrot.slane %v586, 1
  %v588 = vmax.f32 %v586, %v587
  %vm589 = vcmp.eq.f32.partialorder %v525, %v539
  %vm590 = vcmp.eq.f32.partialorder %v526, %v546
  %vm591 = vcmp.eq.f32.partialorder %v527, %v553
  %vm592 = vcmp.eq.f32.partialorder %v528, %v560
  %vm593 = vcmp.eq.f32.partialorder %v529, %v567
  %vm594 = vcmp.eq.f32.partialorder %v530, %v574
  %vm595 = vcmp.eq.f32.partialorder %v531, %v581
  %vm596 = vcmp.eq.f32.partialorder %v532, %v588
  %v597 = vsel %vm589, %v70, 8
  %v598 = vsel %vm590, %v70, 8
  %v599 = vsel %vm591, %v70, 8
  %v600 = vsel %vm592, %v70, 8
  %v601 = vsel %vm593, %v70, 8
  %v602 = vsel %vm594, %v70, 8
  %v603 = vsel %vm595, %v70, 8
  %v604 = vsel %vm596, %v70, 8
  %v605 = vsel %vm91, %v597, 2147483647
  %v606 = vrot.slane %v605, 4
  %vm607 = vcmp.lt.s32.totalorder %v605, %v606
  %v608 = vsel %vm607, %v605, %v606
  %v609 = vrot.slane %v608, 2
  %vm610 = vcmp.lt.s32.totalorder %v608, %v609
  %v611 = vsel %vm610, %v608, %v609
  %v612 = vrot.slane %v611, 1
  %vm613 = vcmp.lt.s32.totalorder %v611, %v612
  %v614 = vsel %vm613, %v611, %v612
  %v615 = vsel %vm91, %v598, 2147483647
  %v616 = vrot.slane %v615, 4
  %vm617 = vcmp.lt.s32.totalorder %v615, %v616
  %v618 = vsel %vm617, %v615, %v616
  %v619 = vrot.slane %v618, 2
  %vm620 = vcmp.lt.s32.totalorder %v618, %v619
  %v621 = vsel %vm620, %v618, %v619
  %v622 = vrot.slane %v621, 1
  %vm623 = vcmp.lt.s32.totalorder %v621, %v622
  %v624 = vsel %vm623, %v621, %v622
  %v625 = vsel %vm91, %v599, 2147483647
  %v626 = vrot.slane %v625, 4
  %vm627 = vcmp.lt.s32.totalorder %v625, %v626
  %v628 = vsel %vm627, %v625, %v626
  %v629 = vrot.slane %v628, 2
  %vm630 = vcmp.lt.s32.totalorder %v628, %v629
  %v631 = vsel %vm630, %v628, %v629
  %v632 = vrot.slane %v631, 1
  %vm633 = vcmp.lt.s32.totalorder %v631, %v632
  %v634 = vsel %vm633, %v631, %v632
  %v635 = vsel %vm91, %v600, 2147483647
  %v636 = vrot.slane %v635, 4
  %vm637 = vcmp.lt.s32.totalorder %v635, %v636
  %v638 = vsel %vm637, %v635, %v636
  %v639 = vrot.slane %v638, 2
  %vm640 = vcmp.lt.s32.totalorder %v638, %v639
  %v641 = vsel %vm640, %v638, %v639
  %v642 = vrot.slane %v641, 1
  %vm643 = vcmp.lt.s32.totalorder %v641, %v642
  %v644 = vsel %vm643, %v641, %v642
  %v645 = vsel %vm91, %v601, 2147483647
  %v646 = vrot.slane %v645, 4
  %vm647 = vcmp.lt.s32.totalorder %v645, %v646
  %v648 = vsel %vm647, %v645, %v646
  %v649 = vrot.slane %v648, 2
  %vm650 = vcmp.lt.s32.totalorder %v648, %v649
  %v651 = vsel %vm650, %v648, %v649
  %v652 = vrot.slane %v651, 1
  %vm653 = vcmp.lt.s32.totalorder %v651, %v652
  %v654 = vsel %vm653, %v651, %v652
  %v655 = vsel %vm91, %v602, 2147483647
  %v656 = vrot.slane %v655, 4
  %vm657 = vcmp.lt.s32.totalorder %v655, %v656
  %v658 = vsel %vm657, %v655, %v656
  %v659 = vrot.slane %v658, 2
  %vm660 = vcmp.lt.s32.totalorder %v658, %v659
  %v661 = vsel %vm660, %v658, %v659
  %v662 = vrot.slane %v661, 1
  %vm663 = vcmp.lt.s32.totalorder %v661, %v662
  %v664 = vsel %vm663, %v661, %v662
  %v665 = vsel %vm91, %v603, 2147483647
  %v666 = vrot.slane %v665, 4
  %vm667 = vcmp.lt.s32.totalorder %v665, %v666
  %v668 = vsel %vm667, %v665, %v666
  %v669 = vrot.slane %v668, 2
  %vm670 = vcmp.lt.s32.totalorder %v668, %v669
  %v671 = vsel %vm670, %v668, %v669
  %v672 = vrot.slane %v671, 1
  %vm673 = vcmp.lt.s32.totalorder %v671, %v672
  %v674 = vsel %vm673, %v671, %v672
  %v675 = vsel %vm91, %v604, 2147483647
  %v676 = vrot.slane %v675, 4
  %vm677 = vcmp.lt.s32.totalorder %v675, %v676
  %v678 = vsel %vm677, %v675, %v676
  %v679 = vrot.slane %v678, 2
  %vm680 = vcmp.lt.s32.totalorder %v678, %v679
  %v681 = vsel %vm680, %v678, %v679
  %v682 = vrot.slane %v681, 1
  %vm683 = vcmp.lt.s32.totalorder %v681, %v682
  %v684 = vsel %vm683, %v681, %v682
  %v693 = vsel %vm252, %v546, %v539
  %v694 = vsel %vm254, %v553, %v693
  %v695 = vsel %vm256, %v560, %v694
  %v696 = vsel %vm258, %v567, %v695
  %v697 = vsel %vm260, %v574, %v696
  %v698 = vsel %vm262, %v581, %v697
  %v699 = vsel %vm264, %v588, %v698
  %v701 = vadd.f32 %v523, %v699
  %p702 = scmp.gt.s32.totalorder %s521, 0
  %v703 = vstv %s521
  %vm704 = vcmp.lt.s32.totalorder %v703, %v19
  %s705 = scalar_select %p702, 1, 0
  %v706 = vstv %s705
  %vm707 = vcmp.eq.s32.totalorder %v706, 1
  %vm708 = vmand %vm707, %vm704
  %v709 = vsel %vm708, 1, 0
  %v710 = vlaneseq
  %v711 = vshrl.u32 %v710, 7
  %v712 = vsub.s32 0, %v711
  %v713 = vrot.slane %v709, %v712
  %vm714 = vcmp.eq.s32.totalorder %v713, 1
  %v715 = vsel %vm252, %v624, %v614
  %v716 = vsel %vm254, %v634, %v715
  %v717 = vsel %vm256, %v644, %v716
  %v718 = vsel %vm258, %v654, %v717
  %v719 = vsel %vm260, %v664, %v718
  %v720 = vsel %vm262, %v674, %v719
  %v721 = vsel %vm264, %v684, %v720
  %v722 = vsel %vm714, %v721, 0
  %v723 = vpack.c.b16 %v722, %v722
  %v724 = vpack.c.b8 %v723, %v723
  %s725 = scalar_lea.vmem %s4, 4
  %726 = vst.msk [vmem:[%s725] sm:$0x3] %vm291, %v724
  %727 = vst.msk [vmem:[#allocation2] sm:$0xff] %vm91, %v701
  %vm728 = vcmp.eq.s32.totalorder %v703, %v20
  %v729 = vld [vmem:[#allocation3] sm:$0xff]
  %v730 = vsel %vm728, 1, 0
  %v731 = vlaneseq
  %v732 = vshrl.u32 %v731, 7
  %v733 = vsub.s32 0, %v732
  %v734 = vrot.slane %v730, %v733
  %vm735 = vcmp.eq.s32.totalorder %v734, 1
  %v736 = vsel %vm735, %v701, %v729
  %737 = vst.msk [vmem:[#allocation3] sm:$0xff] %vm91, %v736
  %s738 = sadd.s32 %s80, 3
  %s739 = scalar_lea.vmem %s0, 24
  %v740 = vld [vmem:[%s739] sm:$0xff]
  %v741 = vld [vmem:[#allocation2] sm:$0xff]
  %v742 = vadd.f32 %v32, %v741
  %v743 = vadd.f32 %v37, %v741
  %v744 = vadd.f32 %v42, %v741
  %v745 = vadd.f32 %v47, %v741
  %v746 = vadd.f32 %v52, %v741
  %v747 = vadd.f32 %v57, %v741
  %v748 = vadd.f32 %v62, %v741
  %v749 = vadd.f32 %v67, %v741
  %v750 = vsel %vm91, %v742, -inf
  %v751 = vrot.slane %v750, 4
  %v752 = vmax.f32 %v750, %v751
  %v753 = vrot.slane %v752, 2
  %v754 = vmax.f32 %v752, %v753
  %v755 = vrot.slane %v754, 1
  %v756 = vmax.f32 %v754, %v755
  %v757 = vsel %vm91, %v743, -inf
  %v758 = vrot.slane %v757, 4
  %v759 = vmax.f32 %v757, %v758
  %v760 = vrot.slane %v759, 2
  %v761 = vmax.f32 %v759, %v760
  %v762 = vrot.slane %v761, 1
  %v763 = vmax.f32 %v761, %v762
  %v764 = vsel %vm91, %v744, -inf
  %v765 = vrot.slane %v764, 4
  %v766 = vmax.f32 %v764, %v765
  %v767 = vrot.slane %v766, 2
  %v768 = vmax.f32 %v766, %v767
  %v769 = vrot.slane %v768, 1
  %v770 = vmax.f32 %v768, %v769
  %v771 = vsel %vm91, %v745, -inf
  %v772 = vrot.slane %v771, 4
  %v773 = vmax.f32 %v771, %v772
  %v774 = vrot.slane %v773, 2
  %v775 = vmax.f32 %v773, %v774
  %v776 = vrot.slane %v775, 1
  %v777 = vmax.f32 %v775, %v776
  %v778 = vsel %vm91, %v746, -inf
  %v779 = vrot.slane %v778, 4
  %v780 = vmax.f32 %v778, %v779
  %v781 = vrot.slane %v780, 2
  %v782 = vmax.f32 %v780, %v781
  %v783 = vrot.slane %v782, 1
  %v784 = vmax.f32 %v782, %v783
  %v785 = vsel %vm91, %v747, -inf
  %v786 = vrot.slane %v785, 4
  %v787 = vmax.f32 %v785, %v786
  %v788 = vrot.slane %v787, 2
  %v789 = vmax.f32 %v787, %v788
  %v790 = vrot.slane %v789, 1
  %v791 = vmax.f32 %v789, %v790
  %v792 = vsel %vm91, %v748, -inf
  %v793 = vrot.slane %v792, 4
  %v794 = vmax.f32 %v792, %v793
  %v795 = vrot.slane %v794, 2
  %v796 = vmax.f32 %v794, %v795
  %v797 = vrot.slane %v796, 1
  %v798 = vmax.f32 %v796, %v797
  %v799 = vsel %vm91, %v749, -inf
  %v800 = vrot.slane %v799, 4
  %v801 = vmax.f32 %v799, %v800
  %v802 = vrot.slane %v801, 2
  %v803 = vmax.f32 %v801, %v802
  %v804 = vrot.slane %v803, 1
  %v805 = vmax.f32 %v803, %v804
  %vm806 = vcmp.eq.f32.partialorder %v742, %v756
  %vm807 = vcmp.eq.f32.partialorder %v743, %v763
  %vm808 = vcmp.eq.f32.partialorder %v744, %v770
  %vm809 = vcmp.eq.f32.partialorder %v745, %v777
  %vm810 = vcmp.eq.f32.partialorder %v746, %v784
  %vm811 = vcmp.eq.f32.partialorder %v747, %v791
  %vm812 = vcmp.eq.f32.partialorder %v748, %v798
  %vm813 = vcmp.eq.f32.partialorder %v749, %v805
  %v814 = vsel %vm806, %v70, 8
  %v815 = vsel %vm807, %v70, 8
  %v816 = vsel %vm808, %v70, 8
  %v817 = vsel %vm809, %v70, 8
  %v818 = vsel %vm810, %v70, 8
  %v819 = vsel %vm811, %v70, 8
  %v820 = vsel %vm812, %v70, 8
  %v821 = vsel %vm813, %v70, 8
  %v822 = vsel %vm91, %v814, 2147483647
  %v823 = vrot.slane %v822, 4
  %vm824 = vcmp.lt.s32.totalorder %v822, %v823
  %v825 = vsel %vm824, %v822, %v823
  %v826 = vrot.slane %v825, 2
  %vm827 = vcmp.lt.s32.totalorder %v825, %v826
  %v828 = vsel %vm827, %v825, %v826
  %v829 = vrot.slane %v828, 1
  %vm830 = vcmp.lt.s32.totalorder %v828, %v829
  %v831 = vsel %vm830, %v828, %v829
  %v832 = vsel %vm91, %v815, 2147483647
  %v833 = vrot.slane %v832, 4
  %vm834 = vcmp.lt.s32.totalorder %v832, %v833
  %v835 = vsel %vm834, %v832, %v833
  %v836 = vrot.slane %v835, 2
  %vm837 = vcmp.lt.s32.totalorder %v835, %v836
  %v838 = vsel %vm837, %v835, %v836
  %v839 = vrot.slane %v838, 1
  %vm840 = vcmp.lt.s32.totalorder %v838, %v839
  %v841 = vsel %vm840, %v838, %v839
  %v842 = vsel %vm91, %v816, 2147483647
  %v843 = vrot.slane %v842, 4
  %vm844 = vcmp.lt.s32.totalorder %v842, %v843
  %v845 = vsel %vm844, %v842, %v843
  %v846 = vrot.slane %v845, 2
  %vm847 = vcmp.lt.s32.totalorder %v845, %v846
  %v848 = vsel %vm847, %v845, %v846
  %v849 = vrot.slane %v848, 1
  %vm850 = vcmp.lt.s32.totalorder %v848, %v849
  %v851 = vsel %vm850, %v848, %v849
  %v852 = vsel %vm91, %v817, 2147483647
  %v853 = vrot.slane %v852, 4
  %vm854 = vcmp.lt.s32.totalorder %v852, %v853
  %v855 = vsel %vm854, %v852, %v853
  %v856 = vrot.slane %v855, 2
  %vm857 = vcmp.lt.s32.totalorder %v855, %v856
  %v858 = vsel %vm857, %v855, %v856
  %v859 = vrot.slane %v858, 1
  %vm860 = vcmp.lt.s32.totalorder %v858, %v859
  %v861 = vsel %vm860, %v858, %v859
  %v862 = vsel %vm91, %v818, 2147483647
  %v863 = vrot.slane %v862, 4
  %vm864 = vcmp.lt.s32.totalorder %v862, %v863
  %v865 = vsel %vm864, %v862, %v863
  %v866 = vrot.slane %v865, 2
  %vm867 = vcmp.lt.s32.totalorder %v865, %v866
  %v868 = vsel %vm867, %v865, %v866
  %v869 = vrot.slane %v868, 1
  %vm870 = vcmp.lt.s32.totalorder %v868, %v869
  %v871 = vsel %vm870, %v868, %v869
  %v872 = vsel %vm91, %v819, 2147483647
  %v873 = vrot.slane %v872, 4
  %vm874 = vcmp.lt.s32.totalorder %v872, %v873
  %v875 = vsel %vm874, %v872, %v873
  %v876 = vrot.slane %v875, 2
  %vm877 = vcmp.lt.s32.totalorder %v875, %v876
  %v878 = vsel %vm877, %v875, %v876
  %v879 = vrot.slane %v878, 1
  %vm880 = vcmp.lt.s32.totalorder %v878, %v879
  %v881 = vsel %vm880, %v878, %v879
  %v882 = vsel %vm91, %v820, 2147483647
  %v883 = vrot.slane %v882, 4
  %vm884 = vcmp.lt.s32.totalorder %v882, %v883
  %v885 = vsel %vm884, %v882, %v883
  %v886 = vrot.slane %v885, 2
  %vm887 = vcmp.lt.s32.totalorder %v885, %v886
  %v888 = vsel %vm887, %v885, %v886
  %v889 = vrot.slane %v888, 1
  %vm890 = vcmp.lt.s32.totalorder %v888, %v889
  %v891 = vsel %vm890, %v888, %v889
  %v892 = vsel %vm91, %v821, 2147483647
  %v893 = vrot.slane %v892, 4
  %vm894 = vcmp.lt.s32.totalorder %v892, %v893
  %v895 = vsel %vm894, %v892, %v893
  %v896 = vrot.slane %v895, 2
  %vm897 = vcmp.lt.s32.totalorder %v895, %v896
  %v898 = vsel %vm897, %v895, %v896
  %v899 = vrot.slane %v898, 1
  %vm900 = vcmp.lt.s32.totalorder %v898, %v899
  %v901 = vsel %vm900, %v898, %v899
  %v910 = vsel %vm252, %v763, %v756
  %v911 = vsel %vm254, %v770, %v910
  %v912 = vsel %vm256, %v777, %v911
  %v913 = vsel %vm258, %v784, %v912
  %v914 = vsel %vm260, %v791, %v913
  %v915 = vsel %vm262, %v798, %v914
  %v916 = vsel %vm264, %v805, %v915
  %v918 = vadd.f32 %v740, %v916
  %p919 = scmp.gt.s32.totalorder %s738, 0
  %v920 = vstv %s738
  %vm921 = vcmp.lt.s32.totalorder %v920, %v19
  %s922 = scalar_select %p919, 1, 0
  %v923 = vstv %s922
  %vm924 = vcmp.eq.s32.totalorder %v923, 1
  %vm925 = vmand %vm924, %vm921
  %v926 = vsel %vm925, 1, 0
  %v927 = vlaneseq
  %v928 = vshrl.u32 %v927, 7
  %v929 = vsub.s32 0, %v928
  %v930 = vrot.slane %v926, %v929
  %vm931 = vcmp.eq.s32.totalorder %v930, 1
  %v932 = vsel %vm252, %v841, %v831
  %v933 = vsel %vm254, %v851, %v932
  %v934 = vsel %vm256, %v861, %v933
  %v935 = vsel %vm258, %v871, %v934
  %v936 = vsel %vm260, %v881, %v935
  %v937 = vsel %vm262, %v891, %v936
  %v938 = vsel %vm264, %v901, %v937
  %v939 = vsel %vm931, %v938, 0
  %v940 = vpack.c.b16 %v939, %v939
  %v941 = vpack.c.b8 %v940, %v940
  %s942 = scalar_lea.vmem %s4, 6
  %943 = vst.msk [vmem:[%s942] sm:$0x3] %vm291, %v941
  %944 = vst.msk [vmem:[#allocation2] sm:$0xff] %vm91, %v918
  %vm945 = vcmp.eq.s32.totalorder %v920, %v20
  %v946 = vld [vmem:[#allocation3] sm:$0xff]
  %v947 = vsel %vm945, 1, 0
  %v948 = vlaneseq
  %v949 = vshrl.u32 %v948, 7
  %v950 = vsub.s32 0, %v949
  %v951 = vrot.slane %v947, %v950
  %vm952 = vcmp.eq.s32.totalorder %v951, 1
  %v953 = vsel %vm952, %v918, %v946
  %954 = vst.msk [vmem:[#allocation3] sm:$0xff] %vm91, %v953
  %s955 = sadd.s32 %s80, 4
  %s956 = scalar_lea.vmem %s0, 32
  %v957 = vld [vmem:[%s956] sm:$0xff]
  %v958 = vld [vmem:[#allocation2] sm:$0xff]
  %v959 = vadd.f32 %v32, %v958
  %v960 = vadd.f32 %v37, %v958
  %v961 = vadd.f32 %v42, %v958
  %v962 = vadd.f32 %v47, %v958
  %v963 = vadd.f32 %v52, %v958
  %v964 = vadd.f32 %v57, %v958
  %v965 = vadd.f32 %v62, %v958
  %v966 = vadd.f32 %v67, %v958
  %v967 = vsel %vm91, %v959, -inf
  %v968 = vrot.slane %v967, 4
  %v969 = vmax.f32 %v967, %v968
  %v970 = vrot.slane %v969, 2
  %v971 = vmax.f32 %v969, %v970
  %v972 = vrot.slane %v971, 1
  %v973 = vmax.f32 %v971, %v972
  %v974 = vsel %vm91, %v960, -inf
  %v975 = vrot.slane %v974, 4
  %v976 = vmax.f32 %v974, %v975
  %v977 = vrot.slane %v976, 2
  %v978 = vmax.f32 %v976, %v977
  %v979 = vrot.slane %v978, 1
  %v980 = vmax.f32 %v978, %v979
  %v981 = vsel %vm91, %v961, -inf
  %v982 = vrot.slane %v981, 4
  %v983 = vmax.f32 %v981, %v982
  %v984 = vrot.slane %v983, 2
  %v985 = vmax.f32 %v983, %v984
  %v986 = vrot.slane %v985, 1
  %v987 = vmax.f32 %v985, %v986
  %v988 = vsel %vm91, %v962, -inf
  %v989 = vrot.slane %v988, 4
  %v990 = vmax.f32 %v988, %v989
  %v991 = vrot.slane %v990, 2
  %v992 = vmax.f32 %v990, %v991
  %v993 = vrot.slane %v992, 1
  %v994 = vmax.f32 %v992, %v993
  %v995 = vsel %vm91, %v963, -inf
  %v996 = vrot.slane %v995, 4
  %v997 = vmax.f32 %v995, %v996
  %v998 = vrot.slane %v997, 2
  %v999 = vmax.f32 %v997, %v998
  %v1000 = vrot.slane %v999, 1
  %v1001 = vmax.f32 %v999, %v1000
  %v1002 = vsel %vm91, %v964, -inf
  %v1003 = vrot.slane %v1002, 4
  %v1004 = vmax.f32 %v1002, %v1003
  %v1005 = vrot.slane %v1004, 2
  %v1006 = vmax.f32 %v1004, %v1005
  %v1007 = vrot.slane %v1006, 1
  %v1008 = vmax.f32 %v1006, %v1007
  %v1009 = vsel %vm91, %v965, -inf
  %v1010 = vrot.slane %v1009, 4
  %v1011 = vmax.f32 %v1009, %v1010
  %v1012 = vrot.slane %v1011, 2
  %v1013 = vmax.f32 %v1011, %v1012
  %v1014 = vrot.slane %v1013, 1
  %v1015 = vmax.f32 %v1013, %v1014
  %v1016 = vsel %vm91, %v966, -inf
  %v1017 = vrot.slane %v1016, 4
  %v1018 = vmax.f32 %v1016, %v1017
  %v1019 = vrot.slane %v1018, 2
  %v1020 = vmax.f32 %v1018, %v1019
  %v1021 = vrot.slane %v1020, 1
  %v1022 = vmax.f32 %v1020, %v1021
  %vm1023 = vcmp.eq.f32.partialorder %v959, %v973
  %vm1024 = vcmp.eq.f32.partialorder %v960, %v980
  %vm1025 = vcmp.eq.f32.partialorder %v961, %v987
  %vm1026 = vcmp.eq.f32.partialorder %v962, %v994
  %vm1027 = vcmp.eq.f32.partialorder %v963, %v1001
  %vm1028 = vcmp.eq.f32.partialorder %v964, %v1008
  %vm1029 = vcmp.eq.f32.partialorder %v965, %v1015
  %vm1030 = vcmp.eq.f32.partialorder %v966, %v1022
  %v1031 = vsel %vm1023, %v70, 8
  %v1032 = vsel %vm1024, %v70, 8
  %v1033 = vsel %vm1025, %v70, 8
  %v1034 = vsel %vm1026, %v70, 8
  %v1035 = vsel %vm1027, %v70, 8
  %v1036 = vsel %vm1028, %v70, 8
  %v1037 = vsel %vm1029, %v70, 8
  %v1038 = vsel %vm1030, %v70, 8
  %v1039 = vsel %vm91, %v1031, 2147483647
  %v1040 = vrot.slane %v1039, 4
  %vm1041 = vcmp.lt.s32.totalorder %v1039, %v1040
  %v1042 = vsel %vm1041, %v1039, %v1040
  %v1043 = vrot.slane %v1042, 2
  %vm1044 = vcmp.lt.s32.totalorder %v1042, %v1043
  %v1045 = vsel %vm1044, %v1042, %v1043
  %v1046 = vrot.slane %v1045, 1
  %vm1047 = vcmp.lt.s32.totalorder %v1045, %v1046
  %v1048 = vsel %vm1047, %v1045, %v1046
  %v1049 = vsel %vm91, %v1032, 2147483647
  %v1050 = vrot.slane %v1049, 4
  %vm1051 = vcmp.lt.s32.totalorder %v1049, %v1050
  %v1052 = vsel %vm1051, %v1049, %v1050
  %v1053 = vrot.slane %v1052, 2
  %vm1054 = vcmp.lt.s32.totalorder %v1052, %v1053
  %v1055 = vsel %vm1054, %v1052, %v1053
  %v1056 = vrot.slane %v1055, 1
  %vm1057 = vcmp.lt.s32.totalorder %v1055, %v1056
  %v1058 = vsel %vm1057, %v1055, %v1056
  %v1059 = vsel %vm91, %v1033, 2147483647
  %v1060 = vrot.slane %v1059, 4
  %vm1061 = vcmp.lt.s32.totalorder %v1059, %v1060
  %v1062 = vsel %vm1061, %v1059, %v1060
  %v1063 = vrot.slane %v1062, 2
  %vm1064 = vcmp.lt.s32.totalorder %v1062, %v1063
  %v1065 = vsel %vm1064, %v1062, %v1063
  %v1066 = vrot.slane %v1065, 1
  %vm1067 = vcmp.lt.s32.totalorder %v1065, %v1066
  %v1068 = vsel %vm1067, %v1065, %v1066
  %v1069 = vsel %vm91, %v1034, 2147483647
  %v1070 = vrot.slane %v1069, 4
  %vm1071 = vcmp.lt.s32.totalorder %v1069, %v1070
  %v1072 = vsel %vm1071, %v1069, %v1070
  %v1073 = vrot.slane %v1072, 2
  %vm1074 = vcmp.lt.s32.totalorder %v1072, %v1073
  %v1075 = vsel %vm1074, %v1072, %v1073
  %v1076 = vrot.slane %v1075, 1
  %vm1077 = vcmp.lt.s32.totalorder %v1075, %v1076
  %v1078 = vsel %vm1077, %v1075, %v1076
  %v1079 = vsel %vm91, %v1035, 2147483647
  %v1080 = vrot.slane %v1079, 4
  %vm1081 = vcmp.lt.s32.totalorder %v1079, %v1080
  %v1082 = vsel %vm1081, %v1079, %v1080
  %v1083 = vrot.slane %v1082, 2
  %vm1084 = vcmp.lt.s32.totalorder %v1082, %v1083
  %v1085 = vsel %vm1084, %v1082, %v1083
  %v1086 = vrot.slane %v1085, 1
  %vm1087 = vcmp.lt.s32.totalorder %v1085, %v1086
  %v1088 = vsel %vm1087, %v1085, %v1086
  %v1089 = vsel %vm91, %v1036, 2147483647
  %v1090 = vrot.slane %v1089, 4
  %vm1091 = vcmp.lt.s32.totalorder %v1089, %v1090
  %v1092 = vsel %vm1091, %v1089, %v1090
  %v1093 = vrot.slane %v1092, 2
  %vm1094 = vcmp.lt.s32.totalorder %v1092, %v1093
  %v1095 = vsel %vm1094, %v1092, %v1093
  %v1096 = vrot.slane %v1095, 1
  %vm1097 = vcmp.lt.s32.totalorder %v1095, %v1096
  %v1098 = vsel %vm1097, %v1095, %v1096
  %v1099 = vsel %vm91, %v1037, 2147483647
  %v1100 = vrot.slane %v1099, 4
  %vm1101 = vcmp.lt.s32.totalorder %v1099, %v1100
  %v1102 = vsel %vm1101, %v1099, %v1100
  %v1103 = vrot.slane %v1102, 2
  %vm1104 = vcmp.lt.s32.totalorder %v1102, %v1103
  %v1105 = vsel %vm1104, %v1102, %v1103
  %v1106 = vrot.slane %v1105, 1
  %vm1107 = vcmp.lt.s32.totalorder %v1105, %v1106
  %v1108 = vsel %vm1107, %v1105, %v1106
  %v1109 = vsel %vm91, %v1038, 2147483647
  %v1110 = vrot.slane %v1109, 4
  %vm1111 = vcmp.lt.s32.totalorder %v1109, %v1110
  %v1112 = vsel %vm1111, %v1109, %v1110
  %v1113 = vrot.slane %v1112, 2
  %vm1114 = vcmp.lt.s32.totalorder %v1112, %v1113
  %v1115 = vsel %vm1114, %v1112, %v1113
  %v1116 = vrot.slane %v1115, 1
  %vm1117 = vcmp.lt.s32.totalorder %v1115, %v1116
  %v1118 = vsel %vm1117, %v1115, %v1116
  %v1127 = vsel %vm252, %v980, %v973
  %v1128 = vsel %vm254, %v987, %v1127
  %v1129 = vsel %vm256, %v994, %v1128
  %v1130 = vsel %vm258, %v1001, %v1129
  %v1131 = vsel %vm260, %v1008, %v1130
  %v1132 = vsel %vm262, %v1015, %v1131
  %v1133 = vsel %vm264, %v1022, %v1132
  %v1135 = vadd.f32 %v957, %v1133
  %p1136 = scmp.gt.s32.totalorder %s955, 0
  %v1137 = vstv %s955
  %vm1138 = vcmp.lt.s32.totalorder %v1137, %v19
  %s1139 = scalar_select %p1136, 1, 0
  %v1140 = vstv %s1139
  %vm1141 = vcmp.eq.s32.totalorder %v1140, 1
  %vm1142 = vmand %vm1141, %vm1138
  %v1143 = vsel %vm1142, 1, 0
  %v1144 = vlaneseq
  %v1145 = vshrl.u32 %v1144, 7
  %v1146 = vsub.s32 0, %v1145
  %v1147 = vrot.slane %v1143, %v1146
  %vm1148 = vcmp.eq.s32.totalorder %v1147, 1
  %v1149 = vsel %vm252, %v1058, %v1048
  %v1150 = vsel %vm254, %v1068, %v1149
  %v1151 = vsel %vm256, %v1078, %v1150
  %v1152 = vsel %vm258, %v1088, %v1151
  %v1153 = vsel %vm260, %v1098, %v1152
  %v1154 = vsel %vm262, %v1108, %v1153
  %v1155 = vsel %vm264, %v1118, %v1154
  %v1156 = vsel %vm1148, %v1155, 0
  %v1157 = vpack.c.b16 %v1156, %v1156
  %v1158 = vpack.c.b8 %v1157, %v1157
  %s1159 = scalar_lea.vmem %s4, 8
  %1160 = vst.msk [vmem:[%s1159] sm:$0x3] %vm291, %v1158
  %1161 = vst.msk [vmem:[#allocation2] sm:$0xff] %vm91, %v1135
  %vm1162 = vcmp.eq.s32.totalorder %v1137, %v20
  %v1163 = vld [vmem:[#allocation3] sm:$0xff]
  %v1164 = vsel %vm1162, 1, 0
  %v1165 = vlaneseq
  %v1166 = vshrl.u32 %v1165, 7
  %v1167 = vsub.s32 0, %v1166
  %v1168 = vrot.slane %v1164, %v1167
  %vm1169 = vcmp.eq.s32.totalorder %v1168, 1
  %v1170 = vsel %vm1169, %v1135, %v1163
  %1171 = vst.msk [vmem:[#allocation3] sm:$0xff] %vm91, %v1170
  %s1172 = sadd.s32 %s80, 5
  %s1173 = scalar_lea.vmem %s0, 40
  %v1174 = vld [vmem:[%s1173] sm:$0xff]
  %v1175 = vld [vmem:[#allocation2] sm:$0xff]
  %v1176 = vadd.f32 %v32, %v1175
  %v1177 = vadd.f32 %v37, %v1175
  %v1178 = vadd.f32 %v42, %v1175
  %v1179 = vadd.f32 %v47, %v1175
  %v1180 = vadd.f32 %v52, %v1175
  %v1181 = vadd.f32 %v57, %v1175
  %v1182 = vadd.f32 %v62, %v1175
  %v1183 = vadd.f32 %v67, %v1175
  %v1184 = vsel %vm91, %v1176, -inf
  %v1185 = vrot.slane %v1184, 4
  %v1186 = vmax.f32 %v1184, %v1185
  %v1187 = vrot.slane %v1186, 2
  %v1188 = vmax.f32 %v1186, %v1187
  %v1189 = vrot.slane %v1188, 1
  %v1190 = vmax.f32 %v1188, %v1189
  %v1191 = vsel %vm91, %v1177, -inf
  %v1192 = vrot.slane %v1191, 4
  %v1193 = vmax.f32 %v1191, %v1192
  %v1194 = vrot.slane %v1193, 2
  %v1195 = vmax.f32 %v1193, %v1194
  %v1196 = vrot.slane %v1195, 1
  %v1197 = vmax.f32 %v1195, %v1196
  %v1198 = vsel %vm91, %v1178, -inf
  %v1199 = vrot.slane %v1198, 4
  %v1200 = vmax.f32 %v1198, %v1199
  %v1201 = vrot.slane %v1200, 2
  %v1202 = vmax.f32 %v1200, %v1201
  %v1203 = vrot.slane %v1202, 1
  %v1204 = vmax.f32 %v1202, %v1203
  %v1205 = vsel %vm91, %v1179, -inf
  %v1206 = vrot.slane %v1205, 4
  %v1207 = vmax.f32 %v1205, %v1206
  %v1208 = vrot.slane %v1207, 2
  %v1209 = vmax.f32 %v1207, %v1208
  %v1210 = vrot.slane %v1209, 1
  %v1211 = vmax.f32 %v1209, %v1210
  %v1212 = vsel %vm91, %v1180, -inf
  %v1213 = vrot.slane %v1212, 4
  %v1214 = vmax.f32 %v1212, %v1213
  %v1215 = vrot.slane %v1214, 2
  %v1216 = vmax.f32 %v1214, %v1215
  %v1217 = vrot.slane %v1216, 1
  %v1218 = vmax.f32 %v1216, %v1217
  %v1219 = vsel %vm91, %v1181, -inf
  %v1220 = vrot.slane %v1219, 4
  %v1221 = vmax.f32 %v1219, %v1220
  %v1222 = vrot.slane %v1221, 2
  %v1223 = vmax.f32 %v1221, %v1222
  %v1224 = vrot.slane %v1223, 1
  %v1225 = vmax.f32 %v1223, %v1224
  %v1226 = vsel %vm91, %v1182, -inf
  %v1227 = vrot.slane %v1226, 4
  %v1228 = vmax.f32 %v1226, %v1227
  %v1229 = vrot.slane %v1228, 2
  %v1230 = vmax.f32 %v1228, %v1229
  %v1231 = vrot.slane %v1230, 1
  %v1232 = vmax.f32 %v1230, %v1231
  %v1233 = vsel %vm91, %v1183, -inf
  %v1234 = vrot.slane %v1233, 4
  %v1235 = vmax.f32 %v1233, %v1234
  %v1236 = vrot.slane %v1235, 2
  %v1237 = vmax.f32 %v1235, %v1236
  %v1238 = vrot.slane %v1237, 1
  %v1239 = vmax.f32 %v1237, %v1238
  %vm1240 = vcmp.eq.f32.partialorder %v1176, %v1190
  %vm1241 = vcmp.eq.f32.partialorder %v1177, %v1197
  %vm1242 = vcmp.eq.f32.partialorder %v1178, %v1204
  %vm1243 = vcmp.eq.f32.partialorder %v1179, %v1211
  %vm1244 = vcmp.eq.f32.partialorder %v1180, %v1218
  %vm1245 = vcmp.eq.f32.partialorder %v1181, %v1225
  %vm1246 = vcmp.eq.f32.partialorder %v1182, %v1232
  %vm1247 = vcmp.eq.f32.partialorder %v1183, %v1239
  %v1248 = vsel %vm1240, %v70, 8
  %v1249 = vsel %vm1241, %v70, 8
  %v1250 = vsel %vm1242, %v70, 8
  %v1251 = vsel %vm1243, %v70, 8
  %v1252 = vsel %vm1244, %v70, 8
  %v1253 = vsel %vm1245, %v70, 8
  %v1254 = vsel %vm1246, %v70, 8
  %v1255 = vsel %vm1247, %v70, 8
  %v1256 = vsel %vm91, %v1248, 2147483647
  %v1257 = vrot.slane %v1256, 4
  %vm1258 = vcmp.lt.s32.totalorder %v1256, %v1257
  %v1259 = vsel %vm1258, %v1256, %v1257
  %v1260 = vrot.slane %v1259, 2
  %vm1261 = vcmp.lt.s32.totalorder %v1259, %v1260
  %v1262 = vsel %vm1261, %v1259, %v1260
  %v1263 = vrot.slane %v1262, 1
  %vm1264 = vcmp.lt.s32.totalorder %v1262, %v1263
  %v1265 = vsel %vm1264, %v1262, %v1263
  %v1266 = vsel %vm91, %v1249, 2147483647
  %v1267 = vrot.slane %v1266, 4
  %vm1268 = vcmp.lt.s32.totalorder %v1266, %v1267
  %v1269 = vsel %vm1268, %v1266, %v1267
  %v1270 = vrot.slane %v1269, 2
  %vm1271 = vcmp.lt.s32.totalorder %v1269, %v1270
  %v1272 = vsel %vm1271, %v1269, %v1270
  %v1273 = vrot.slane %v1272, 1
  %vm1274 = vcmp.lt.s32.totalorder %v1272, %v1273
  %v1275 = vsel %vm1274, %v1272, %v1273
  %v1276 = vsel %vm91, %v1250, 2147483647
  %v1277 = vrot.slane %v1276, 4
  %vm1278 = vcmp.lt.s32.totalorder %v1276, %v1277
  %v1279 = vsel %vm1278, %v1276, %v1277
  %v1280 = vrot.slane %v1279, 2
  %vm1281 = vcmp.lt.s32.totalorder %v1279, %v1280
  %v1282 = vsel %vm1281, %v1279, %v1280
  %v1283 = vrot.slane %v1282, 1
  %vm1284 = vcmp.lt.s32.totalorder %v1282, %v1283
  %v1285 = vsel %vm1284, %v1282, %v1283
  %v1286 = vsel %vm91, %v1251, 2147483647
  %v1287 = vrot.slane %v1286, 4
  %vm1288 = vcmp.lt.s32.totalorder %v1286, %v1287
  %v1289 = vsel %vm1288, %v1286, %v1287
  %v1290 = vrot.slane %v1289, 2
  %vm1291 = vcmp.lt.s32.totalorder %v1289, %v1290
  %v1292 = vsel %vm1291, %v1289, %v1290
  %v1293 = vrot.slane %v1292, 1
  %vm1294 = vcmp.lt.s32.totalorder %v1292, %v1293
  %v1295 = vsel %vm1294, %v1292, %v1293
  %v1296 = vsel %vm91, %v1252, 2147483647
  %v1297 = vrot.slane %v1296, 4
  %vm1298 = vcmp.lt.s32.totalorder %v1296, %v1297
  %v1299 = vsel %vm1298, %v1296, %v1297
  %v1300 = vrot.slane %v1299, 2
  %vm1301 = vcmp.lt.s32.totalorder %v1299, %v1300
  %v1302 = vsel %vm1301, %v1299, %v1300
  %v1303 = vrot.slane %v1302, 1
  %vm1304 = vcmp.lt.s32.totalorder %v1302, %v1303
  %v1305 = vsel %vm1304, %v1302, %v1303
  %v1306 = vsel %vm91, %v1253, 2147483647
  %v1307 = vrot.slane %v1306, 4
  %vm1308 = vcmp.lt.s32.totalorder %v1306, %v1307
  %v1309 = vsel %vm1308, %v1306, %v1307
  %v1310 = vrot.slane %v1309, 2
  %vm1311 = vcmp.lt.s32.totalorder %v1309, %v1310
  %v1312 = vsel %vm1311, %v1309, %v1310
  %v1313 = vrot.slane %v1312, 1
  %vm1314 = vcmp.lt.s32.totalorder %v1312, %v1313
  %v1315 = vsel %vm1314, %v1312, %v1313
  %v1316 = vsel %vm91, %v1254, 2147483647
  %v1317 = vrot.slane %v1316, 4
  %vm1318 = vcmp.lt.s32.totalorder %v1316, %v1317
  %v1319 = vsel %vm1318, %v1316, %v1317
  %v1320 = vrot.slane %v1319, 2
  %vm1321 = vcmp.lt.s32.totalorder %v1319, %v1320
  %v1322 = vsel %vm1321, %v1319, %v1320
  %v1323 = vrot.slane %v1322, 1
  %vm1324 = vcmp.lt.s32.totalorder %v1322, %v1323
  %v1325 = vsel %vm1324, %v1322, %v1323
  %v1326 = vsel %vm91, %v1255, 2147483647
  %v1327 = vrot.slane %v1326, 4
  %vm1328 = vcmp.lt.s32.totalorder %v1326, %v1327
  %v1329 = vsel %vm1328, %v1326, %v1327
  %v1330 = vrot.slane %v1329, 2
  %vm1331 = vcmp.lt.s32.totalorder %v1329, %v1330
  %v1332 = vsel %vm1331, %v1329, %v1330
  %v1333 = vrot.slane %v1332, 1
  %vm1334 = vcmp.lt.s32.totalorder %v1332, %v1333
  %v1335 = vsel %vm1334, %v1332, %v1333
  %v1344 = vsel %vm252, %v1197, %v1190
  %v1345 = vsel %vm254, %v1204, %v1344
  %v1346 = vsel %vm256, %v1211, %v1345
  %v1347 = vsel %vm258, %v1218, %v1346
  %v1348 = vsel %vm260, %v1225, %v1347
  %v1349 = vsel %vm262, %v1232, %v1348
  %v1350 = vsel %vm264, %v1239, %v1349
  %v1352 = vadd.f32 %v1174, %v1350
  %p1353 = scmp.gt.s32.totalorder %s1172, 0
  %v1354 = vstv %s1172
  %vm1355 = vcmp.lt.s32.totalorder %v1354, %v19
  %s1356 = scalar_select %p1353, 1, 0
  %v1357 = vstv %s1356
  %vm1358 = vcmp.eq.s32.totalorder %v1357, 1
  %vm1359 = vmand %vm1358, %vm1355
  %v1360 = vsel %vm1359, 1, 0
  %v1361 = vlaneseq
  %v1362 = vshrl.u32 %v1361, 7
  %v1363 = vsub.s32 0, %v1362
  %v1364 = vrot.slane %v1360, %v1363
  %vm1365 = vcmp.eq.s32.totalorder %v1364, 1
  %v1366 = vsel %vm252, %v1275, %v1265
  %v1367 = vsel %vm254, %v1285, %v1366
  %v1368 = vsel %vm256, %v1295, %v1367
  %v1369 = vsel %vm258, %v1305, %v1368
  %v1370 = vsel %vm260, %v1315, %v1369
  %v1371 = vsel %vm262, %v1325, %v1370
  %v1372 = vsel %vm264, %v1335, %v1371
  %v1373 = vsel %vm1365, %v1372, 0
  %v1374 = vpack.c.b16 %v1373, %v1373
  %v1375 = vpack.c.b8 %v1374, %v1374
  %s1376 = scalar_lea.vmem %s4, 10
  %1377 = vst.msk [vmem:[%s1376] sm:$0x3] %vm291, %v1375
  %1378 = vst.msk [vmem:[#allocation2] sm:$0xff] %vm91, %v1352
  %vm1379 = vcmp.eq.s32.totalorder %v1354, %v20
  %v1380 = vld [vmem:[#allocation3] sm:$0xff]
  %v1381 = vsel %vm1379, 1, 0
  %v1382 = vlaneseq
  %v1383 = vshrl.u32 %v1382, 7
  %v1384 = vsub.s32 0, %v1383
  %v1385 = vrot.slane %v1381, %v1384
  %vm1386 = vcmp.eq.s32.totalorder %v1385, 1
  %v1387 = vsel %vm1386, %v1352, %v1380
  %1388 = vst.msk [vmem:[#allocation3] sm:$0xff] %vm91, %v1387
  %s1389 = sadd.s32 %s80, 6
  %s1390 = scalar_lea.vmem %s0, 48
  %v1391 = vld [vmem:[%s1390] sm:$0xff]
  %v1392 = vld [vmem:[#allocation2] sm:$0xff]
  %v1393 = vadd.f32 %v32, %v1392
  %v1394 = vadd.f32 %v37, %v1392
  %v1395 = vadd.f32 %v42, %v1392
  %v1396 = vadd.f32 %v47, %v1392
  %v1397 = vadd.f32 %v52, %v1392
  %v1398 = vadd.f32 %v57, %v1392
  %v1399 = vadd.f32 %v62, %v1392
  %v1400 = vadd.f32 %v67, %v1392
  %v1401 = vsel %vm91, %v1393, -inf
  %v1402 = vrot.slane %v1401, 4
  %v1403 = vmax.f32 %v1401, %v1402
  %v1404 = vrot.slane %v1403, 2
  %v1405 = vmax.f32 %v1403, %v1404
  %v1406 = vrot.slane %v1405, 1
  %v1407 = vmax.f32 %v1405, %v1406
  %v1408 = vsel %vm91, %v1394, -inf
  %v1409 = vrot.slane %v1408, 4
  %v1410 = vmax.f32 %v1408, %v1409
  %v1411 = vrot.slane %v1410, 2
  %v1412 = vmax.f32 %v1410, %v1411
  %v1413 = vrot.slane %v1412, 1
  %v1414 = vmax.f32 %v1412, %v1413
  %v1415 = vsel %vm91, %v1395, -inf
  %v1416 = vrot.slane %v1415, 4
  %v1417 = vmax.f32 %v1415, %v1416
  %v1418 = vrot.slane %v1417, 2
  %v1419 = vmax.f32 %v1417, %v1418
  %v1420 = vrot.slane %v1419, 1
  %v1421 = vmax.f32 %v1419, %v1420
  %v1422 = vsel %vm91, %v1396, -inf
  %v1423 = vrot.slane %v1422, 4
  %v1424 = vmax.f32 %v1422, %v1423
  %v1425 = vrot.slane %v1424, 2
  %v1426 = vmax.f32 %v1424, %v1425
  %v1427 = vrot.slane %v1426, 1
  %v1428 = vmax.f32 %v1426, %v1427
  %v1429 = vsel %vm91, %v1397, -inf
  %v1430 = vrot.slane %v1429, 4
  %v1431 = vmax.f32 %v1429, %v1430
  %v1432 = vrot.slane %v1431, 2
  %v1433 = vmax.f32 %v1431, %v1432
  %v1434 = vrot.slane %v1433, 1
  %v1435 = vmax.f32 %v1433, %v1434
  %v1436 = vsel %vm91, %v1398, -inf
  %v1437 = vrot.slane %v1436, 4
  %v1438 = vmax.f32 %v1436, %v1437
  %v1439 = vrot.slane %v1438, 2
  %v1440 = vmax.f32 %v1438, %v1439
  %v1441 = vrot.slane %v1440, 1
  %v1442 = vmax.f32 %v1440, %v1441
  %v1443 = vsel %vm91, %v1399, -inf
  %v1444 = vrot.slane %v1443, 4
  %v1445 = vmax.f32 %v1443, %v1444
  %v1446 = vrot.slane %v1445, 2
  %v1447 = vmax.f32 %v1445, %v1446
  %v1448 = vrot.slane %v1447, 1
  %v1449 = vmax.f32 %v1447, %v1448
  %v1450 = vsel %vm91, %v1400, -inf
  %v1451 = vrot.slane %v1450, 4
  %v1452 = vmax.f32 %v1450, %v1451
  %v1453 = vrot.slane %v1452, 2
  %v1454 = vmax.f32 %v1452, %v1453
  %v1455 = vrot.slane %v1454, 1
  %v1456 = vmax.f32 %v1454, %v1455
  %vm1457 = vcmp.eq.f32.partialorder %v1393, %v1407
  %vm1458 = vcmp.eq.f32.partialorder %v1394, %v1414
  %vm1459 = vcmp.eq.f32.partialorder %v1395, %v1421
  %vm1460 = vcmp.eq.f32.partialorder %v1396, %v1428
  %vm1461 = vcmp.eq.f32.partialorder %v1397, %v1435
  %vm1462 = vcmp.eq.f32.partialorder %v1398, %v1442
  %vm1463 = vcmp.eq.f32.partialorder %v1399, %v1449
  %vm1464 = vcmp.eq.f32.partialorder %v1400, %v1456
  %v1465 = vsel %vm1457, %v70, 8
  %v1466 = vsel %vm1458, %v70, 8
  %v1467 = vsel %vm1459, %v70, 8
  %v1468 = vsel %vm1460, %v70, 8
  %v1469 = vsel %vm1461, %v70, 8
  %v1470 = vsel %vm1462, %v70, 8
  %v1471 = vsel %vm1463, %v70, 8
  %v1472 = vsel %vm1464, %v70, 8
  %v1473 = vsel %vm91, %v1465, 2147483647
  %v1474 = vrot.slane %v1473, 4
  %vm1475 = vcmp.lt.s32.totalorder %v1473, %v1474
  %v1476 = vsel %vm1475, %v1473, %v1474
  %v1477 = vrot.slane %v1476, 2
  %vm1478 = vcmp.lt.s32.totalorder %v1476, %v1477
  %v1479 = vsel %vm1478, %v1476, %v1477
  %v1480 = vrot.slane %v1479, 1
  %vm1481 = vcmp.lt.s32.totalorder %v1479, %v1480
  %v1482 = vsel %vm1481, %v1479, %v1480
  %v1483 = vsel %vm91, %v1466, 2147483647
  %v1484 = vrot.slane %v1483, 4
  %vm1485 = vcmp.lt.s32.totalorder %v1483, %v1484
  %v1486 = vsel %vm1485, %v1483, %v1484
  %v1487 = vrot.slane %v1486, 2
  %vm1488 = vcmp.lt.s32.totalorder %v1486, %v1487
  %v1489 = vsel %vm1488, %v1486, %v1487
  %v1490 = vrot.slane %v1489, 1
  %vm1491 = vcmp.lt.s32.totalorder %v1489, %v1490
  %v1492 = vsel %vm1491, %v1489, %v1490
  %v1493 = vsel %vm91, %v1467, 2147483647
  %v1494 = vrot.slane %v1493, 4
  %vm1495 = vcmp.lt.s32.totalorder %v1493, %v1494
  %v1496 = vsel %vm1495, %v1493, %v1494
  %v1497 = vrot.slane %v1496, 2
  %vm1498 = vcmp.lt.s32.totalorder %v1496, %v1497
  %v1499 = vsel %vm1498, %v1496, %v1497
  %v1500 = vrot.slane %v1499, 1
  %vm1501 = vcmp.lt.s32.totalorder %v1499, %v1500
  %v1502 = vsel %vm1501, %v1499, %v1500
  %v1503 = vsel %vm91, %v1468, 2147483647
  %v1504 = vrot.slane %v1503, 4
  %vm1505 = vcmp.lt.s32.totalorder %v1503, %v1504
  %v1506 = vsel %vm1505, %v1503, %v1504
  %v1507 = vrot.slane %v1506, 2
  %vm1508 = vcmp.lt.s32.totalorder %v1506, %v1507
  %v1509 = vsel %vm1508, %v1506, %v1507
  %v1510 = vrot.slane %v1509, 1
  %vm1511 = vcmp.lt.s32.totalorder %v1509, %v1510
  %v1512 = vsel %vm1511, %v1509, %v1510
  %v1513 = vsel %vm91, %v1469, 2147483647
  %v1514 = vrot.slane %v1513, 4
  %vm1515 = vcmp.lt.s32.totalorder %v1513, %v1514
  %v1516 = vsel %vm1515, %v1513, %v1514
  %v1517 = vrot.slane %v1516, 2
  %vm1518 = vcmp.lt.s32.totalorder %v1516, %v1517
  %v1519 = vsel %vm1518, %v1516, %v1517
  %v1520 = vrot.slane %v1519, 1
  %vm1521 = vcmp.lt.s32.totalorder %v1519, %v1520
  %v1522 = vsel %vm1521, %v1519, %v1520
  %v1523 = vsel %vm91, %v1470, 2147483647
  %v1524 = vrot.slane %v1523, 4
  %vm1525 = vcmp.lt.s32.totalorder %v1523, %v1524
  %v1526 = vsel %vm1525, %v1523, %v1524
  %v1527 = vrot.slane %v1526, 2
  %vm1528 = vcmp.lt.s32.totalorder %v1526, %v1527
  %v1529 = vsel %vm1528, %v1526, %v1527
  %v1530 = vrot.slane %v1529, 1
  %vm1531 = vcmp.lt.s32.totalorder %v1529, %v1530
  %v1532 = vsel %vm1531, %v1529, %v1530
  %v1533 = vsel %vm91, %v1471, 2147483647
  %v1534 = vrot.slane %v1533, 4
  %vm1535 = vcmp.lt.s32.totalorder %v1533, %v1534
  %v1536 = vsel %vm1535, %v1533, %v1534
  %v1537 = vrot.slane %v1536, 2
  %vm1538 = vcmp.lt.s32.totalorder %v1536, %v1537
  %v1539 = vsel %vm1538, %v1536, %v1537
  %v1540 = vrot.slane %v1539, 1
  %vm1541 = vcmp.lt.s32.totalorder %v1539, %v1540
  %v1542 = vsel %vm1541, %v1539, %v1540
  %v1543 = vsel %vm91, %v1472, 2147483647
  %v1544 = vrot.slane %v1543, 4
  %vm1545 = vcmp.lt.s32.totalorder %v1543, %v1544
  %v1546 = vsel %vm1545, %v1543, %v1544
  %v1547 = vrot.slane %v1546, 2
  %vm1548 = vcmp.lt.s32.totalorder %v1546, %v1547
  %v1549 = vsel %vm1548, %v1546, %v1547
  %v1550 = vrot.slane %v1549, 1
  %vm1551 = vcmp.lt.s32.totalorder %v1549, %v1550
  %v1552 = vsel %vm1551, %v1549, %v1550
  %v1561 = vsel %vm252, %v1414, %v1407
  %v1562 = vsel %vm254, %v1421, %v1561
  %v1563 = vsel %vm256, %v1428, %v1562
  %v1564 = vsel %vm258, %v1435, %v1563
  %v1565 = vsel %vm260, %v1442, %v1564
  %v1566 = vsel %vm262, %v1449, %v1565
  %v1567 = vsel %vm264, %v1456, %v1566
  %v1569 = vadd.f32 %v1391, %v1567
  %p1570 = scmp.gt.s32.totalorder %s1389, 0
  %v1571 = vstv %s1389
  %vm1572 = vcmp.lt.s32.totalorder %v1571, %v19
  %s1573 = scalar_select %p1570, 1, 0
  %v1574 = vstv %s1573
  %vm1575 = vcmp.eq.s32.totalorder %v1574, 1
  %vm1576 = vmand %vm1575, %vm1572
  %v1577 = vsel %vm1576, 1, 0
  %v1578 = vlaneseq
  %v1579 = vshrl.u32 %v1578, 7
  %v1580 = vsub.s32 0, %v1579
  %v1581 = vrot.slane %v1577, %v1580
  %vm1582 = vcmp.eq.s32.totalorder %v1581, 1
  %v1583 = vsel %vm252, %v1492, %v1482
  %v1584 = vsel %vm254, %v1502, %v1583
  %v1585 = vsel %vm256, %v1512, %v1584
  %v1586 = vsel %vm258, %v1522, %v1585
  %v1587 = vsel %vm260, %v1532, %v1586
  %v1588 = vsel %vm262, %v1542, %v1587
  %v1589 = vsel %vm264, %v1552, %v1588
  %v1590 = vsel %vm1582, %v1589, 0
  %v1591 = vpack.c.b16 %v1590, %v1590
  %v1592 = vpack.c.b8 %v1591, %v1591
  %s1593 = scalar_lea.vmem %s4, 12
  %1594 = vst.msk [vmem:[%s1593] sm:$0x3] %vm291, %v1592
  %1595 = vst.msk [vmem:[#allocation2] sm:$0xff] %vm91, %v1569
  %vm1596 = vcmp.eq.s32.totalorder %v1571, %v20
  %v1597 = vld [vmem:[#allocation3] sm:$0xff]
  %v1598 = vsel %vm1596, 1, 0
  %v1599 = vlaneseq
  %v1600 = vshrl.u32 %v1599, 7
  %v1601 = vsub.s32 0, %v1600
  %v1602 = vrot.slane %v1598, %v1601
  %vm1603 = vcmp.eq.s32.totalorder %v1602, 1
  %v1604 = vsel %vm1603, %v1569, %v1597
  %1605 = vst.msk [vmem:[#allocation3] sm:$0xff] %vm91, %v1604
  %s1606 = sadd.s32 %s80, 7
  %s1607 = scalar_lea.vmem %s0, 56
  %v1608 = vld [vmem:[%s1607] sm:$0xff]
  %v1609 = vld [vmem:[#allocation2] sm:$0xff]
  %v1610 = vadd.f32 %v32, %v1609
  %v1611 = vadd.f32 %v37, %v1609
  %v1612 = vadd.f32 %v42, %v1609
  %v1613 = vadd.f32 %v47, %v1609
  %v1614 = vadd.f32 %v52, %v1609
  %v1615 = vadd.f32 %v57, %v1609
  %v1616 = vadd.f32 %v62, %v1609
  %v1617 = vadd.f32 %v67, %v1609
  %v1618 = vsel %vm91, %v1610, -inf
  %v1619 = vrot.slane %v1618, 4
  %v1620 = vmax.f32 %v1618, %v1619
  %v1621 = vrot.slane %v1620, 2
  %v1622 = vmax.f32 %v1620, %v1621
  %v1623 = vrot.slane %v1622, 1
  %v1624 = vmax.f32 %v1622, %v1623
  %v1625 = vsel %vm91, %v1611, -inf
  %v1626 = vrot.slane %v1625, 4
  %v1627 = vmax.f32 %v1625, %v1626
  %v1628 = vrot.slane %v1627, 2
  %v1629 = vmax.f32 %v1627, %v1628
  %v1630 = vrot.slane %v1629, 1
  %v1631 = vmax.f32 %v1629, %v1630
  %v1632 = vsel %vm91, %v1612, -inf
  %v1633 = vrot.slane %v1632, 4
  %v1634 = vmax.f32 %v1632, %v1633
  %v1635 = vrot.slane %v1634, 2
  %v1636 = vmax.f32 %v1634, %v1635
  %v1637 = vrot.slane %v1636, 1
  %v1638 = vmax.f32 %v1636, %v1637
  %v1639 = vsel %vm91, %v1613, -inf
  %v1640 = vrot.slane %v1639, 4
  %v1641 = vmax.f32 %v1639, %v1640
  %v1642 = vrot.slane %v1641, 2
  %v1643 = vmax.f32 %v1641, %v1642
  %v1644 = vrot.slane %v1643, 1
  %v1645 = vmax.f32 %v1643, %v1644
  %v1646 = vsel %vm91, %v1614, -inf
  %v1647 = vrot.slane %v1646, 4
  %v1648 = vmax.f32 %v1646, %v1647
  %v1649 = vrot.slane %v1648, 2
  %v1650 = vmax.f32 %v1648, %v1649
  %v1651 = vrot.slane %v1650, 1
  %v1652 = vmax.f32 %v1650, %v1651
  %v1653 = vsel %vm91, %v1615, -inf
  %v1654 = vrot.slane %v1653, 4
  %v1655 = vmax.f32 %v1653, %v1654
  %v1656 = vrot.slane %v1655, 2
  %v1657 = vmax.f32 %v1655, %v1656
  %v1658 = vrot.slane %v1657, 1
  %v1659 = vmax.f32 %v1657, %v1658
  %v1660 = vsel %vm91, %v1616, -inf
  %v1661 = vrot.slane %v1660, 4
  %v1662 = vmax.f32 %v1660, %v1661
  %v1663 = vrot.slane %v1662, 2
  %v1664 = vmax.f32 %v1662, %v1663
  %v1665 = vrot.slane %v1664, 1
  %v1666 = vmax.f32 %v1664, %v1665
  %v1667 = vsel %vm91, %v1617, -inf
  %v1668 = vrot.slane %v1667, 4
  %v1669 = vmax.f32 %v1667, %v1668
  %v1670 = vrot.slane %v1669, 2
  %v1671 = vmax.f32 %v1669, %v1670
  %v1672 = vrot.slane %v1671, 1
  %v1673 = vmax.f32 %v1671, %v1672
  %vm1674 = vcmp.eq.f32.partialorder %v1610, %v1624
  %vm1675 = vcmp.eq.f32.partialorder %v1611, %v1631
  %vm1676 = vcmp.eq.f32.partialorder %v1612, %v1638
  %vm1677 = vcmp.eq.f32.partialorder %v1613, %v1645
  %vm1678 = vcmp.eq.f32.partialorder %v1614, %v1652
  %vm1679 = vcmp.eq.f32.partialorder %v1615, %v1659
  %vm1680 = vcmp.eq.f32.partialorder %v1616, %v1666
  %vm1681 = vcmp.eq.f32.partialorder %v1617, %v1673
  %v1682 = vsel %vm1674, %v70, 8
  %v1683 = vsel %vm1675, %v70, 8
  %v1684 = vsel %vm1676, %v70, 8
  %v1685 = vsel %vm1677, %v70, 8
  %v1686 = vsel %vm1678, %v70, 8
  %v1687 = vsel %vm1679, %v70, 8
  %v1688 = vsel %vm1680, %v70, 8
  %v1689 = vsel %vm1681, %v70, 8
  %v1690 = vsel %vm91, %v1682, 2147483647
  %v1691 = vrot.slane %v1690, 4
  %vm1692 = vcmp.lt.s32.totalorder %v1690, %v1691
  %v1693 = vsel %vm1692, %v1690, %v1691
  %v1694 = vrot.slane %v1693, 2
  %vm1695 = vcmp.lt.s32.totalorder %v1693, %v1694
  %v1696 = vsel %vm1695, %v1693, %v1694
  %v1697 = vrot.slane %v1696, 1
  %vm1698 = vcmp.lt.s32.totalorder %v1696, %v1697
  %v1699 = vsel %vm1698, %v1696, %v1697
  %v1700 = vsel %vm91, %v1683, 2147483647
  %v1701 = vrot.slane %v1700, 4
  %vm1702 = vcmp.lt.s32.totalorder %v1700, %v1701
  %v1703 = vsel %vm1702, %v1700, %v1701
  %v1704 = vrot.slane %v1703, 2
  %vm1705 = vcmp.lt.s32.totalorder %v1703, %v1704
  %v1706 = vsel %vm1705, %v1703, %v1704
  %v1707 = vrot.slane %v1706, 1
  %vm1708 = vcmp.lt.s32.totalorder %v1706, %v1707
  %v1709 = vsel %vm1708, %v1706, %v1707
  %v1710 = vsel %vm91, %v1684, 2147483647
  %v1711 = vrot.slane %v1710, 4
  %vm1712 = vcmp.lt.s32.totalorder %v1710, %v1711
  %v1713 = vsel %vm1712, %v1710, %v1711
  %v1714 = vrot.slane %v1713, 2
  %vm1715 = vcmp.lt.s32.totalorder %v1713, %v1714
  %v1716 = vsel %vm1715, %v1713, %v1714
  %v1717 = vrot.slane %v1716, 1
  %vm1718 = vcmp.lt.s32.totalorder %v1716, %v1717
  %v1719 = vsel %vm1718, %v1716, %v1717
  %v1720 = vsel %vm91, %v1685, 2147483647
  %v1721 = vrot.slane %v1720, 4
  %vm1722 = vcmp.lt.s32.totalorder %v1720, %v1721
  %v1723 = vsel %vm1722, %v1720, %v1721
  %v1724 = vrot.slane %v1723, 2
  %vm1725 = vcmp.lt.s32.totalorder %v1723, %v1724
  %v1726 = vsel %vm1725, %v1723, %v1724
  %v1727 = vrot.slane %v1726, 1
  %vm1728 = vcmp.lt.s32.totalorder %v1726, %v1727
  %v1729 = vsel %vm1728, %v1726, %v1727
  %v1730 = vsel %vm91, %v1686, 2147483647
  %v1731 = vrot.slane %v1730, 4
  %vm1732 = vcmp.lt.s32.totalorder %v1730, %v1731
  %v1733 = vsel %vm1732, %v1730, %v1731
  %v1734 = vrot.slane %v1733, 2
  %vm1735 = vcmp.lt.s32.totalorder %v1733, %v1734
  %v1736 = vsel %vm1735, %v1733, %v1734
  %v1737 = vrot.slane %v1736, 1
  %vm1738 = vcmp.lt.s32.totalorder %v1736, %v1737
  %v1739 = vsel %vm1738, %v1736, %v1737
  %v1740 = vsel %vm91, %v1687, 2147483647
  %v1741 = vrot.slane %v1740, 4
  %vm1742 = vcmp.lt.s32.totalorder %v1740, %v1741
  %v1743 = vsel %vm1742, %v1740, %v1741
  %v1744 = vrot.slane %v1743, 2
  %vm1745 = vcmp.lt.s32.totalorder %v1743, %v1744
  %v1746 = vsel %vm1745, %v1743, %v1744
  %v1747 = vrot.slane %v1746, 1
  %vm1748 = vcmp.lt.s32.totalorder %v1746, %v1747
  %v1749 = vsel %vm1748, %v1746, %v1747
  %v1750 = vsel %vm91, %v1688, 2147483647
  %v1751 = vrot.slane %v1750, 4
  %vm1752 = vcmp.lt.s32.totalorder %v1750, %v1751
  %v1753 = vsel %vm1752, %v1750, %v1751
  %v1754 = vrot.slane %v1753, 2
  %vm1755 = vcmp.lt.s32.totalorder %v1753, %v1754
  %v1756 = vsel %vm1755, %v1753, %v1754
  %v1757 = vrot.slane %v1756, 1
  %vm1758 = vcmp.lt.s32.totalorder %v1756, %v1757
  %v1759 = vsel %vm1758, %v1756, %v1757
  %v1760 = vsel %vm91, %v1689, 2147483647
  %v1761 = vrot.slane %v1760, 4
  %vm1762 = vcmp.lt.s32.totalorder %v1760, %v1761
  %v1763 = vsel %vm1762, %v1760, %v1761
  %v1764 = vrot.slane %v1763, 2
  %vm1765 = vcmp.lt.s32.totalorder %v1763, %v1764
  %v1766 = vsel %vm1765, %v1763, %v1764
  %v1767 = vrot.slane %v1766, 1
  %vm1768 = vcmp.lt.s32.totalorder %v1766, %v1767
  %v1769 = vsel %vm1768, %v1766, %v1767
  %v1778 = vsel %vm252, %v1631, %v1624
  %v1779 = vsel %vm254, %v1638, %v1778
  %v1780 = vsel %vm256, %v1645, %v1779
  %v1781 = vsel %vm258, %v1652, %v1780
  %v1782 = vsel %vm260, %v1659, %v1781
  %v1783 = vsel %vm262, %v1666, %v1782
  %v1784 = vsel %vm264, %v1673, %v1783
  %v1786 = vadd.f32 %v1608, %v1784
  %p1787 = scmp.gt.s32.totalorder %s1606, 0
  %v1788 = vstv %s1606
  %vm1789 = vcmp.lt.s32.totalorder %v1788, %v19
  %s1790 = scalar_select %p1787, 1, 0
  %v1791 = vstv %s1790
  %vm1792 = vcmp.eq.s32.totalorder %v1791, 1
  %vm1793 = vmand %vm1792, %vm1789
  %v1794 = vsel %vm1793, 1, 0
  %v1795 = vlaneseq
  %v1796 = vshrl.u32 %v1795, 7
  %v1797 = vsub.s32 0, %v1796
  %v1798 = vrot.slane %v1794, %v1797
  %vm1799 = vcmp.eq.s32.totalorder %v1798, 1
  %v1800 = vsel %vm252, %v1709, %v1699
  %v1801 = vsel %vm254, %v1719, %v1800
  %v1802 = vsel %vm256, %v1729, %v1801
  %v1803 = vsel %vm258, %v1739, %v1802
  %v1804 = vsel %vm260, %v1749, %v1803
  %v1805 = vsel %vm262, %v1759, %v1804
  %v1806 = vsel %vm264, %v1769, %v1805
  %v1807 = vsel %vm1799, %v1806, 0
  %v1808 = vpack.c.b16 %v1807, %v1807
  %v1809 = vpack.c.b8 %v1808, %v1808
  %s1810 = scalar_lea.vmem %s4, 14
  %1811 = vst.msk [vmem:[%s1810] sm:$0x3] %vm291, %v1809
  %1812 = vst.msk [vmem:[#allocation2] sm:$0xff] %vm91, %v1786
  %vm1813 = vcmp.eq.s32.totalorder %v1788, %v20
  %v1814 = vld [vmem:[#allocation3] sm:$0xff]
  %v1815 = vsel %vm1813, 1, 0
  %v1816 = vlaneseq
  %v1817 = vshrl.u32 %v1816, 7
  %v1818 = vsub.s32 0, %v1817
  %v1819 = vrot.slane %v1815, %v1818
  %vm1820 = vcmp.eq.s32.totalorder %v1819, 1
  %v1821 = vsel %vm1820, %v1786, %v1814
  %1822 = vst.msk [vmem:[#allocation3] sm:$0xff] %vm91, %v1821
  // Predicated region
  $region22: #{crf_viterbi_decode.2} parent=0 // pred_check
    %p1823 = pneg %p71
  $region23: #{crf_viterbi_decode.2} parent=0 // pred_check_branch
    %1825 = sbr.rel (%p1823) target = $region25
  $region24: #{crf_viterbi_decode.2} parent=0 // pred_region
    %v1826 = vld [vmem:[#allocation3] sm:$0xff]
    %v1827 = vld [vmem:[%s3] sm:$0xff]
    %1829 = vset.pattern.permute.xlu0 0
    %1830 = vperm.xlu0 %1829, %v1827
    %v1831 = vpop.permute.xlu0 %1830
    %v1833 = vadd.f32 %v1826, %v1831
    %v1834 = vsel %vm91, %v1833, -inf
    %v1835 = vrot.slane %v1834, 4
    %v1836 = vmax.f32 %v1834, %v1835
    %v1837 = vrot.slane %v1836, 2
    %v1838 = vmax.f32 %v1836, %v1837
    %v1839 = vrot.slane %v1838, 1
    %v1840 = vmax.f32 %v1838, %v1839
    %vm1841 = vcmp.eq.f32.partialorder %v1833, %v1840
    %v1842 = vsel %vm1841, %v70, 8
    %v1843 = vsel %vm91, %v1842, 2147483647
    %v1844 = vrot.slane %v1843, 4
    %vm1845 = vcmp.lt.s32.totalorder %v1843, %v1844
    %v1846 = vsel %vm1845, %v1843, %v1844
    %v1847 = vrot.slane %v1846, 2
    %vm1848 = vcmp.lt.s32.totalorder %v1846, %v1847
    %v1849 = vsel %vm1848, %v1846, %v1847
    %v1850 = vrot.slane %v1849, 1
    %vm1851 = vcmp.lt.s32.totalorder %v1849, %v1850
    %v1852 = vsel %vm1851, %v1849, %v1850
    %vm1853 = vcmask 8192
    %1854 = vst.msk [vmem:[%s5] sm:$0x1] %vm1853, %v1852
  $region25: #{crf_viterbi_decode.2} parent=0 // pred_fallthru
    _
  // Predicated region
  $region26: #{crf_viterbi_decode.2} parent=0 // pred_check
    _
  $region27: #{crf_viterbi_decode.2} parent=0 // pred_check_branch
    %1856 = sbr.rel (0) target = $region29
  $region28: #{crf_viterbi_decode.2} parent=0 // pred_region
    _
  $region29: #{crf_viterbi_decode.2} parent=0 // pred_fallthru
    _
  // Predicated region
  $region30: #{crf_viterbi_decode.2} parent=0 // pred_check
    _
  $region31: #{crf_viterbi_decode.2} parent=0 // pred_check_branch
    %1858 = sbr.rel (0) target = $region33
  $region32: #{crf_viterbi_decode.2} parent=0 // pred_region
    _
  $region33: #{crf_viterbi_decode.2} parent=0 // pred_fallthru
    _
  // Predicated region
  $region34: #{crf_viterbi_decode.2} parent=0 // pred_check
    _
  $region35: #{crf_viterbi_decode.2} parent=0 // pred_check_branch
    %1860 = sbr.rel (0) target = $region37
  $region36: #{crf_viterbi_decode.2} parent=0 // pred_region
    _
  $region37: #{crf_viterbi_decode.2} parent=0 // pred_fallthru
    _
  // Predicated region
  $region38: #{crf_viterbi_decode.2} parent=0 // pred_check
    _
  $region39: #{crf_viterbi_decode.2} parent=0 // pred_check_branch
    %1862 = sbr.rel (0) target = $region41
  $region40: #{crf_viterbi_decode.2} parent=0 // pred_region
    _
  $region41: #{crf_viterbi_decode.2} parent=0 // pred_fallthru
    _

</llo_original>
